<compile_context>
chip_gen: v6e
topology: v6e:2x2x1
jax: 0.10.0
libtpu: 0.0.40
codegen_flags: <defaults>
</compile_context>

<pallas_src>
import functools
import math

import jax
import jax.numpy as jnp
from jax.experimental import pallas as pl
from jax.experimental.pallas import tpu as pltpu

BN_EPS = 1e-5
LANE = 128
VMEM_LIMIT = 32 * 1024 * 1024  # comfortably below v7x's 64 MiB physical VMEM


def _round_up(x, m):
    return (x + m - 1) // m * m


def _tile_rows(m, cap=1024):
    """Largest multiple-of-8 divisor of m that is <= cap (whole m if m<=cap)."""
    if m <= cap:
        return m
    t = (cap // 8) * 8
    while t >= 8:
        if m % t == 0:
            return t
        t -= 8
    # TODO(synk): pad m up / masked tail for huge indivisible activations.
    return m


# ---------------------------------------------------------------------------
# Kernels
# ---------------------------------------------------------------------------
def _accum_taps(src_ref, w_ref, taps, ho, wo, cip):
    """Accumulate the 9 conv taps: sum_t  src[tap_t] @ w[t]  in f32."""
    acc = None
    for t, (ro, co, lo) in enumerate(taps):
        a = src_ref[ro:ro + ho, co:co + wo, lo:lo + cip].reshape(ho * wo, cip)
        p = jnp.dot(a, w_ref[t // 3, t % 3], preferred_element_type=jnp.float32)
        acc = p if acc is None else acc + p
    return acc


def _conv1_kernel(x_ref, w_ref, o_ref, sum_ref, ssq_ref, *, taps, ho, wo, cip):
    """conv3x3 (one batch image per grid step) with fused BN-stats outputs."""
    acc = _accum_taps(x_ref, w_ref, taps, ho, wo, cip)
    sum_ref[...] = jnp.sum(acc, axis=0, keepdims=True)
    ssq_ref[...] = jnp.sum(acc * acc, axis=0, keepdims=True)
    o_ref[...] = acc.astype(o_ref.dtype)


def _conv1_ds_kernel(x_ref, w_ref, wd_ref, o_ref, sum_ref, ssq_ref,
                     d_ref, dsum_ref, dssq_ref, *, taps, ds_off, ho, wo, cip):
    """conv3x3 + fused 1x1-stride downsample conv, both with fused BN stats."""
    acc = _accum_taps(x_ref, w_ref, taps, ho, wo, cip)
    sum_ref[...] = jnp.sum(acc, axis=0, keepdims=True)
    ssq_ref[...] = jnp.sum(acc * acc, axis=0, keepdims=True)
    o_ref[...] = acc.astype(o_ref.dtype)

    ro, co, lo = ds_off
    a = x_ref[ro:ro + ho, co:co + wo, lo:lo + cip].reshape(ho * wo, cip)
    dacc = jnp.dot(a, wd_ref[...], preferred_element_type=jnp.float32)
    dsum_ref[...] = jnp.sum(dacc, axis=0, keepdims=True)
    dssq_ref[...] = jnp.sum(dacc * dacc, axis=0, keepdims=True)
    d_ref[...] = dacc.astype(d_ref.dtype)


def _conv2_kernel(x_ref, w_ref, scale_ref, shift_ref,
                  o_ref, sum_ref, ssq_ref, pad_ref, *, hi, wi, cip):
    """conv3x3 stride-1 with BN1-apply + ReLU fused into the input staging and
    BN2 stats fused into the output.  Spatial padding is done in VMEM."""
    # BN1 + ReLU applied while staging the raw conv1 output into the padded
    # scratch; the halo stays exactly zero (as required by pad-then-conv).
    xb = jnp.maximum(
        x_ref[...].astype(jnp.float32) * scale_ref[...] + shift_ref[...], 0.0)
    pad_ref[...] = jnp.zeros_like(pad_ref)
    pad_ref[1:hi + 1, 1:wi + 1, :] = xb.reshape(hi, wi, cip).astype(pad_ref.dtype)

    taps = tuple((kh, kw, 0) for kh in range(3) for kw in range(3))
    acc = _accum_taps(pad_ref, w_ref, taps, hi, wi, cip)
    sum_ref[...] = jnp.sum(acc, axis=0, keepdims=True)
    ssq_ref[...] = jnp.sum(acc * acc, axis=0, keepdims=True)
    o_ref[...] = acc.astype(o_ref.dtype)


def _bn_add_relu_kernel(x_ref, r_ref, sx_ref, bx_ref, sr_ref, br_ref, o_ref):
    """Fused BN2-apply + downsample-BN-apply + residual add + final ReLU."""
    y = x_ref[...].astype(jnp.float32) * sx_ref[...] + bx_ref[...]
    r = r_ref[...].astype(jnp.float32) * sr_ref[...] + br_ref[...]
    o_ref[...] = jnp.maximum(y + r, 0.0).astype(o_ref.dtype)


def _bn_relu_kernel(x_ref, sx_ref, bx_ref, o_ref):
    y = x_ref[...].astype(jnp.float32) * sx_ref[...] + bx_ref[...]
    o_ref[...] = jnp.maximum(y, 0.0).astype(o_ref.dtype)


# ---------------------------------------------------------------------------
# Pallas wrappers
# ---------------------------------------------------------------------------
def conv1_call(x_in, w3, wd, *, taps, ds_off, ho, wo, cip):
    """First 3x3 conv (stride folded into `taps`) + optional fused downsample.
    x_in: (N, Hh, Wh, CL) bf16 (pre-padded, parity-folded for stride 2).
    Returns (c1, sum1, ssq1[, d, sumd, ssqd]); c1/d are (N, Ho*Wo, Cop)."""
    n, hh, wh, cl = x_in.shape
    cop = w3.shape[-1]
    m = ho * wo
    img = lambda b: (b, 0, 0)

    in_specs = [
        pl.BlockSpec((None, hh, wh, cl), lambda b: (b, 0, 0, 0)),
        # Full weight, constant index_map -> VMEM-resident, never re-DMAed.
        pl.BlockSpec((3, 3, w3.shape[2], cop), lambda b: (0, 0, 0, 0)),
    ]
    out_shape = [jax.ShapeDtypeStruct((n, m, cop), jnp.bfloat16),
                 jax.ShapeDtypeStruct((n, 1, cop), jnp.float32),
                 jax.ShapeDtypeStruct((n, 1, cop), jnp.float32)]
    out_specs = [pl.BlockSpec((None, m, cop), img),
                 pl.BlockSpec((None, 1, cop), img),
                 pl.BlockSpec((None, 1, cop), img)]
    args = [x_in, w3]

    if wd is None:
        kernel = functools.partial(_conv1_kernel, taps=taps, ho=ho, wo=wo, cip=cip)
    else:
        in_specs.append(pl.BlockSpec((cip, cop), lambda b: (0, 0)))
        args.append(wd)
        out_shape += [jax.ShapeDtypeStruct((n, m, cop), jnp.bfloat16),
                      jax.ShapeDtypeStruct((n, 1, cop), jnp.float32),
                      jax.ShapeDtypeStruct((n, 1, cop), jnp.float32)]
        out_specs += [pl.BlockSpec((None, m, cop), img),
                      pl.BlockSpec((None, 1, cop), img),
                      pl.BlockSpec((None, 1, cop), img)]
        kernel = functools.partial(_conv1_ds_kernel, taps=taps, ds_off=ds_off,
                                   ho=ho, wo=wo, cip=cip)

    return pl.pallas_call(
        kernel,
        out_shape=tuple(out_shape),
        grid=(n,),
        in_specs=in_specs,
        out_specs=tuple(out_specs),
        compiler_params=pltpu.CompilerParams(
            dimension_semantics=("parallel",),
            vmem_limit_bytes=VMEM_LIMIT),
    )(*args)


def conv2_call(c1, w3, scale1, shift1, *, hi, wi, cip):
    """Second 3x3 conv (stride 1) with BN1+ReLU fused into the input path and
    BN2 stats fused into the output.  c1: (N, hi*wi, cip) bf16 raw conv1 out."""
    n, m, _ = c1.shape
    cop = w3.shape[-1]
    img = lambda b: (b, 0, 0)
    return pl.pallas_call(
        functools.partial(_conv2_kernel, hi=hi, wi=wi, cip=cip),
        out_shape=(jax.ShapeDtypeStruct((n, m, cop), jnp.bfloat16),
                   jax.ShapeDtypeStruct((n, 1, cop), jnp.float32),
                   jax.ShapeDtypeStruct((n, 1, cop), jnp.float32)),
        grid=(n,),
        in_specs=[pl.BlockSpec((None, m, cip), img),
                  pl.BlockSpec((3, 3, cip, cop), lambda b: (0, 0, 0, 0)),
                  pl.BlockSpec((1, cip), lambda b: (0, 0)),
                  pl.BlockSpec((1, cip), lambda b: (0, 0))],
        out_specs=(pl.BlockSpec((None, m, cop), img),
                   pl.BlockSpec((None, 1, cop), img),
                   pl.BlockSpec((None, 1, cop), img)),
        scratch_shapes=[pltpu.VMEM((hi + 2, wi + 2, cip), jnp.bfloat16)],
        compiler_params=pltpu.CompilerParams(
            dimension_semantics=("parallel",),
            vmem_limit_bytes=VMEM_LIMIT),
    )(c1, w3, scale1, shift1)


def bn_finalize(c2_2d, scale2, shift2, res2d=None, scale_r=None, shift_r=None,
                out_dtype=jnp.float32):
    """Fused BN2-apply (+ residual-BN-apply + add) + final ReLU, row tiled."""
    m, c = c2_2d.shape
    tm = _tile_rows(m, cap=1024)
    row = pl.BlockSpec((tm, c), lambda i: (i, 0))
    vec = pl.BlockSpec((1, c), lambda i: (0, 0))
    if res2d is None:
        kernel = _bn_relu_kernel
        in_specs = [row, vec, vec]
        args = (c2_2d, scale2, shift2)
    else:
        kernel = _bn_add_relu_kernel
        in_specs = [row, row, vec, vec, vec, vec]
        args = (c2_2d, res2d, scale2, shift2, scale_r, shift_r)
    return pl.pallas_call(
        kernel,
        out_shape=jax.ShapeDtypeStruct((m, c), out_dtype),
        grid=(m // tm,),
        in_specs=in_specs,
        out_specs=row,
        compiler_params=pltpu.CompilerParams(
            dimension_semantics=("parallel",),
            vmem_limit_bytes=VMEM_LIMIT),
    )(*args)


# ---------------------------------------------------------------------------
# Small XLA-side helpers (tiny, run once per block)
# ---------------------------------------------------------------------------
def _bn_affine(sum_nb, ssq_nb, gamma_row, beta_row, count):
    """(1,C) scale/shift from per-batch fused (sum, sumsq) stats; train-mode BN."""
    s = jnp.sum(sum_nb, axis=0)               # (1, C)
    ss = jnp.sum(ssq_nb, axis=0)               # (1, C)
    mean = s / count
    var = jnp.maximum(ss / count - mean * mean, 0.0)
    scale = gamma_row * jax.lax.rsqrt(var + BN_EPS)
    shift = beta_row - mean * scale
    return scale, shift


def _pack_w3x3(w_oihw, cip, cop):
    co, ci = w_oihw.shape[0], w_oihw.shape[1]
    w = jnp.transpose(w_oihw, (2, 3, 1, 0))                 # (kh, kw, ci, co)
    w = jnp.pad(w, ((0, 0), (0, 0), (0, cip - ci), (0, cop - co)))
    return w.astype(jnp.bfloat16)


def _pack_w1x1(w_oihw, cip, cop):
    co, ci = w_oihw.shape[0], w_oihw.shape[1]
    w = jnp.transpose(w_oihw[:, :, 0, 0], (1, 0))           # (ci, co)
    w = jnp.pad(w, ((0, cip - ci), (0, cop - co)))
    return w.astype(jnp.bfloat16)


def _pack_bn(gamma, beta, cop):
    c = gamma.shape[0]
    g = jnp.pad(gamma, (0, cop - c)).reshape(1, cop).astype(jnp.float32)
    b = jnp.pad(beta, (0, cop - c)).reshape(1, cop).astype(jnp.float32)
    return g, b


# ---------------------------------------------------------------------------
# DRN BasicBlock forward
# ---------------------------------------------------------------------------
def basic_block_forward(x_nchw, params, *, stride=1, residual=True):
    n, ci, h, w = x_nchw.shape
    planes = params["w1"].shape[0]
    cip = _round_up(ci, LANE)
    cop = _round_up(planes, LANE)
    has_ds = "wd" in params

    # Boundary layout change only (done once per block): NCHW -> NHWC, channel
    # pad to the lane width, bf16, spatial zero-pad (+ parity fold for stride 2).
    x_nhwc = jnp.transpose(x_nchw, (0, 2, 3, 1))
    x_c = jnp.pad(x_nhwc, ((0, 0), (0, 0), (0, 0), (0, cip - ci))).astype(jnp.bfloat16)
    xp = jnp.pad(x_c, ((0, 0), (1, 1), (1, 1), (0, 0)))      # (N, H+2, W+2, Cip)

    ho = (h + 2 - 3) // stride + 1
    wo = (w + 2 - 3) // stride + 1
    m1 = ho * wo

    if stride == 1:
        x_in = xp
        taps = tuple((kh, kw, 0) for kh in range(3) for kw in range(3))
        ds_off = (1, 1, 0)                                   # unpadded interior
    elif stride == 2:
        if (h + 2) % 2 or (w + 2) % 2:
            raise NotImplementedError("stride-2 conv needs even padded H/W")
        hh, wh = (h + 2) // 2, (w + 2) // 2
        # Fold H/W parity into lanes: xf[n,i,j,(ph*2+pw)*Cip:+Cip] = xp[n,2i+ph,2j+pw,:]
        x_in = (xp.reshape(n, hh, 2, wh, 2, cip)
                  .transpose(0, 1, 3, 2, 4, 5)
                  .reshape(n, hh, wh, 4 * cip))
        taps = tuple((kh // 2, kw // 2, (2 * (kh % 2) + (kw % 2)) * cip)
                     for kh in range(3) for kw in range(3))
        ds_off = (0, 0, 3 * cip)                             # x[::2, ::2]
    else:
        raise NotImplementedError("only stride 1 and 2 are supported")

    w1 = _pack_w3x3(params["w1"], cip, cop)
    w2 = _pack_w3x3(params["w2"], cop, cop)
    g1, b1 = _pack_bn(params["bn1_gamma"], params["bn1_beta"], cop)
    g2, b2 = _pack_bn(params["bn2_gamma"], params["bn2_beta"], cop)

    # conv1 (+ fused downsample conv) with fused BN stats
    if residual and has_ds:
        wd = _pack_w1x1(params["wd"], cip, cop)
        gd, bd = _pack_bn(params["bnd_gamma"], params["bnd_beta"], cop)
        c1, s1, ss1, d, sd_, ssd = conv1_call(
            x_in, w1, wd, taps=taps, ds_off=ds_off, ho=ho, wo=wo, cip=cip)
    else:
        c1, s1, ss1 = conv1_call(
            x_in, w1, None, taps=taps, ds_off=ds_off, ho=ho, wo=wo, cip=cip)

    count = float(n * m1)                 # train-mode (biased) statistics
    scale1, shift1 = _bn_affine(s1, ss1, g1, b1, count)

    # conv2 with BN1-apply + ReLU fused into its input path, BN2 stats fused
    c2, s2, ss2 = conv2_call(c1, w2, scale1, shift1, hi=ho, wi=wo, cip=cop)
    scale2, shift2 = _bn_affine(s2, ss2, g2, b2, count)

    c2_2d = c2.reshape(n * m1, cop)
    if residual:
        if has_ds:
            scaled, shiftd = _bn_affine(sd_, ssd, gd, bd, count)
            res2d = d.reshape(n * m1, cop)
        else:
            assert stride == 1 and cip == cop, "identity shortcut needs matching shapes"
            res2d = x_c.reshape(n * h * w, cip)
            scaled = jnp.ones((1, cop), jnp.float32)
            shiftd = jnp.zeros((1, cop), jnp.float32)
        out2d = bn_finalize(c2_2d, scale2, shift2, res2d, scaled, shiftd,
                            out_dtype=jnp.float32)
    else:
        out2d = bn_finalize(c2_2d, scale2, shift2, out_dtype=jnp.float32)

    out = out2d.reshape(n, ho, wo, cop)[:, :, :, :planes]
    return jnp.transpose(out, (0, 3, 1, 2))


# ---------------------------------------------------------------------------
# Pure-JAX f32 reference (mirrors the PyTorch BasicBlock forward, train-mode BN)
# ---------------------------------------------------------------------------
def reference_block(x, p, *, stride=1, residual=True):
    def conv(x, w, s, pad):
        return jax.lax.conv_general_dilated(
            x, w, window_strides=(s, s), padding=[(pad, pad), (pad, pad)],
            dimension_numbers=("NCHW", "OIHW", "NCHW"))

    def bn(x, g, b):
        mean = jnp.mean(x, axis=(0, 2, 3), keepdims=True)
        var = jnp.var(x, axis=(0, 2, 3), keepdims=True)
        return ((x - mean) * jax.lax.rsqrt(var + BN_EPS) * g.reshape(1, -1, 1, 1)
                + b.reshape(1, -1, 1, 1))

    out = jax.nn.relu(bn(conv(x, p["w1"], stride, 1), p["bn1_gamma"], p["bn1_beta"]))
    out = bn(conv(out, p["w2"], 1, 1), p["bn2_gamma"], p["bn2_beta"])
    if residual:
        if "wd" in p:
            res = bn(conv(x, p["wd"], stride, 0), p["bnd_gamma"], p["bnd_beta"])
        else:
            res = x
        out = out + res
    return jax.nn.relu(out)


# ---------------------------------------------------------------------------
# Main
# ---------------------------------------------------------------------------
if __name__ == "__main__":
    N, C_IN, H, W = 2, 4, 16, 16
    PLANES, STRIDE = 8, 2

    key = jax.random.PRNGKey(0)
    kx, k1, k2, kd = jax.random.split(key, 4)
    x = jax.random.normal(kx, (N, C_IN, H, W), dtype=jnp.float32)

    def kaiming(k, co, ci, ksz):        # DRN init: N(0, sqrt(2 / (k*k*out)))
        return math.sqrt(2.0 / (ksz * ksz * co)) * jax.random.normal(
            k, (co, ci, ksz, ksz), dtype=jnp.float32)

    params = {
        "w1": kaiming(k1, PLANES, C_IN, 3),
        "bn1_gamma": jnp.ones((PLANES,), jnp.float32),
        "bn1_beta": jnp.zeros((PLANES,), jnp.float32),
        "w2": kaiming(k2, PLANES, PLANES, 3),
        "bn2_gamma": jnp.ones((PLANES,), jnp.float32),
        "bn2_beta": jnp.zeros((PLANES,), jnp.float32),
        # downsample path (stride != 1 or channel change in DRN._make_layer)
        "wd": kaiming(kd, PLANES, C_IN, 1),
        "bnd_gamma": jnp.ones((PLANES,), jnp.float32),
        "bnd_beta": jnp.zeros((PLANES,), jnp.float32),
    }

    fwd = jax.jit(functools.partial(basic_block_forward, stride=STRIDE))
    out = fwd(x, params)
    jax.block_until_ready(out)

    HO = (H + 2 - 3) // STRIDE + 1
    assert out.shape == (N, PLANES, HO, HO), out.shape

    # bf16 MXU inputs / bf16 intermediate activations vs a pure-f32 XLA
    # reference: observed deviations are O(1e-2); 1e-1 is the acceptance
    # tolerance for this block.
    ref = reference_block(x, params, stride=STRIDE)
    err = float(jnp.max(jnp.abs(out - ref)))
    assert err < 1e-1, f"max abs error vs f32 reference: {err}"

    print("KERNEL_OK")
</pallas_src>

<mosaic_0001>
module attributes {stable_mosaic.version = 11 : i64} {
  func.func @_conv1_ds_kernel(%arg0: i32, %arg1: memref<1x9x9x512xbf16, #tpu.memory_space<vmem>>, %arg2: memref<3x3x128x128xbf16, #tpu.memory_space<vmem>>, %arg3: memref<128x128xbf16, #tpu.memory_space<vmem>>, %arg4: memref<1x64x128xbf16, #tpu.memory_space<vmem>>, %arg5: memref<1x1x128xf32, #tpu.memory_space<vmem>>, %arg6: memref<1x1x128xf32, #tpu.memory_space<vmem>>, %arg7: memref<1x64x128xbf16, #tpu.memory_space<vmem>>, %arg8: memref<1x1x128xf32, #tpu.memory_space<vmem>>, %arg9: memref<1x1x128xf32, #tpu.memory_space<vmem>>) attributes {dimension_semantics = [#tpu.dimension_semantics<parallel>], iteration_bounds = array<i64: 2>, scalar_prefetch = 0 : i64, scratch_operands = 0 : i64, tpu.core_type = #tpu.core_type<tc>, window_params = [{transform_indices = @transform_0, window_bounds = array<i64: 1, 9, 9, 512>}, {pipeline_mode = #tpu.pipeline_mode<synchronous>, transform_indices = @transform_1, window_bounds = array<i64: 3, 3, 128, 128>}, {pipeline_mode = #tpu.pipeline_mode<synchronous>, transform_indices = @transform_2, window_bounds = array<i64: 128, 128>}, {transform_indices = @transform_3, window_bounds = array<i64: 1, 64, 128>}, {transform_indices = @transform_4, window_bounds = array<i64: 1, 1, 128>}, {transform_indices = @transform_5, window_bounds = array<i64: 1, 1, 128>}, {transform_indices = @transform_6, window_bounds = array<i64: 1, 64, 128>}, {transform_indices = @transform_7, window_bounds = array<i64: 1, 1, 128>}, {transform_indices = @transform_8, window_bounds = array<i64: 1, 1, 128>}]} {
    %c0 = arith.constant 0 : index
    %c0_0 = arith.constant 0 : index
    %c0_1 = arith.constant 0 : index
    %c0_2 = arith.constant 0 : index
    %0 = vector.load %arg1[%c0, %c0_0, %c0_1, %c0_2] : memref<1x9x9x512xbf16, #tpu.memory_space<vmem>>, vector<1x8x8x128xbf16>
    %1 = vector.shape_cast %0 : vector<1x8x8x128xbf16> to vector<8x8x128xbf16>
    %2 = vector.shape_cast %1 : vector<8x8x128xbf16> to vector<64x128xbf16>
    %c0_3 = arith.constant 0 : index
    %c0_4 = arith.constant 0 : index
    %c0_5 = arith.constant 0 : index
    %c0_6 = arith.constant 0 : index
    %3 = vector.load %arg2[%c0_3, %c0_4, %c0_5, %c0_6] : memref<3x3x128x128xbf16, #tpu.memory_space<vmem>>, vector<1x1x128x128xbf16>
    %4 = vector.shape_cast %3 : vector<1x1x128x128xbf16> to vector<128x128xbf16>
    %cst = arith.constant dense<0.000000e+00> : vector<64x128xf32>
    %5 = tpu.matmul %2, %4, %cst {dimension_numbers = #tpu.dot_dimension_numbers<[1], [0], [0], [1], [0, 0, 1, 1], [], []>} : vector<64x128xbf16>, vector<128x128xbf16>, vector<64x128xf32> -> vector<64x128xf32>
    %c0_7 = arith.constant 0 : index
    %c0_8 = arith.constant 0 : index
    %c0_9 = arith.constant 0 : index
    %c128 = arith.constant 128 : index
    %6 = vector.load %arg1[%c0_7, %c0_8, %c0_9, %c128] : memref<1x9x9x512xbf16, #tpu.memory_space<vmem>>, vector<1x8x8x128xbf16>
    %7 = vector.shape_cast %6 : vector<1x8x8x128xbf16> to vector<8x8x128xbf16>
    %8 = vector.shape_cast %7 : vector<8x8x128xbf16> to vector<64x128xbf16>
    %c0_10 = arith.constant 0 : index
    %c1 = arith.constant 1 : index
    %c0_11 = arith.constant 0 : index
    %c0_12 = arith.constant 0 : index
    %9 = vector.load %arg2[%c0_10, %c1, %c0_11, %c0_12] : memref<3x3x128x128xbf16, #tpu.memory_space<vmem>>, vector<1x1x128x128xbf16>
    %10 = vector.shape_cast %9 : vector<1x1x128x128xbf16> to vector<128x128xbf16>
    %cst_13 = arith.constant dense<0.000000e+00> : vector<64x128xf32>
    %11 = tpu.matmul %8, %10, %cst_13 {dimension_numbers = #tpu.dot_dimension_numbers<[1], [0], [0], [1], [0, 0, 1, 1], [], []>} : vector<64x128xbf16>, vector<128x128xbf16>, vector<64x128xf32> -> vector<64x128xf32>
    %12 = arith.addf %5, %11 : vector<64x128xf32>
    %c0_14 = arith.constant 0 : index
    %c0_15 = arith.constant 0 : index
    %c1_16 = arith.constant 1 : index
    %c0_17 = arith.constant 0 : index
    %13 = vector.load %arg1[%c0_14, %c0_15, %c1_16, %c0_17] : memref<1x9x9x512xbf16, #tpu.memory_space<vmem>>, vector<1x8x8x128xbf16>
    %14 = vector.shape_cast %13 : vector<1x8x8x128xbf16> to vector<8x8x128xbf16>
    %15 = vector.shape_cast %14 : vector<8x8x128xbf16> to vector<64x128xbf16>
    %c0_18 = arith.constant 0 : index
    %c2 = arith.constant 2 : index
    %c0_19 = arith.constant 0 : index
    %c0_20 = arith.constant 0 : index
    %16 = vector.load %arg2[%c0_18, %c2, %c0_19, %c0_20] : memref<3x3x128x128xbf16, #tpu.memory_space<vmem>>, vector<1x1x128x128xbf16>
    %17 = vector.shape_cast %16 : vector<1x1x128x128xbf16> to vector<128x128xbf16>
    %cst_21 = arith.constant dense<0.000000e+00> : vector<64x128xf32>
    %18 = tpu.matmul %15, %17, %cst_21 {dimension_numbers = #tpu.dot_dimension_numbers<[1], [0], [0], [1], [0, 0, 1, 1], [], []>} : vector<64x128xbf16>, vector<128x128xbf16>, vector<64x128xf32> -> vector<64x128xf32>
    %19 = arith.addf %12, %18 : vector<64x128xf32>
    %c0_22 = arith.constant 0 : index
    %c0_23 = arith.constant 0 : index
    %c0_24 = arith.constant 0 : index
    %c256 = arith.constant 256 : index
    %20 = vector.load %arg1[%c0_22, %c0_23, %c0_24, %c256] : memref<1x9x9x512xbf16, #tpu.memory_space<vmem>>, vector<1x8x8x128xbf16>
    %21 = vector.shape_cast %20 : vector<1x8x8x128xbf16> to vector<8x8x128xbf16>
    %22 = vector.shape_cast %21 : vector<8x8x128xbf16> to vector<64x128xbf16>
    %c1_25 = arith.constant 1 : index
    %c0_26 = arith.constant 0 : index
    %c0_27 = arith.constant 0 : index
    %c0_28 = arith.constant 0 : index
    %23 = vector.load %arg2[%c1_25, %c0_26, %c0_27, %c0_28] : memref<3x3x128x128xbf16, #tpu.memory_space<vmem>>, vector<1x1x128x128xbf16>
    %24 = vector.shape_cast %23 : vector<1x1x128x128xbf16> to vector<128x128xbf16>
    %cst_29 = arith.constant dense<0.000000e+00> : vector<64x128xf32>
    %25 = tpu.matmul %22, %24, %cst_29 {dimension_numbers = #tpu.dot_dimension_numbers<[1], [0], [0], [1], [0, 0, 1, 1], [], []>} : vector<64x128xbf16>, vector<128x128xbf16>, vector<64x128xf32> -> vector<64x128xf32>
    %26 = arith.addf %19, %25 : vector<64x128xf32>
    %c0_30 = arith.constant 0 : index
    %c0_31 = arith.constant 0 : index
    %c0_32 = arith.constant 0 : index
    %c384 = arith.constant 384 : index
    %27 = vector.load %arg1[%c0_30, %c0_31, %c0_32, %c384] : memref<1x9x9x512xbf16, #tpu.memory_space<vmem>>, vector<1x8x8x128xbf16>
    %28 = vector.shape_cast %27 : vector<1x8x8x128xbf16> to vector<8x8x128xbf16>
    %29 = vector.shape_cast %28 : vector<8x8x128xbf16> to vector<64x128xbf16>
    %c1_33 = arith.constant 1 : index
    %c1_34 = arith.constant 1 : index
    %c0_35 = arith.constant 0 : index
    %c0_36 = arith.constant 0 : index
    %30 = vector.load %arg2[%c1_33, %c1_34, %c0_35, %c0_36] : memref<3x3x128x128xbf16, #tpu.memory_space<vmem>>, vector<1x1x128x128xbf16>
    %31 = vector.shape_cast %30 : vector<1x1x128x128xbf16> to vector<128x128xbf16>
    %cst_37 = arith.constant dense<0.000000e+00> : vector<64x128xf32>
    %32 = tpu.matmul %29, %31, %cst_37 {dimension_numbers = #tpu.dot_dimension_numbers<[1], [0], [0], [1], [0, 0, 1, 1], [], []>} : vector<64x128xbf16>, vector<128x128xbf16>, vector<64x128xf32> -> vector<64x128xf32>
    %33 = arith.addf %26, %32 : vector<64x128xf32>
    %c0_38 = arith.constant 0 : index
    %c0_39 = arith.constant 0 : index
    %c1_40 = arith.constant 1 : index
    %c256_41 = arith.constant 256 : index
    %34 = vector.load %arg1[%c0_38, %c0_39, %c1_40, %c256_41] : memref<1x9x9x512xbf16, #tpu.memory_space<vmem>>, vector<1x8x8x128xbf16>
    %35 = vector.shape_cast %34 : vector<1x8x8x128xbf16> to vector<8x8x128xbf16>
    %36 = vector.shape_cast %35 : vector<8x8x128xbf16> to vector<64x128xbf16>
    %c1_42 = arith.constant 1 : index
    %c2_43 = arith.constant 2 : index
    %c0_44 = arith.constant 0 : index
    %c0_45 = arith.constant 0 : index
    %37 = vector.load %arg2[%c1_42, %c2_43, %c0_44, %c0_45] : memref<3x3x128x128xbf16, #tpu.memory_space<vmem>>, vector<1x1x128x128xbf16>
    %38 = vector.shape_cast %37 : vector<1x1x128x128xbf16> to vector<128x128xbf16>
    %cst_46 = arith.constant dense<0.000000e+00> : vector<64x128xf32>
    %39 = tpu.matmul %36, %38, %cst_46 {dimension_numbers = #tpu.dot_dimension_numbers<[1], [0], [0], [1], [0, 0, 1, 1], [], []>} : vector<64x128xbf16>, vector<128x128xbf16>, vector<64x128xf32> -> vector<64x128xf32>
    %40 = arith.addf %33, %39 : vector<64x128xf32>
    %c0_47 = arith.constant 0 : index
    %c1_48 = arith.constant 1 : index
    %c0_49 = arith.constant 0 : index
    %c0_50 = arith.constant 0 : index
    %41 = vector.load %arg1[%c0_47, %c1_48, %c0_49, %c0_50] : memref<1x9x9x512xbf16, #tpu.memory_space<vmem>>, vector<1x8x8x128xbf16>
    %42 = vector.shape_cast %41 : vector<1x8x8x128xbf16> to vector<8x8x128xbf16>
    %43 = vector.shape_cast %42 : vector<8x8x128xbf16> to vector<64x128xbf16>
    %c2_51 = arith.constant 2 : index
    %c0_52 = arith.constant 0 : index
    %c0_53 = arith.constant 0 : index
    %c0_54 = arith.constant 0 : index
    %44 = vector.load %arg2[%c2_51, %c0_52, %c0_53, %c0_54] : memref<3x3x128x128xbf16, #tpu.memory_space<vmem>>, vector<1x1x128x128xbf16>
    %45 = vector.shape_cast %44 : vector<1x1x128x128xbf16> to vector<128x128xbf16>
    %cst_55 = arith.constant dense<0.000000e+00> : vector<64x128xf32>
    %46 = tpu.matmul %43, %45, %cst_55 {dimension_numbers = #tpu.dot_dimension_numbers<[1], [0], [0], [1], [0, 0, 1, 1], [], []>} : vector<64x128xbf16>, vector<128x128xbf16>, vector<64x128xf32> -> vector<64x128xf32>
    %47 = arith.addf %40, %46 : vector<64x128xf32>
    %c0_56 = arith.constant 0 : index
    %c1_57 = arith.constant 1 : index
    %c0_58 = arith.constant 0 : index
    %c128_59 = arith.constant 128 : index
    %48 = vector.load %arg1[%c0_56, %c1_57, %c0_58, %c128_59] : memref<1x9x9x512xbf16, #tpu.memory_space<vmem>>, vector<1x8x8x128xbf16>
    %49 = vector.shape_cast %48 : vector<1x8x8x128xbf16> to vector<8x8x128xbf16>
    %50 = vector.shape_cast %49 : vector<8x8x128xbf16> to vector<64x128xbf16>
    %c2_60 = arith.constant 2 : index
    %c1_61 = arith.constant 1 : index
    %c0_62 = arith.constant 0 : index
    %c0_63 = arith.constant 0 : index
    %51 = vector.load %arg2[%c2_60, %c1_61, %c0_62, %c0_63] : memref<3x3x128x128xbf16, #tpu.memory_space<vmem>>, vector<1x1x128x128xbf16>
    %52 = vector.shape_cast %51 : vector<1x1x128x128xbf16> to vector<128x128xbf16>
    %cst_64 = arith.constant dense<0.000000e+00> : vector<64x128xf32>
    %53 = tpu.matmul %50, %52, %cst_64 {dimension_numbers = #tpu.dot_dimension_numbers<[1], [0], [0], [1], [0, 0, 1, 1], [], []>} : vector<64x128xbf16>, vector<128x128xbf16>, vector<64x128xf32> -> vector<64x128xf32>
    %54 = arith.addf %47, %53 : vector<64x128xf32>
    %c0_65 = arith.constant 0 : index
    %c1_66 = arith.constant 1 : index
    %c1_67 = arith.constant 1 : index
    %c0_68 = arith.constant 0 : index
    %55 = vector.load %arg1[%c0_65, %c1_66, %c1_67, %c0_68] : memref<1x9x9x512xbf16, #tpu.memory_space<vmem>>, vector<1x8x8x128xbf16>
    %56 = vector.shape_cast %55 : vector<1x8x8x128xbf16> to vector<8x8x128xbf16>
    %57 = vector.shape_cast %56 : vector<8x8x128xbf16> to vector<64x128xbf16>
    %c2_69 = arith.constant 2 : index
    %c2_70 = arith.constant 2 : index
    %c0_71 = arith.constant 0 : index
    %c0_72 = arith.constant 0 : index
    %58 = vector.load %arg2[%c2_69, %c2_70, %c0_71, %c0_72] : memref<3x3x128x128xbf16, #tpu.memory_space<vmem>>, vector<1x1x128x128xbf16>
    %59 = vector.shape_cast %58 : vector<1x1x128x128xbf16> to vector<128x128xbf16>
    %cst_73 = arith.constant dense<0.000000e+00> : vector<64x128xf32>
    %60 = tpu.matmul %57, %59, %cst_73 {dimension_numbers = #tpu.dot_dimension_numbers<[1], [0], [0], [1], [0, 0, 1, 1], [], []>} : vector<64x128xbf16>, vector<128x128xbf16>, vector<64x128xf32> -> vector<64x128xf32>
    %61 = arith.addf %54, %60 : vector<64x128xf32>
    %cst_74 = arith.constant dense<0.000000e+00> : vector<128xf32>
    %62 = vector.multi_reduction <add>, %61, %cst_74 [0] : vector<64x128xf32> to vector<128xf32>
    %63 = vector.shape_cast %62 : vector<128xf32> to vector<1x128xf32>
    %c0_75 = arith.constant 0 : index
    %c0_76 = arith.constant 0 : index
    %c0_77 = arith.constant 0 : index
    %64 = vector.load %arg5[%c0_75, %c0_76, %c0_77] : memref<1x1x128xf32, #tpu.memory_space<vmem>>, vector<1x1x128xf32>
    %65 = vector.shape_cast %64 : vector<1x1x128xf32> to vector<1x128xf32>
    %66 = vector.shape_cast %63 : vector<1x128xf32> to vector<1x1x128xf32>
    tpu.vector_store %arg5[%c0_75, %c0_76, %c0_77], %66 {strides = array<i32>} : memref<1x1x128xf32, #tpu.memory_space<vmem>>, vector<1x1x128xf32>,
    %67 = arith.mulf %61, %61 : vector<64x128xf32>
    %cst_78 = arith.constant dense<0.000000e+00> : vector<128xf32>
    %68 = vector.multi_reduction <add>, %67, %cst_78 [0] : vector<64x128xf32> to vector<128xf32>
    %69 = vector.shape_cast %68 : vector<128xf32> to vector<1x128xf32>
    %c0_79 = arith.constant 0 : index
    %c0_80 = arith.constant 0 : index
    %c0_81 = arith.constant 0 : index
    %70 = vector.load %arg6[%c0_79, %c0_80, %c0_81] : memref<1x1x128xf32, #tpu.memory_space<vmem>>, vector<1x1x128xf32>
    %71 = vector.shape_cast %70 : vector<1x1x128xf32> to vector<1x128xf32>
    %72 = vector.shape_cast %69 : vector<1x128xf32> to vector<1x1x128xf32>
    tpu.vector_store %arg6[%c0_79, %c0_80, %c0_81], %72 {strides = array<i32>} : memref<1x1x128xf32, #tpu.memory_space<vmem>>, vector<1x1x128xf32>,
    %73 = arith.truncf %61 : vector<64x128xf32> to vector<64x128xbf16>
    %c0_82 = arith.constant 0 : index
    %c0_83 = arith.constant 0 : index
    %c0_84 = arith.constant 0 : index
    %74 = vector.load %arg4[%c0_82, %c0_83, %c0_84] : memref<1x64x128xbf16, #tpu.memory_space<vmem>>, vector<1x64x128xbf16>
    %75 = vector.shape_cast %74 : vector<1x64x128xbf16> to vector<64x128xbf16>
    %76 = vector.shape_cast %73 : vector<64x128xbf16> to vector<1x64x128xbf16>
    tpu.vector_store %arg4[%c0_82, %c0_83, %c0_84], %76 {strides = array<i32>} : memref<1x64x128xbf16, #tpu.memory_space<vmem>>, vector<1x64x128xbf16>,
    %c0_85 = arith.constant 0 : index
    %c0_86 = arith.constant 0 : index
    %c0_87 = arith.constant 0 : index
    %c384_88 = arith.constant 384 : index
    %77 = vector.load %arg1[%c0_85, %c0_86, %c0_87, %c384_88] : memref<1x9x9x512xbf16, #tpu.memory_space<vmem>>, vector<1x8x8x128xbf16>
    %78 = vector.shape_cast %77 : vector<1x8x8x128xbf16> to vector<8x8x128xbf16>
    %79 = vector.shape_cast %78 : vector<8x8x128xbf16> to vector<64x128xbf16>
    %c0_89 = arith.constant 0 : index
    %c0_90 = arith.constant 0 : index
    %80 = vector.load %arg3[%c0_89, %c0_90] : memref<128x128xbf16, #tpu.memory_space<vmem>>, vector<128x128xbf16>
    %cst_91 = arith.constant dense<0.000000e+00> : vector<64x128xf32>
    %81 = tpu.matmul %79, %80, %cst_91 {dimension_numbers = #tpu.dot_dimension_numbers<[1], [0], [0], [1], [0, 0, 1, 1], [], []>} : vector<64x128xbf16>, vector<128x128xbf16>, vector<64x128xf32> -> vector<64x128xf32>
    %cst_92 = arith.constant dense<0.000000e+00> : vector<128xf32>
    %82 = vector.multi_reduction <add>, %81, %cst_92 [0] : vector<64x128xf32> to vector<128xf32>
    %83 = vector.shape_cast %82 : vector<128xf32> to vector<1x128xf32>
    %c0_93 = arith.constant 0 : index
    %c0_94 = arith.constant 0 : index
    %c0_95 = arith.constant 0 : index
    %84 = vector.load %arg8[%c0_93, %c0_94, %c0_95] : memref<1x1x128xf32, #tpu.memory_space<vmem>>, vector<1x1x128xf32>
    %85 = vector.shape_cast %84 : vector<1x1x128xf32> to vector<1x128xf32>
    %86 = vector.shape_cast %83 : vector<1x128xf32> to vector<1x1x128xf32>
    tpu.vector_store %arg8[%c0_93, %c0_94, %c0_95], %86 {strides = array<i32>} : memref<1x1x128xf32, #tpu.memory_space<vmem>>, vector<1x1x128xf32>,
    %87 = arith.mulf %81, %81 : vector<64x128xf32>
    %cst_96 = arith.constant dense<0.000000e+00> : vector<128xf32>
    %88 = vector.multi_reduction <add>, %87, %cst_96 [0] : vector<64x128xf32> to vector<128xf32>
    %89 = vector.shape_cast %88 : vector<128xf32> to vector<1x128xf32>
    %c0_97 = arith.constant 0 : index
    %c0_98 = arith.constant 0 : index
    %c0_99 = arith.constant 0 : index
    %90 = vector.load %arg9[%c0_97, %c0_98, %c0_99] : memref<1x1x128xf32, #tpu.memory_space<vmem>>, vector<1x1x128xf32>
    %91 = vector.shape_cast %90 : vector<1x1x128xf32> to vector<1x128xf32>
    %92 = vector.shape_cast %89 : vector<1x128xf32> to vector<1x1x128xf32>
    tpu.vector_store %arg9[%c0_97, %c0_98, %c0_99], %92 {strides = array<i32>} : memref<1x1x128xf32, #tpu.memory_space<vmem>>, vector<1x1x128xf32>,
    %93 = arith.truncf %81 : vector<64x128xf32> to vector<64x128xbf16>
    %c0_100 = arith.constant 0 : index
    %c0_101 = arith.constant 0 : index
    %c0_102 = arith.constant 0 : index
    %94 = vector.load %arg7[%c0_100, %c0_101, %c0_102] : memref<1x64x128xbf16, #tpu.memory_space<vmem>>, vector<1x64x128xbf16>
    %95 = vector.shape_cast %94 : vector<1x64x128xbf16> to vector<64x128xbf16>
    %96 = vector.shape_cast %93 : vector<64x128xbf16> to vector<1x64x128xbf16>
    tpu.vector_store %arg7[%c0_100, %c0_101, %c0_102], %96 {strides = array<i32>} : memref<1x64x128xbf16, #tpu.memory_space<vmem>>, vector<1x64x128xbf16>,
    return
  }
  func.func @transform_0(%arg0: i32) -> (i32, i32, i32, i32) {
    %c0_i32 = arith.constant 0 : i32
    %c0_i32_0 = arith.constant 0 : i32
    %c0_i32_1 = arith.constant 0 : i32
    %c0_i32_2 = arith.constant 0 : i32
    return %arg0, %c0_i32, %c0_i32_0, %c0_i32_1 : i32, i32, i32, i32
  }
  func.func @transform_1(%arg0: i32) -> (i32, i32, i32, i32) {
    %c0_i32 = arith.constant 0 : i32
    %c0_i32_0 = arith.constant 0 : i32
    %c0_i32_1 = arith.constant 0 : i32
    %c0_i32_2 = arith.constant 0 : i32
    %c0_i32_3 = arith.constant 0 : i32
    return %c0_i32, %c0_i32_0, %c0_i32_1, %c0_i32_2 : i32, i32, i32, i32
  }
  func.func @transform_2(%arg0: i32) -> (i32, i32) {
    %c0_i32 = arith.constant 0 : i32
    %c0_i32_0 = arith.constant 0 : i32
    %c0_i32_1 = arith.constant 0 : i32
    return %c0_i32, %c0_i32_0 : i32, i32
  }
  func.func @transform_3(%arg0: i32) -> (i32, i32, i32) {
    %c0_i32 = arith.constant 0 : i32
    %c0_i32_0 = arith.constant 0 : i32
    %c0_i32_1 = arith.constant 0 : i32
    return %arg0, %c0_i32, %c0_i32_0 : i32, i32, i32
  }
  func.func @transform_4(%arg0: i32) -> (i32, i32, i32) {
    %c0_i32 = arith.constant 0 : i32
    %c0_i32_0 = arith.constant 0 : i32
    %c0_i32_1 = arith.constant 0 : i32
    return %arg0, %c0_i32, %c0_i32_0 : i32, i32, i32
  }
  func.func @transform_5(%arg0: i32) -> (i32, i32, i32) {
    %c0_i32 = arith.constant 0 : i32
    %c0_i32_0 = arith.constant 0 : i32
    %c0_i32_1 = arith.constant 0 : i32
    return %arg0, %c0_i32, %c0_i32_0 : i32, i32, i32
  }
  func.func @transform_6(%arg0: i32) -> (i32, i32, i32) {
    %c0_i32 = arith.constant 0 : i32
    %c0_i32_0 = arith.constant 0 : i32
    %c0_i32_1 = arith.constant 0 : i32
    return %arg0, %c0_i32, %c0_i32_0 : i32, i32, i32
  }
  func.func @transform_7(%arg0: i32) -> (i32, i32, i32) {
    %c0_i32 = arith.constant 0 : i32
    %c0_i32_0 = arith.constant 0 : i32
    %c0_i32_1 = arith.constant 0 : i32
    return %arg0, %c0_i32, %c0_i32_0 : i32, i32, i32
  }
  func.func @transform_8(%arg0: i32) -> (i32, i32, i32) {
    %c0_i32 = arith.constant 0 : i32
    %c0_i32_0 = arith.constant 0 : i32
    %c0_i32_1 = arith.constant 0 : i32
    return %arg0, %c0_i32, %c0_i32_0 : i32, i32, i32
  }
}

module attributes {stable_mosaic.version = 11 : i64} {
  func.func @_bn_add_relu_kernel(%arg0: i32, %arg1: memref<128x128xbf16, #tpu.memory_space<vmem>>, %arg2: memref<128x128xbf16, #tpu.memory_space<vmem>>, %arg3: memref<1x128xf32, #tpu.memory_space<vmem>>, %arg4: memref<1x128xf32, #tpu.memory_space<vmem>>, %arg5: memref<1x128xf32, #tpu.memory_space<vmem>>, %arg6: memref<1x128xf32, #tpu.memory_space<vmem>>, %arg7: memref<128x128xf32, #tpu.memory_space<vmem>>) attributes {dimension_semantics = [#tpu.dimension_semantics<parallel>], iteration_bounds = array<i64: 1>, scalar_prefetch = 0 : i64, scratch_operands = 0 : i64, tpu.core_type = #tpu.core_type<tc>, window_params = [{transform_indices = @transform_0, window_bounds = array<i64: 128, 128>}, {transform_indices = @transform_1, window_bounds = array<i64: 128, 128>}, {pipeline_mode = #tpu.pipeline_mode<synchronous>, transform_indices = @transform_2, window_bounds = array<i64: 1, 128>}, {pipeline_mode = #tpu.pipeline_mode<synchronous>, transform_indices = @transform_3, window_bounds = array<i64: 1, 128>}, {pipeline_mode = #tpu.pipeline_mode<synchronous>, transform_indices = @transform_4, window_bounds = array<i64: 1, 128>}, {pipeline_mode = #tpu.pipeline_mode<synchronous>, transform_indices = @transform_5, window_bounds = array<i64: 1, 128>}, {transform_indices = @transform_6, window_bounds = array<i64: 128, 128>}]} {
    %c0 = arith.constant 0 : index
    %c0_0 = arith.constant 0 : index
    %0 = vector.load %arg1[%c0, %c0_0] : memref<128x128xbf16, #tpu.memory_space<vmem>>, vector<128x128xbf16>
    %1 = arith.extf %0 : vector<128x128xbf16> to vector<128x128xf32>
    %c0_1 = arith.constant 0 : index
    %c0_2 = arith.constant 0 : index
    %2 = vector.load %arg3[%c0_1, %c0_2] : memref<1x128xf32, #tpu.memory_space<vmem>>, vector<1x128xf32>
    %3 = vector.broadcast %2 : vector<1x128xf32> to vector<128x128xf32>
    %4 = arith.mulf %1, %3 : vector<128x128xf32>
    %c0_3 = arith.constant 0 : index
    %c0_4 = arith.constant 0 : index
    %5 = vector.load %arg4[%c0_3, %c0_4] : memref<1x128xf32, #tpu.memory_space<vmem>>, vector<1x128xf32>
    %6 = vector.broadcast %5 : vector<1x128xf32> to vector<128x128xf32>
    %7 = arith.addf %4, %6 : vector<128x128xf32>
    %c0_5 = arith.constant 0 : index
    %c0_6 = arith.constant 0 : index
    %8 = vector.load %arg2[%c0_5, %c0_6] : memref<128x128xbf16, #tpu.memory_space<vmem>>, vector<128x128xbf16>
    %9 = arith.extf %8 : vector<128x128xbf16> to vector<128x128xf32>
    %c0_7 = arith.constant 0 : index
    %c0_8 = arith.constant 0 : index
    %10 = vector.load %arg5[%c0_7, %c0_8] : memref<1x128xf32, #tpu.memory_space<vmem>>, vector<1x128xf32>
    %11 = vector.broadcast %10 : vector<1x128xf32> to vector<128x128xf32>
    %12 = arith.mulf %9, %11 : vector<128x128xf32>
    %c0_9 = arith.constant 0 : index
    %c0_10 = arith.constant 0 : index
    %13 = vector.load %arg6[%c0_9, %c0_10] : memref<1x128xf32, #tpu.memory_space<vmem>>, vector<1x128xf32>
    %14 = vector.broadcast %13 : vector<1x128xf32> to vector<128x128xf32>
    %15 = arith.addf %12, %14 : vector<128x128xf32>
    %16 = arith.addf %7, %15 : vector<128x128xf32>
    %cst = arith.constant 0.000000e+00 : f32
    %17 = vector.broadcast %cst : f32 to vector<128x128xf32>
    %18 = arith.maximumf %16, %17 : vector<128x128xf32>
    %c0_11 = arith.constant 0 : index
    %c0_12 = arith.constant 0 : index
    %19 = vector.load %arg7[%c0_11, %c0_12] : memref<128x128xf32, #tpu.memory_space<vmem>>, vector<128x128xf32>
    tpu.vector_store %arg7[%c0_11, %c0_12], %18 {strides = array<i32>} : memref<128x128xf32, #tpu.memory_space<vmem>>, vector<128x128xf32>,
    return
  }
  func.func @transform_0(%arg0: i32) -> (i32, i32) {
    %c0_i32 = arith.constant 0 : i32
    %c0_i32_0 = arith.constant 0 : i32
    return %arg0, %c0_i32 : i32, i32
  }
  func.func @transform_1(%arg0: i32) -> (i32, i32) {
    %c0_i32 = arith.constant 0 : i32
    %c0_i32_0 = arith.constant 0 : i32
    return %arg0, %c0_i32 : i32, i32
  }
  func.func @transform_2(%arg0: i32) -> (i32, i32) {
    %c0_i32 = arith.constant 0 : i32
    %c0_i32_0 = arith.constant 0 : i32
    %c0_i32_1 = arith.constant 0 : i32
    return %c0_i32, %c0_i32_0 : i32, i32
  }
  func.func @transform_3(%arg0: i32) -> (i32, i32) {
    %c0_i32 = arith.constant 0 : i32
    %c0_i32_0 = arith.constant 0 : i32
    %c0_i32_1 = arith.constant 0 : i32
    return %c0_i32, %c0_i32_0 : i32, i32
  }
  func.func @transform_4(%arg0: i32) -> (i32, i32) {
    %c0_i32 = arith.constant 0 : i32
    %c0_i32_0 = arith.constant 0 : i32
    %c0_i32_1 = arith.constant 0 : i32
    return %c0_i32, %c0_i32_0 : i32, i32
  }
  func.func @transform_5(%arg0: i32) -> (i32, i32) {
    %c0_i32 = arith.constant 0 : i32
    %c0_i32_0 = arith.constant 0 : i32
    %c0_i32_1 = arith.constant 0 : i32
    return %c0_i32, %c0_i32_0 : i32, i32
  }
  func.func @transform_6(%arg0: i32) -> (i32, i32) {
    %c0_i32 = arith.constant 0 : i32
    %c0_i32_0 = arith.constant 0 : i32
    return %arg0, %c0_i32 : i32, i32
  }
}

module attributes {stable_mosaic.version = 11 : i64} {
  func.func @_conv2_kernel(%arg0: i32, %arg1: memref<1x64x128xbf16, #tpu.memory_space<vmem>>, %arg2: memref<3x3x128x128xbf16, #tpu.memory_space<vmem>>, %arg3: memref<1x128xf32, #tpu.memory_space<vmem>>, %arg4: memref<1x128xf32, #tpu.memory_space<vmem>>, %arg5: memref<1x64x128xbf16, #tpu.memory_space<vmem>>, %arg6: memref<1x1x128xf32, #tpu.memory_space<vmem>>, %arg7: memref<1x1x128xf32, #tpu.memory_space<vmem>>, %arg8: memref<10x10x128xbf16, #tpu.memory_space<vmem>>) attributes {dimension_semantics = [#tpu.dimension_semantics<parallel>], iteration_bounds = array<i64: 2>, scalar_prefetch = 0 : i64, scratch_operands = 1 : i64, tpu.core_type = #tpu.core_type<tc>, window_params = [{transform_indices = @transform_0, window_bounds = array<i64: 1, 64, 128>}, {pipeline_mode = #tpu.pipeline_mode<synchronous>, transform_indices = @transform_1, window_bounds = array<i64: 3, 3, 128, 128>}, {pipeline_mode = #tpu.pipeline_mode<synchronous>, transform_indices = @transform_2, window_bounds = array<i64: 1, 128>}, {pipeline_mode = #tpu.pipeline_mode<synchronous>, transform_indices = @transform_3, window_bounds = array<i64: 1, 128>}, {transform_indices = @transform_4, window_bounds = array<i64: 1, 64, 128>}, {transform_indices = @transform_5, window_bounds = array<i64: 1, 1, 128>}, {transform_indices = @transform_6, window_bounds = array<i64: 1, 1, 128>}]} {
    %c0 = arith.constant 0 : index
    %c0_0 = arith.constant 0 : index
    %c0_1 = arith.constant 0 : index
    %0 = vector.load %arg1[%c0, %c0_0, %c0_1] : memref<1x64x128xbf16, #tpu.memory_space<vmem>>, vector<1x64x128xbf16>
    %1 = vector.shape_cast %0 : vector<1x64x128xbf16> to vector<64x128xbf16>
    %2 = arith.extf %1 : vector<64x128xbf16> to vector<64x128xf32>
    %c0_2 = arith.constant 0 : index
    %c0_3 = arith.constant 0 : index
    %3 = vector.load %arg3[%c0_2, %c0_3] : memref<1x128xf32, #tpu.memory_space<vmem>>, vector<1x128xf32>
    %4 = vector.broadcast %3 : vector<1x128xf32> to vector<64x128xf32>
    %5 = arith.mulf %2, %4 : vector<64x128xf32>
    %c0_4 = arith.constant 0 : index
    %c0_5 = arith.constant 0 : index
    %6 = vector.load %arg4[%c0_4, %c0_5] : memref<1x128xf32, #tpu.memory_space<vmem>>, vector<1x128xf32>
    %7 = vector.broadcast %6 : vector<1x128xf32> to vector<64x128xf32>
    %8 = arith.addf %5, %7 : vector<64x128xf32>
    %cst = arith.constant 0.000000e+00 : f32
    %9 = vector.broadcast %cst : f32 to vector<64x128xf32>
    %10 = arith.maximumf %8, %9 : vector<64x128xf32>
    %cst_6 = arith.constant 0.000000e+00 : bf16
    %11 = vector.broadcast %cst_6 : bf16 to vector<10x10x128xbf16>
    %c0_7 = arith.constant 0 : index
    %c0_8 = arith.constant 0 : index
    %c0_9 = arith.constant 0 : index
    %12 = vector.load %arg8[%c0_7, %c0_8, %c0_9] : memref<10x10x128xbf16, #tpu.memory_space<vmem>>, vector<10x10x128xbf16>
    tpu.vector_store %arg8[%c0_7, %c0_8, %c0_9], %11 {strides = array<i32>} : memref<10x10x128xbf16, #tpu.memory_space<vmem>>, vector<10x10x128xbf16>,
    %13 = vector.shape_cast %10 : vector<64x128xf32> to vector<8x8x128xf32>
    %14 = arith.truncf %13 : vector<8x8x128xf32> to vector<8x8x128xbf16>
    %c1 = arith.constant 1 : index
    %c1_10 = arith.constant 1 : index
    %c0_11 = arith.constant 0 : index
    %15 = vector.load %arg8[%c1, %c1_10, %c0_11] : memref<10x10x128xbf16, #tpu.memory_space<vmem>>, vector<8x8x128xbf16>
    tpu.vector_store %arg8[%c1, %c1_10, %c0_11], %14 {strides = array<i32>} : memref<10x10x128xbf16, #tpu.memory_space<vmem>>, vector<8x8x128xbf16>,
    %c0_12 = arith.constant 0 : index
    %c0_13 = arith.constant 0 : index
    %c0_14 = arith.constant 0 : index
    %16 = vector.load %arg8[%c0_12, %c0_13, %c0_14] : memref<10x10x128xbf16, #tpu.memory_space<vmem>>, vector<8x8x128xbf16>
    %17 = vector.shape_cast %16 : vector<8x8x128xbf16> to vector<64x128xbf16>
    %c0_15 = arith.constant 0 : index
    %c0_16 = arith.constant 0 : index
    %c0_17 = arith.constant 0 : index
    %c0_18 = arith.constant 0 : index
    %18 = vector.load %arg2[%c0_15, %c0_16, %c0_17, %c0_18] : memref<3x3x128x128xbf16, #tpu.memory_space<vmem>>, vector<1x1x128x128xbf16>
    %19 = vector.shape_cast %18 : vector<1x1x128x128xbf16> to vector<128x128xbf16>
    %cst_19 = arith.constant dense<0.000000e+00> : vector<64x128xf32>
    %20 = tpu.matmul %17, %19, %cst_19 {dimension_numbers = #tpu.dot_dimension_numbers<[1], [0], [0], [1], [0, 0, 1, 1], [], []>} : vector<64x128xbf16>, vector<128x128xbf16>, vector<64x128xf32> -> vector<64x128xf32>
    %c0_20 = arith.constant 0 : index
    %c1_21 = arith.constant 1 : index
    %c0_22 = arith.constant 0 : index
    %21 = vector.load %arg8[%c0_20, %c1_21, %c0_22] : memref<10x10x128xbf16, #tpu.memory_space<vmem>>, vector<8x8x128xbf16>
    %22 = vector.shape_cast %21 : vector<8x8x128xbf16> to vector<64x128xbf16>
    %c0_23 = arith.constant 0 : index
    %c1_24 = arith.constant 1 : index
    %c0_25 = arith.constant 0 : index
    %c0_26 = arith.constant 0 : index
    %23 = vector.load %arg2[%c0_23, %c1_24, %c0_25, %c0_26] : memref<3x3x128x128xbf16, #tpu.memory_space<vmem>>, vector<1x1x128x128xbf16>
    %24 = vector.shape_cast %23 : vector<1x1x128x128xbf16> to vector<128x128xbf16>
    %cst_27 = arith.constant dense<0.000000e+00> : vector<64x128xf32>
    %25 = tpu.matmul %22, %24, %cst_27 {dimension_numbers = #tpu.dot_dimension_numbers<[1], [0], [0], [1], [0, 0, 1, 1], [], []>} : vector<64x128xbf16>, vector<128x128xbf16>, vector<64x128xf32> -> vector<64x128xf32>
    %26 = arith.addf %20, %25 : vector<64x128xf32>
    %c0_28 = arith.constant 0 : index
    %c2 = arith.constant 2 : index
    %c0_29 = arith.constant 0 : index
    %27 = vector.load %arg8[%c0_28, %c2, %c0_29] : memref<10x10x128xbf16, #tpu.memory_space<vmem>>, vector<8x8x128xbf16>
    %28 = vector.shape_cast %27 : vector<8x8x128xbf16> to vector<64x128xbf16>
    %c0_30 = arith.constant 0 : index
    %c2_31 = arith.constant 2 : index
    %c0_32 = arith.constant 0 : index
    %c0_33 = arith.constant 0 : index
    %29 = vector.load %arg2[%c0_30, %c2_31, %c0_32, %c0_33] : memref<3x3x128x128xbf16, #tpu.memory_space<vmem>>, vector<1x1x128x128xbf16>
    %30 = vector.shape_cast %29 : vector<1x1x128x128xbf16> to vector<128x128xbf16>
    %cst_34 = arith.constant dense<0.000000e+00> : vector<64x128xf32>
    %31 = tpu.matmul %28, %30, %cst_34 {dimension_numbers = #tpu.dot_dimension_numbers<[1], [0], [0], [1], [0, 0, 1, 1], [], []>} : vector<64x128xbf16>, vector<128x128xbf16>, vector<64x128xf32> -> vector<64x128xf32>
    %32 = arith.addf %26, %31 : vector<64x128xf32>
    %c1_35 = arith.constant 1 : index
    %c0_36 = arith.constant 0 : index
    %c0_37 = arith.constant 0 : index
    %33 = vector.load %arg8[%c1_35, %c0_36, %c0_37] : memref<10x10x128xbf16, #tpu.memory_space<vmem>>, vector<8x8x128xbf16>
    %34 = vector.shape_cast %33 : vector<8x8x128xbf16> to vector<64x128xbf16>
    %c1_38 = arith.constant 1 : index
    %c0_39 = arith.constant 0 : index
    %c0_40 = arith.constant 0 : index
    %c0_41 = arith.constant 0 : index
    %35 = vector.load %arg2[%c1_38, %c0_39, %c0_40, %c0_41] : memref<3x3x128x128xbf16, #tpu.memory_space<vmem>>, vector<1x1x128x128xbf16>
    %36 = vector.shape_cast %35 : vector<1x1x128x128xbf16> to vector<128x128xbf16>
    %cst_42 = arith.constant dense<0.000000e+00> : vector<64x128xf32>
    %37 = tpu.matmul %34, %36, %cst_42 {dimension_numbers = #tpu.dot_dimension_numbers<[1], [0], [0], [1], [0, 0, 1, 1], [], []>} : vector<64x128xbf16>, vector<128x128xbf16>, vector<64x128xf32> -> vector<64x128xf32>
    %38 = arith.addf %32, %37 : vector<64x128xf32>
    %c1_43 = arith.constant 1 : index
    %c1_44 = arith.constant 1 : index
    %c0_45 = arith.constant 0 : index
    %39 = vector.load %arg8[%c1_43, %c1_44, %c0_45] : memref<10x10x128xbf16, #tpu.memory_space<vmem>>, vector<8x8x128xbf16>
    %40 = vector.shape_cast %39 : vector<8x8x128xbf16> to vector<64x128xbf16>
    %c1_46 = arith.constant 1 : index
    %c1_47 = arith.constant 1 : index
    %c0_48 = arith.constant 0 : index
    %c0_49 = arith.constant 0 : index
    %41 = vector.load %arg2[%c1_46, %c1_47, %c0_48, %c0_49] : memref<3x3x128x128xbf16, #tpu.memory_space<vmem>>, vector<1x1x128x128xbf16>
    %42 = vector.shape_cast %41 : vector<1x1x128x128xbf16> to vector<128x128xbf16>
    %cst_50 = arith.constant dense<0.000000e+00> : vector<64x128xf32>
    %43 = tpu.matmul %40, %42, %cst_50 {dimension_numbers = #tpu.dot_dimension_numbers<[1], [0], [0], [1], [0, 0, 1, 1], [], []>} : vector<64x128xbf16>, vector<128x128xbf16>, vector<64x128xf32> -> vector<64x128xf32>
    %44 = arith.addf %38, %43 : vector<64x128xf32>
    %c1_51 = arith.constant 1 : index
    %c2_52 = arith.constant 2 : index
    %c0_53 = arith.constant 0 : index
    %45 = vector.load %arg8[%c1_51, %c2_52, %c0_53] : memref<10x10x128xbf16, #tpu.memory_space<vmem>>, vector<8x8x128xbf16>
    %46 = vector.shape_cast %45 : vector<8x8x128xbf16> to vector<64x128xbf16>
    %c1_54 = arith.constant 1 : index
    %c2_55 = arith.constant 2 : index
    %c0_56 = arith.constant 0 : index
    %c0_57 = arith.constant 0 : index
    %47 = vector.load %arg2[%c1_54, %c2_55, %c0_56, %c0_57] : memref<3x3x128x128xbf16, #tpu.memory_space<vmem>>, vector<1x1x128x128xbf16>
    %48 = vector.shape_cast %47 : vector<1x1x128x128xbf16> to vector<128x128xbf16>
    %cst_58 = arith.constant dense<0.000000e+00> : vector<64x128xf32>
    %49 = tpu.matmul %46, %48, %cst_58 {dimension_numbers = #tpu.dot_dimension_numbers<[1], [0], [0], [1], [0, 0, 1, 1], [], []>} : vector<64x128xbf16>, vector<128x128xbf16>, vector<64x128xf32> -> vector<64x128xf32>
    %50 = arith.addf %44, %49 : vector<64x128xf32>
    %c2_59 = arith.constant 2 : index
    %c0_60 = arith.constant 0 : index
    %c0_61 = arith.constant 0 : index
    %51 = vector.load %arg8[%c2_59, %c0_60, %c0_61] : memref<10x10x128xbf16, #tpu.memory_space<vmem>>, vector<8x8x128xbf16>
    %52 = vector.shape_cast %51 : vector<8x8x128xbf16> to vector<64x128xbf16>
    %c2_62 = arith.constant 2 : index
    %c0_63 = arith.constant 0 : index
    %c0_64 = arith.constant 0 : index
    %c0_65 = arith.constant 0 : index
    %53 = vector.load %arg2[%c2_62, %c0_63, %c0_64, %c0_65] : memref<3x3x128x128xbf16, #tpu.memory_space<vmem>>, vector<1x1x128x128xbf16>
    %54 = vector.shape_cast %53 : vector<1x1x128x128xbf16> to vector<128x128xbf16>
    %cst_66 = arith.constant dense<0.000000e+00> : vector<64x128xf32>
    %55 = tpu.matmul %52, %54, %cst_66 {dimension_numbers = #tpu.dot_dimension_numbers<[1], [0], [0], [1], [0, 0, 1, 1], [], []>} : vector<64x128xbf16>, vector<128x128xbf16>, vector<64x128xf32> -> vector<64x128xf32>
    %56 = arith.addf %50, %55 : vector<64x128xf32>
    %c2_67 = arith.constant 2 : index
    %c1_68 = arith.constant 1 : index
    %c0_69 = arith.constant 0 : index
    %57 = vector.load %arg8[%c2_67, %c1_68, %c0_69] : memref<10x10x128xbf16, #tpu.memory_space<vmem>>, vector<8x8x128xbf16>
    %58 = vector.shape_cast %57 : vector<8x8x128xbf16> to vector<64x128xbf16>
    %c2_70 = arith.constant 2 : index
    %c1_71 = arith.constant 1 : index
    %c0_72 = arith.constant 0 : index
    %c0_73 = arith.constant 0 : index
    %59 = vector.load %arg2[%c2_70, %c1_71, %c0_72, %c0_73] : memref<3x3x128x128xbf16, #tpu.memory_space<vmem>>, vector<1x1x128x128xbf16>
    %60 = vector.shape_cast %59 : vector<1x1x128x128xbf16> to vector<128x128xbf16>
    %cst_74 = arith.constant dense<0.000000e+00> : vector<64x128xf32>
    %61 = tpu.matmul %58, %60, %cst_74 {dimension_numbers = #tpu.dot_dimension_numbers<[1], [0], [0], [1], [0, 0, 1, 1], [], []>} : vector<64x128xbf16>, vector<128x128xbf16>, vector<64x128xf32> -> vector<64x128xf32>
    %62 = arith.addf %56, %61 : vector<64x128xf32>
    %c2_75 = arith.constant 2 : index
    %c2_76 = arith.constant 2 : index
    %c0_77 = arith.constant 0 : index
    %63 = vector.load %arg8[%c2_75, %c2_76, %c0_77] : memref<10x10x128xbf16, #tpu.memory_space<vmem>>, vector<8x8x128xbf16>
    %64 = vector.shape_cast %63 : vector<8x8x128xbf16> to vector<64x128xbf16>
    %c2_78 = arith.constant 2 : index
    %c2_79 = arith.constant 2 : index
    %c0_80 = arith.constant 0 : index
    %c0_81 = arith.constant 0 : index
    %65 = vector.load %arg2[%c2_78, %c2_79, %c0_80, %c0_81] : memref<3x3x128x128xbf16, #tpu.memory_space<vmem>>, vector<1x1x128x128xbf16>
    %66 = vector.shape_cast %65 : vector<1x1x128x128xbf16> to vector<128x128xbf16>
    %cst_82 = arith.constant dense<0.000000e+00> : vector<64x128xf32>
    %67 = tpu.matmul %64, %66, %cst_82 {dimension_numbers = #tpu.dot_dimension_numbers<[1], [0], [0], [1], [0, 0, 1, 1], [], []>} : vector<64x128xbf16>, vector<128x128xbf16>, vector<64x128xf32> -> vector<64x128xf32>
    %68 = arith.addf %62, %67 : vector<64x128xf32>
    %cst_83 = arith.constant dense<0.000000e+00> : vector<128xf32>
    %69 = vector.multi_reduction <add>, %68, %cst_83 [0] : vector<64x128xf32> to vector<128xf32>
    %70 = vector.shape_cast %69 : vector<128xf32> to vector<1x128xf32>
    %c0_84 = arith.constant 0 : index
    %c0_85 = arith.constant 0 : index
    %c0_86 = arith.constant 0 : index
    %71 = vector.load %arg6[%c0_84, %c0_85, %c0_86] : memref<1x1x128xf32, #tpu.memory_space<vmem>>, vector<1x1x128xf32>
    %72 = vector.shape_cast %71 : vector<1x1x128xf32> to vector<1x128xf32>
    %73 = vector.shape_cast %70 : vector<1x128xf32> to vector<1x1x128xf32>
    tpu.vector_store %arg6[%c0_84, %c0_85, %c0_86], %73 {strides = array<i32>} : memref<1x1x128xf32, #tpu.memory_space<vmem>>, vector<1x1x128xf32>,
    %74 = arith.mulf %68, %68 : vector<64x128xf32>
    %cst_87 = arith.constant dense<0.000000e+00> : vector<128xf32>
    %75 = vector.multi_reduction <add>, %74, %cst_87 [0] : vector<64x128xf32> to vector<128xf32>
    %76 = vector.shape_cast %75 : vector<128xf32> to vector<1x128xf32>
    %c0_88 = arith.constant 0 : index
    %c0_89 = arith.constant 0 : index
    %c0_90 = arith.constant 0 : index
    %77 = vector.load %arg7[%c0_88, %c0_89, %c0_90] : memref<1x1x128xf32, #tpu.memory_space<vmem>>, vector<1x1x128xf32>
    %78 = vector.shape_cast %77 : vector<1x1x128xf32> to vector<1x128xf32>
    %79 = vector.shape_cast %76 : vector<1x128xf32> to vector<1x1x128xf32>
    tpu.vector_store %arg7[%c0_88, %c0_89, %c0_90], %79 {strides = array<i32>} : memref<1x1x128xf32, #tpu.memory_space<vmem>>, vector<1x1x128xf32>,
    %80 = arith.truncf %68 : vector<64x128xf32> to vector<64x128xbf16>
    %c0_91 = arith.constant 0 : index
    %c0_92 = arith.constant 0 : index
    %c0_93 = arith.constant 0 : index
    %81 = vector.load %arg5[%c0_91, %c0_92, %c0_93] : memref<1x64x128xbf16, #tpu.memory_space<vmem>>, vector<1x64x128xbf16>
    %82 = vector.shape_cast %81 : vector<1x64x128xbf16> to vector<64x128xbf16>
    %83 = vector.shape_cast %80 : vector<64x128xbf16> to vector<1x64x128xbf16>
    tpu.vector_store %arg5[%c0_91, %c0_92, %c0_93], %83 {strides = array<i32>} : memref<1x64x128xbf16, #tpu.memory_space<vmem>>, vector<1x64x128xbf16>,
    return
  }
  func.func @transform_0(%arg0: i32) -> (i32, i32, i32) {
    %c0_i32 = arith.constant 0 : i32
    %c0_i32_0 = arith.constant 0 : i32
    %c0_i32_1 = arith.constant 0 : i32
    return %arg0, %c0_i32, %c0_i32_0 : i32, i32, i32
  }
  func.func @transform_1(%arg0: i32) -> (i32, i32, i32, i32) {
    %c0_i32 = arith.constant 0 : i32
    %c0_i32_0 = arith.constant 0 : i32
    %c0_i32_1 = arith.constant 0 : i32
    %c0_i32_2 = arith.constant 0 : i32
    %c0_i32_3 = arith.constant 0 : i32
    return %c0_i32, %c0_i32_0, %c0_i32_1, %c0_i32_2 : i32, i32, i32, i32
  }
  func.func @transform_2(%arg0: i32) -> (i32, i32) {
    %c0_i32 = arith.constant 0 : i32
    %c0_i32_0 = arith.constant 0 : i32
    %c0_i32_1 = arith.constant 0 : i32
    return %c0_i32, %c0_i32_0 : i32, i32
  }
  func.func @transform_3(%arg0: i32) -> (i32, i32) {
    %c0_i32 = arith.constant 0 : i32
    %c0_i32_0 = arith.constant 0 : i32
    %c0_i32_1 = arith.constant 0 : i32
    return %c0_i32, %c0_i32_0 : i32, i32
  }
  func.func @transform_4(%arg0: i32) -> (i32, i32, i32) {
    %c0_i32 = arith.constant 0 : i32
    %c0_i32_0 = arith.constant 0 : i32
    %c0_i32_1 = arith.constant 0 : i32
    return %arg0, %c0_i32, %c0_i32_0 : i32, i32, i32
  }
  func.func @transform_5(%arg0: i32) -> (i32, i32, i32) {
    %c0_i32 = arith.constant 0 : i32
    %c0_i32_0 = arith.constant 0 : i32
    %c0_i32_1 = arith.constant 0 : i32
    return %arg0, %c0_i32, %c0_i32_0 : i32, i32, i32
  }
  func.func @transform_6(%arg0: i32) -> (i32, i32, i32) {
    %c0_i32 = arith.constant 0 : i32
    %c0_i32_0 = arith.constant 0 : i32
    %c0_i32_1 = arith.constant 0 : i32
    return %arg0, %c0_i32, %c0_i32_0 : i32, i32, i32
  }
}

</mosaic_0001>

<llo_original>
// kernel: basic_block_forward.5
$region0: #{basic_block_forward.5}
  #allocation0 [shape = 'u32[]', space=smem, size = 0x4, offset = 0x4, fixed_abs, tag = 'smem constant byte address 0x4 - core index']
  #allocation1 [shape = 'u32[144,128]{1,0:T(1,128)}', space=vmem, size = 0x12000, scoped, tag = 'internal scratch']
  %s0 = inlined_call_operand.vmem [shape: bf16[128,128], index: 0, kind: input, shape index: {}]
  %s1 = inlined_call_operand.vmem [shape: bf16[128,128], index: 1, kind: input, shape index: {}]
  %s2 = inlined_call_operand.vmem [shape: f32[1,128], index: 2, kind: input, shape index: {}]
  %s3 = inlined_call_operand.vmem [shape: f32[1,128], index: 3, kind: input, shape index: {}]
  %s4 = inlined_call_operand.vmem [shape: f32[1,128], index: 4, kind: input, shape index: {}]
  %s5 = inlined_call_operand.vmem [shape: f32[1,128], index: 5, kind: input, shape index: {}]
  %s6 = inlined_call_operand.vmem [shape: f32[128,128], index: 6, kind: output, shape index: {}]
  %s7 = sld [smem:[#allocation0]]
  $region34: #{basic_block_forward.5} parent=0
    _
  %s9 = ssub.s32 1, %s7
  %s10 = scalar_select 0, %s9, %s7
  // Predicated region
  $region2: #{basic_block_forward.5} parent=0 // pred_check
    _
  $region3: #{basic_block_forward.5} parent=0 // pred_check_branch
    %12 = sbr.rel (0) target = $region5
  $region4: #{basic_block_forward.5} parent=0 // pred_region
    _
  $region5: #{basic_block_forward.5} parent=0 // pred_fallthru
    _
  // Predicated region
  $region6: #{basic_block_forward.5} parent=0 // pred_check
    _
  $region7: #{basic_block_forward.5} parent=0 // pred_check_branch
    %14 = sbr.rel (0) target = $region9
  $region8: #{basic_block_forward.5} parent=0 // pred_region
    _
  $region9: #{basic_block_forward.5} parent=0 // pred_fallthru
    _
  // Predicated region
  $region10: #{basic_block_forward.5} parent=0 // pred_check
    _
  $region11: #{basic_block_forward.5} parent=0 // pred_check_branch
    %16 = sbr.rel (0) target = $region13
  $region12: #{basic_block_forward.5} parent=0 // pred_region
    _
  $region13: #{basic_block_forward.5} parent=0 // pred_fallthru
    _
  // Predicated region
  $region14: #{basic_block_forward.5} parent=0 // pred_check
    _
  $region15: #{basic_block_forward.5} parent=0 // pred_check_branch
    %18 = sbr.rel (0) target = $region17
  $region16: #{basic_block_forward.5} parent=0 // pred_region
    _
  $region17: #{basic_block_forward.5} parent=0 // pred_fallthru
    _
  // Predicated region
  $region18: #{basic_block_forward.5} parent=0 // pred_check
    _
  $region19: #{basic_block_forward.5} parent=0 // pred_check_branch
    %20 = sbr.rel (0) target = $region21
  $region20: #{basic_block_forward.5} parent=0 // pred_region
    _
  $region21: #{basic_block_forward.5} parent=0 // pred_fallthru
    _
  // Predicated region
  $region22: #{basic_block_forward.5} parent=0 // pred_check
    _
  $region23: #{basic_block_forward.5} parent=0 // pred_check_branch
    %22 = sbr.rel (0) target = $region25
  $region24: #{basic_block_forward.5} parent=0 // pred_region
    _
  $region25: #{basic_block_forward.5} parent=0 // pred_fallthru
    _
  %v23 = vld [vmem:[%s0] sm:$0xf]
  %v24 = vld [vmem:[%s0 + $0x4] sm:$0xf]
  %v25 = vld [vmem:[%s0 + $0x8] sm:$0xf]
  %v26 = vld [vmem:[%s0 + $0xc] sm:$0xf]
  %v27 = vld [vmem:[%s0 + $0x10] sm:$0xf]
  %v28 = vld [vmem:[%s0 + $0x14] sm:$0xf]
  %v29 = vld [vmem:[%s0 + $0x18] sm:$0xf]
  %v30 = vld [vmem:[%s0 + $0x1c] sm:$0xf]
  %v31 = vld [vmem:[%s0 + $0x20] sm:$0xf]
  %v32 = vld [vmem:[%s0 + $0x24] sm:$0xf]
  %v33 = vld [vmem:[%s0 + $0x28] sm:$0xf]
  %v34 = vld [vmem:[%s0 + $0x2c] sm:$0xf]
  %v35 = vld [vmem:[%s0 + $0x30] sm:$0xf]
  %v36 = vld [vmem:[%s0 + $0x34] sm:$0xf]
  %v37 = vld [vmem:[%s0 + $0x38] sm:$0xf]
  %v38 = vld [vmem:[%s0 + $0x3c] sm:$0xf]
  %v39 = vunpack.c.l.bf16 %v23
  %v40 = vunpack.c.l.bf16 %v24
  %v41 = vunpack.c.l.bf16 %v25
  %v42 = vunpack.c.l.bf16 %v26
  %v43 = vunpack.c.l.bf16 %v27
  %v44 = vunpack.c.l.bf16 %v28
  %v45 = vunpack.c.l.bf16 %v29
  %v46 = vunpack.c.l.bf16 %v30
  %v47 = vunpack.c.l.bf16 %v31
  %v48 = vunpack.c.l.bf16 %v32
  %v49 = vunpack.c.l.bf16 %v33
  %v50 = vunpack.c.l.bf16 %v34
  %v51 = vunpack.c.l.bf16 %v35
  %v52 = vunpack.c.l.bf16 %v36
  %v53 = vunpack.c.l.bf16 %v37
  %v54 = vunpack.c.l.bf16 %v38
  %v55 = vld [vmem:[%s2] sm:$0x1]
  %v57 = vlaneseq
  %v58 = vshrl.u32 %v57, 7
  %v59 = vsub.s32 0, %v58
  %v60 = vrot.slane %v55, %v59
  %v62 = vmul.f32 %v39, %v60
  %v63 = vmul.f32 %v40, %v60
  %v64 = vmul.f32 %v41, %v60
  %v65 = vmul.f32 %v42, %v60
  %v66 = vmul.f32 %v43, %v60
  %v67 = vmul.f32 %v44, %v60
  %v68 = vmul.f32 %v45, %v60
  %v69 = vmul.f32 %v46, %v60
  %v70 = vmul.f32 %v47, %v60
  %v71 = vmul.f32 %v48, %v60
  %v72 = vmul.f32 %v49, %v60
  %v73 = vmul.f32 %v50, %v60
  %v74 = vmul.f32 %v51, %v60
  %v75 = vmul.f32 %v52, %v60
  %v76 = vmul.f32 %v53, %v60
  %v77 = vmul.f32 %v54, %v60
  %v78 = vld [vmem:[%s3] sm:$0x1]
  %v80 = vlaneseq
  %v81 = vshrl.u32 %v80, 7
  %v82 = vsub.s32 0, %v81
  %v83 = vrot.slane %v78, %v82
  %v85 = vadd.f32 %v62, %v83
  %v86 = vadd.f32 %v63, %v83
  %v87 = vadd.f32 %v64, %v83
  %v88 = vadd.f32 %v65, %v83
  %v89 = vadd.f32 %v66, %v83
  %v90 = vadd.f32 %v67, %v83
  %v91 = vadd.f32 %v68, %v83
  %v92 = vadd.f32 %v69, %v83
  %v93 = vadd.f32 %v70, %v83
  %v94 = vadd.f32 %v71, %v83
  %v95 = vadd.f32 %v72, %v83
  %v96 = vadd.f32 %v73, %v83
  %v97 = vadd.f32 %v74, %v83
  %v98 = vadd.f32 %v75, %v83
  %v99 = vadd.f32 %v76, %v83
  %v100 = vadd.f32 %v77, %v83
  %v101 = vld [vmem:[%s1] sm:$0xf]
  %v102 = vld [vmem:[%s1 + $0x4] sm:$0xf]
  %v103 = vld [vmem:[%s1 + $0x8] sm:$0xf]
  %v104 = vld [vmem:[%s1 + $0xc] sm:$0xf]
  %v105 = vld [vmem:[%s1 + $0x10] sm:$0xf]
  %v106 = vld [vmem:[%s1 + $0x14] sm:$0xf]
  %v107 = vld [vmem:[%s1 + $0x18] sm:$0xf]
  %v108 = vld [vmem:[%s1 + $0x1c] sm:$0xf]
  %v109 = vld [vmem:[%s1 + $0x20] sm:$0xf]
  %v110 = vld [vmem:[%s1 + $0x24] sm:$0xf]
  %v111 = vld [vmem:[%s1 + $0x28] sm:$0xf]
  %v112 = vld [vmem:[%s1 + $0x2c] sm:$0xf]
  %v113 = vld [vmem:[%s1 + $0x30] sm:$0xf]
  %v114 = vld [vmem:[%s1 + $0x34] sm:$0xf]
  %v115 = vld [vmem:[%s1 + $0x38] sm:$0xf]
  %v116 = vld [vmem:[%s1 + $0x3c] sm:$0xf]
  %v117 = vunpack.c.l.bf16 %v101
  %v118 = vunpack.c.l.bf16 %v102
  %v119 = vunpack.c.l.bf16 %v103
  %v120 = vunpack.c.l.bf16 %v104
  %v121 = vunpack.c.l.bf16 %v105
  %v122 = vunpack.c.l.bf16 %v106
  %v123 = vunpack.c.l.bf16 %v107
  %v124 = vunpack.c.l.bf16 %v108
  %v125 = vunpack.c.l.bf16 %v109
  %v126 = vunpack.c.l.bf16 %v110
  %v127 = vunpack.c.l.bf16 %v111
  %v128 = vunpack.c.l.bf16 %v112
  %v129 = vunpack.c.l.bf16 %v113
  %v130 = vunpack.c.l.bf16 %v114
  %v131 = vunpack.c.l.bf16 %v115
  %v132 = vunpack.c.l.bf16 %v116
  %v133 = vld [vmem:[%s4] sm:$0x1]
  %v135 = vlaneseq
  %v136 = vshrl.u32 %v135, 7
  %v137 = vsub.s32 0, %v136
  %v138 = vrot.slane %v133, %v137
  %v140 = vmul.f32 %v117, %v138
  %v141 = vmul.f32 %v118, %v138
  %v142 = vmul.f32 %v119, %v138
  %v143 = vmul.f32 %v120, %v138
  %v144 = vmul.f32 %v121, %v138
  %v145 = vmul.f32 %v122, %v138
  %v146 = vmul.f32 %v123, %v138
  %v147 = vmul.f32 %v124, %v138
  %v148 = vmul.f32 %v125, %v138
  %v149 = vmul.f32 %v126, %v138
  %v150 = vmul.f32 %v127, %v138
  %v151 = vmul.f32 %v128, %v138
  %v152 = vmul.f32 %v129, %v138
  %v153 = vmul.f32 %v130, %v138
  %v154 = vmul.f32 %v131, %v138
  %v155 = vmul.f32 %v132, %v138
  %v156 = vld [vmem:[%s5] sm:$0x1]
  %v158 = vlaneseq
  %v159 = vshrl.u32 %v158, 7
  %v160 = vsub.s32 0, %v159
  %v161 = vrot.slane %v156, %v160
  %v163 = vadd.f32 %v140, %v161
  %v164 = vadd.f32 %v141, %v161
  %v165 = vadd.f32 %v142, %v161
  %v166 = vadd.f32 %v143, %v161
  %v167 = vadd.f32 %v144, %v161
  %v168 = vadd.f32 %v145, %v161
  %v169 = vadd.f32 %v146, %v161
  %v170 = vadd.f32 %v147, %v161
  %v171 = vadd.f32 %v148, %v161
  %v172 = vadd.f32 %v149, %v161
  %v173 = vadd.f32 %v150, %v161
  %v174 = vadd.f32 %v151, %v161
  %v175 = vadd.f32 %v152, %v161
  %v176 = vadd.f32 %v153, %v161
  %v177 = vadd.f32 %v154, %v161
  %v178 = vadd.f32 %v155, %v161
  %v179 = vadd.f32 %v85, %v163
  %v180 = vadd.f32 %v86, %v164
  %v181 = vadd.f32 %v87, %v165
  %v182 = vadd.f32 %v88, %v166
  %v183 = vadd.f32 %v89, %v167
  %v184 = vadd.f32 %v90, %v168
  %v185 = vadd.f32 %v91, %v169
  %v186 = vadd.f32 %v92, %v170
  %v187 = vadd.f32 %v93, %v171
  %v188 = vadd.f32 %v94, %v172
  %v189 = vadd.f32 %v95, %v173
  %v190 = vadd.f32 %v96, %v174
  %v191 = vadd.f32 %v97, %v175
  %v192 = vadd.f32 %v98, %v176
  %v193 = vadd.f32 %v99, %v177
  %v194 = vadd.f32 %v100, %v178
  %v195 = vmax.f32 %v179, 0.0
  %v196 = vmax.f32 %v180, 0.0
  %v197 = vmax.f32 %v181, 0.0
  %v198 = vmax.f32 %v182, 0.0
  %v199 = vmax.f32 %v183, 0.0
  %v200 = vmax.f32 %v184, 0.0
  %v201 = vmax.f32 %v185, 0.0
  %v202 = vmax.f32 %v186, 0.0
  %v203 = vmax.f32 %v187, 0.0
  %v204 = vmax.f32 %v188, 0.0
  %v205 = vmax.f32 %v189, 0.0
  %v206 = vmax.f32 %v190, 0.0
  %v207 = vmax.f32 %v191, 0.0
  %v208 = vmax.f32 %v192, 0.0
  %v209 = vmax.f32 %v193, 0.0
  %v210 = vmax.f32 %v194, 0.0
  %211 = vst [vmem:[%s6] sm:$0xff] %v195
  %212 = vst [vmem:[%s6 + $0x8] sm:$0xff] %v196
  %213 = vst [vmem:[%s6 + $0x10] sm:$0xff] %v197
  %214 = vst [vmem:[%s6 + $0x18] sm:$0xff] %v198
  %215 = vst [vmem:[%s6 + $0x20] sm:$0xff] %v199
  %216 = vst [vmem:[%s6 + $0x28] sm:$0xff] %v200
  %217 = vst [vmem:[%s6 + $0x30] sm:$0xff] %v201
  %218 = vst [vmem:[%s6 + $0x38] sm:$0xff] %v202
  %219 = vst [vmem:[%s6 + $0x40] sm:$0xff] %v203
  %220 = vst [vmem:[%s6 + $0x48] sm:$0xff] %v204
  %221 = vst [vmem:[%s6 + $0x50] sm:$0xff] %v205
  %222 = vst [vmem:[%s6 + $0x58] sm:$0xff] %v206
  %223 = vst [vmem:[%s6 + $0x60] sm:$0xff] %v207
  %224 = vst [vmem:[%s6 + $0x68] sm:$0xff] %v208
  %225 = vst [vmem:[%s6 + $0x70] sm:$0xff] %v209
  %226 = vst [vmem:[%s6 + $0x78] sm:$0xff] %v210
  // Predicated region
  $region26: #{basic_block_forward.5} parent=0 // pred_check
    _
  $region27: #{basic_block_forward.5} parent=0 // pred_check_branch
    %228 = sbr.rel (0) target = $region29
  $region28: #{basic_block_forward.5} parent=0 // pred_region
    _
  $region29: #{basic_block_forward.5} parent=0 // pred_fallthru
    _
  // Predicated region
  $region30: #{basic_block_forward.5} parent=0 // pred_check
    _
  $region31: #{basic_block_forward.5} parent=0 // pred_check_branch
    %230 = sbr.rel (0) target = $region33
  $region32: #{basic_block_forward.5} parent=0 // pred_region
    _
  $region33: #{basic_block_forward.5} parent=0 // pred_fallthru
    _

// kernel: basic_block_forward.3
$region0: #{basic_block_forward.3}
  #allocation0 [shape = 'u32[]', space=smem, size = 0x4, offset = 0x4, fixed_abs, tag = 'smem constant byte address 0x4 - core index']
  #allocation1 [shape = 'u32[144,128]{1,0:T(1,128)}', space=vmem, size = 0x12000, scoped, tag = 'internal scratch']
  %s0 = inlined_call_operand.vmem [shape: bf16[2,9,9,512], index: 0, kind: input, shape index: {}]
  %s1 = inlined_call_operand.vmem [shape: bf16[3,3,128,128], index: 1, kind: input, shape index: {}]
  %s2 = inlined_call_operand.vmem [shape: bf16[128,128], index: 2, kind: input, shape index: {}]
  %s3 = inlined_call_operand.vmem [shape: bf16[2,64,128], index: 3, kind: output, shape index: {0}]
  %s4 = inlined_call_operand.vmem [shape: f32[2,1,128], index: 4, kind: output, shape index: {1}]
  %s5 = inlined_call_operand.vmem [shape: f32[2,1,128], index: 5, kind: output, shape index: {2}]
  %s6 = inlined_call_operand.vmem [shape: bf16[2,64,128], index: 6, kind: output, shape index: {3}]
  %s7 = inlined_call_operand.vmem [shape: f32[2,1,128], index: 7, kind: output, shape index: {4}]
  %s8 = inlined_call_operand.vmem [shape: f32[2,1,128], index: 8, kind: output, shape index: {5}]
  %9 = xla_tuple %s3, %s4, %s5, %s6, %s7, %s8
  %s10 = sld [smem:[#allocation0]]
  $region85: #{basic_block_forward.3} parent=0
    _
  %s12 = ssub.s32 1, %s10
  %s13 = scalar_select 0, %s12, %s10
  loop: start=0, step=1, limit=4
  $region2: #{basic_block_forward.3} parent=0 // loop_pre_header
    _
  $region3: #{basic_block_forward.3} parent=0 // loop_header
    %s15 = sphi 0, %s19
    %p16 = scmp.ge.s32.totalorder %s15, 4
    %s25 = sphi 0, %s27
    %s28 = sphi 0, %s25
    %s29 = sphi 0, %s28
    %s45 = sphi 0, %s29
    %s49 = sphi 0, %s49
    %s51 = sphi 0, %s49
    %s52 = sphi 0, %s51
    %s66 = sphi 0, %s52
    %s70 = sphi 0, %s70
    %s72 = sphi 0, %s70
    %s73 = sphi 0, %s72
    %s87 = sphi 0, %s73
    %s93 = sphi 0, %s95
    %s96 = sphi 0, %s93
    %s97 = sphi 0, %s96
    %s113 = sphi 0, %s97
    %s119 = sphi 0, %s121
    %s122 = sphi 0, %s119
    %s123 = sphi 0, %s122
    %s139 = sphi 0, %s123
    %s145 = sphi 0, %s147
    %s148 = sphi 0, %s145
    %s149 = sphi 0, %s148
    %s165 = sphi 0, %s149
    %s171 = sphi 0, %s173
    %s174 = sphi 0, %s171
    %s175 = sphi 0, %s174
    %s191 = sphi 0, %s175
    %s197 = sphi 0, %s199
    %s200 = sphi 0, %s197
    %s201 = sphi 0, %s200
    %s217 = sphi 0, %s201
    %s223 = sphi 0, %s225
    %s226 = sphi 0, %s223
    %s227 = sphi 0, %s226
    %s243 = sphi 0, %s227
  $region4: #{basic_block_forward.3} parent=0 // loop_header_branch
    %18 = sbr.rel (%p16) target = $region8
  $region5: #{basic_block_forward.3} parent=0 // loop_body
    %s20 = ssub.s32 %s15, 1
    %s21 = ssub.s32 %s15, 2
    %s22 = sadd.s32 %s15, 1
    %s23 = ssub.s32 %s15, %s22
    %p24 = scmp.eq.s32.totalorder %s23, 0
    %s26 = sadd.s32 %s25, 1
    %s27 = scalar_select %p24, %s25, %s26
    %p30 = pneg %p24
    %p31 = scmp.eq.s32.totalorder %s15, 1
    %p32 = por %p30, %p31
    %p33 = scmp.ne.s32.totalorder %s25, %s28
    %p34 = scmp.eq.s32.totalorder %s15, 0
    %p35 = por %p33, %p34
    %p36 = scmp.ne.s32.totalorder %s25, %s28
    %p37 = scmp.eq.s32.totalorder %s20, 1
    %p38 = por %p36, %p37
    %p39 = scmp.ne.s32.totalorder %s28, %s29
    %p40 = scmp.eq.s32.totalorder %s20, 0
    %p41 = por %p39, %p40
    %p42 = scmp.ne.s32.totalorder %s28, %s29
    %p43 = scmp.eq.s32.totalorder %s21, 1
    %p44 = por %p42, %p43
    %p46 = scmp.ne.s32.totalorder %s29, %s45
    %p47 = scmp.eq.s32.totalorder %s21, 0
    %p48 = por %p46, %p47
    %s50 = sadd.s32 %s49, 1
    %p53 = scmp.eq.s32.totalorder %s15, 1
    %p54 = scmp.ne.s32.totalorder %s49, %s51
    %p55 = scmp.eq.s32.totalorder %s15, 0
    %p56 = por %p54, %p55
    %p57 = scmp.ne.s32.totalorder %s49, %s51
    %p58 = scmp.eq.s32.totalorder %s20, 1
    %p59 = por %p57, %p58
    %p60 = scmp.ne.s32.totalorder %s51, %s52
    %p61 = scmp.eq.s32.totalorder %s20, 0
    %p62 = por %p60, %p61
    %p63 = scmp.ne.s32.totalorder %s51, %s52
    %p64 = scmp.eq.s32.totalorder %s21, 1
    %p65 = por %p63, %p64
    %p67 = scmp.ne.s32.totalorder %s52, %s66
    %p68 = scmp.eq.s32.totalorder %s21, 0
    %p69 = por %p67, %p68
    %s71 = sadd.s32 %s70, 1
    %p74 = scmp.eq.s32.totalorder %s15, 1
    %p75 = scmp.ne.s32.totalorder %s70, %s72
    %p76 = scmp.eq.s32.totalorder %s15, 0
    %p77 = por %p75, %p76
    %p78 = scmp.ne.s32.totalorder %s70, %s72
    %p79 = scmp.eq.s32.totalorder %s20, 1
    %p80 = por %p78, %p79
    %p81 = scmp.ne.s32.totalorder %s72, %s73
    %p82 = scmp.eq.s32.totalorder %s20, 0
    %p83 = por %p81, %p82
    %p84 = scmp.ne.s32.totalorder %s72, %s73
    %p85 = scmp.eq.s32.totalorder %s21, 1
    %p86 = por %p84, %p85
    %p88 = scmp.ne.s32.totalorder %s73, %s87
    %p89 = scmp.eq.s32.totalorder %s21, 0
    %p90 = por %p88, %p89
    %s91 = ssub.s32 %s15, %s22
    %p92 = scmp.eq.s32.totalorder %s91, 0
    %s94 = sadd.s32 %s93, 1
    %s95 = scalar_select %p92, %s93, %s94
    %p98 = pneg %p92
    %p99 = scmp.eq.s32.totalorder %s15, 1
    %p100 = por %p98, %p99
    %p101 = scmp.ne.s32.totalorder %s93, %s96
    %p102 = scmp.eq.s32.totalorder %s15, 0
    %p103 = por %p101, %p102
    %p104 = scmp.ne.s32.totalorder %s93, %s96
    %p105 = scmp.eq.s32.totalorder %s20, 1
    %p106 = por %p104, %p105
    %p107 = scmp.ne.s32.totalorder %s96, %s97
    %p108 = scmp.eq.s32.totalorder %s20, 0
    %p109 = por %p107, %p108
    %p110 = scmp.ne.s32.totalorder %s96, %s97
    %p111 = scmp.eq.s32.totalorder %s21, 1
    %p112 = por %p110, %p111
    %p114 = scmp.ne.s32.totalorder %s97, %s113
    %p115 = scmp.eq.s32.totalorder %s21, 0
    %p116 = por %p114, %p115
    %s117 = ssub.s32 %s15, %s22
    %p118 = scmp.eq.s32.totalorder %s117, 0
    %s120 = sadd.s32 %s119, 1
    %s121 = scalar_select %p118, %s119, %s120
    %p124 = pneg %p118
    %p125 = scmp.eq.s32.totalorder %s15, 1
    %p126 = por %p124, %p125
    %p127 = scmp.ne.s32.totalorder %s119, %s122
    %p128 = scmp.eq.s32.totalorder %s15, 0
    %p129 = por %p127, %p128
    %p130 = scmp.ne.s32.totalorder %s119, %s122
    %p131 = scmp.eq.s32.totalorder %s20, 1
    %p132 = por %p130, %p131
    %p133 = scmp.ne.s32.totalorder %s122, %s123
    %p134 = scmp.eq.s32.totalorder %s20, 0
    %p135 = por %p133, %p134
    %p136 = scmp.ne.s32.totalorder %s122, %s123
    %p137 = scmp.eq.s32.totalorder %s21, 1
    %p138 = por %p136, %p137
    %p140 = scmp.ne.s32.totalorder %s123, %s139
    %p141 = scmp.eq.s32.totalorder %s21, 0
    %p142 = por %p140, %p141
    %s143 = ssub.s32 %s15, %s22
    %p144 = scmp.eq.s32.totalorder %s143, 0
    %s146 = sadd.s32 %s145, 1
    %s147 = scalar_select %p144, %s145, %s146
    %p150 = pneg %p144
    %p151 = scmp.eq.s32.totalorder %s15, 1
    %p152 = por %p150, %p151
    %p153 = scmp.ne.s32.totalorder %s145, %s148
    %p154 = scmp.eq.s32.totalorder %s15, 0
    %p155 = por %p153, %p154
    %p156 = scmp.ne.s32.totalorder %s145, %s148
    %p157 = scmp.eq.s32.totalorder %s20, 1
    %p158 = por %p156, %p157
    %p159 = scmp.ne.s32.totalorder %s148, %s149
    %p160 = scmp.eq.s32.totalorder %s20, 0
    %p161 = por %p159, %p160
    %p162 = scmp.ne.s32.totalorder %s148, %s149
    %p163 = scmp.eq.s32.totalorder %s21, 1
    %p164 = por %p162, %p163
    %p166 = scmp.ne.s32.totalorder %s149, %s165
    %p167 = scmp.eq.s32.totalorder %s21, 0
    %p168 = por %p166, %p167
    %s169 = ssub.s32 %s15, %s22
    %p170 = scmp.eq.s32.totalorder %s169, 0
    %s172 = sadd.s32 %s171, 1
    %s173 = scalar_select %p170, %s171, %s172
    %p176 = pneg %p170
    %p177 = scmp.eq.s32.totalorder %s15, 1
    %p178 = por %p176, %p177
    %p179 = scmp.ne.s32.totalorder %s171, %s174
    %p180 = scmp.eq.s32.totalorder %s15, 0
    %p181 = por %p179, %p180
    %p182 = scmp.ne.s32.totalorder %s171, %s174
    %p183 = scmp.eq.s32.totalorder %s20, 1
    %p184 = por %p182, %p183
    %p185 = scmp.ne.s32.totalorder %s174, %s175
    %p186 = scmp.eq.s32.totalorder %s20, 0
    %p187 = por %p185, %p186
    %p188 = scmp.ne.s32.totalorder %s174, %s175
    %p189 = scmp.eq.s32.totalorder %s21, 1
    %p190 = por %p188, %p189
    %p192 = scmp.ne.s32.totalorder %s175, %s191
    %p193 = scmp.eq.s32.totalorder %s21, 0
    %p194 = por %p192, %p193
    %s195 = ssub.s32 %s15, %s22
    %p196 = scmp.eq.s32.totalorder %s195, 0
    %s198 = sadd.s32 %s197, 1
    %s199 = scalar_select %p196, %s197, %s198
    %p202 = pneg %p196
    %p203 = scmp.eq.s32.totalorder %s15, 1
    %p204 = por %p202, %p203
    %p205 = scmp.ne.s32.totalorder %s197, %s200
    %p206 = scmp.eq.s32.totalorder %s15, 0
    %p207 = por %p205, %p206
    %p208 = scmp.ne.s32.totalorder %s197, %s200
    %p209 = scmp.eq.s32.totalorder %s20, 1
    %p210 = por %p208, %p209
    %p211 = scmp.ne.s32.totalorder %s200, %s201
    %p212 = scmp.eq.s32.totalorder %s20, 0
    %p213 = por %p211, %p212
    %p214 = scmp.ne.s32.totalorder %s200, %s201
    %p215 = scmp.eq.s32.totalorder %s21, 1
    %p216 = por %p214, %p215
    %p218 = scmp.ne.s32.totalorder %s201, %s217
    %p219 = scmp.eq.s32.totalorder %s21, 0
    %p220 = por %p218, %p219
    %s221 = ssub.s32 %s15, %s22
    %p222 = scmp.eq.s32.totalorder %s221, 0
    %s224 = sadd.s32 %s223, 1
    %s225 = scalar_select %p222, %s223, %s224
    %p228 = pneg %p222
    %p229 = scmp.eq.s32.totalorder %s15, 1
    %p230 = por %p228, %p229
    %p231 = scmp.ne.s32.totalorder %s223, %s226
    %p232 = scmp.eq.s32.totalorder %s15, 0
    %p233 = por %p231, %p232
    %p234 = scmp.ne.s32.totalorder %s223, %s226
    %p235 = scmp.eq.s32.totalorder %s20, 1
    %p236 = por %p234, %p235
    %p237 = scmp.ne.s32.totalorder %s226, %s227
    %p238 = scmp.eq.s32.totalorder %s20, 0
    %p239 = por %p237, %p238
    %p240 = scmp.ne.s32.totalorder %s226, %s227
    %p241 = scmp.eq.s32.totalorder %s21, 1
    %p242 = por %p240, %p241
    %p244 = scmp.ne.s32.totalorder %s227, %s243
    %p245 = scmp.eq.s32.totalorder %s21, 0
    %p246 = por %p244, %p245
    %p247 = scmp.le.s32.totalorder 1, %s15
    %p248 = scmp.lt.s32.totalorder %s15, 3
    %p249 = pnand %p247, %p248
    %p250 = pneg %p249
    // Predicated region
    $region9: #{basic_block_forward.3} parent=5 // pred_check
      _
    $region10: #{basic_block_forward.3} parent=5 // pred_check_branch
      %252 = sbr.rel (%p249) target = $region12
    $region11: #{basic_block_forward.3} parent=5 // pred_region
      %s253 = ssub.s32 %s15, 1
      // Predicated region
      $region13: #{basic_block_forward.3} parent=11 // pred_check
        %p254 = pneg %p62
      $region14: #{basic_block_forward.3} parent=11 // pred_check_branch
        %256 = sbr.rel (%p254) target = $region16
      $region15: #{basic_block_forward.3} parent=11 // pred_region
        _
      $region16: #{basic_block_forward.3} parent=11 // pred_fallthru
        _
      // Predicated region
      $region17: #{basic_block_forward.3} parent=11 // pred_check
        %p257 = pneg %p83
      $region18: #{basic_block_forward.3} parent=11 // pred_check_branch
        %259 = sbr.rel (%p257) target = $region20
      $region19: #{basic_block_forward.3} parent=11 // pred_region
        _
      $region20: #{basic_block_forward.3} parent=11 // pred_fallthru
        _
    $region12: #{basic_block_forward.3} parent=5 // pred_fallthru
      _
    %p260 = scmp.lt.s32.totalorder %s15, 2
    // Predicated region
    $region21: #{basic_block_forward.3} parent=5 // pred_check
      %p261 = pneg %p260
    $region22: #{basic_block_forward.3} parent=5 // pred_check_branch
      %263 = sbr.rel (%p261) target = $region24
    $region23: #{basic_block_forward.3} parent=5 // pred_region
      // Predicated region
      $region25: #{basic_block_forward.3} parent=23 // pred_check
        %p264 = pneg %p35
      $region26: #{basic_block_forward.3} parent=23 // pred_check_branch
        %266 = sbr.rel (%p264) target = $region28
      $region27: #{basic_block_forward.3} parent=23 // pred_region
        %p267 = scmp.lt.s32.totalorder %s15, 1
        %s268 = scalar_select %p267, %s15, 1
        %s269 = smul.addr %s268, 72
        %s270 = smul.addr %s269, 4
        %s271 = scalar_lea.vmem %s0, %s270
      $region28: #{basic_block_forward.3} parent=23 // pred_fallthru
        _
    $region24: #{basic_block_forward.3} parent=5 // pred_fallthru
      _
    %p272 = scmp.le.s32.totalorder 1, %s15
    %p273 = scmp.lt.s32.totalorder %s15, 3
    %p274 = pnand %p272, %p273
    %p275 = pneg %p274
    // Predicated region
    $region29: #{basic_block_forward.3} parent=5 // pred_check
      _
    $region30: #{basic_block_forward.3} parent=5 // pred_check_branch
      %277 = sbr.rel (%p274) target = $region32
    $region31: #{basic_block_forward.3} parent=5 // pred_region
      %s278 = ssub.s32 %s15, 1
      %p279 = scmp.lt.s32.totalorder %s20, 1
      %s280 = scalar_select %p279, %s20, 1
      %s281 = smul.addr %s280, 72
      %s282 = smul.addr %s281, 4
      %s283 = scalar_lea.vmem %s0, %s282
      %p284 = pneg %p41
      %p285 = pneg %p38
      %p286 = pneg %p62
      %p287 = pneg %p59
      %p288 = pneg %p83
      %p289 = pneg %p80
      %p290 = pneg %p109
      %p291 = pneg %p106
      %p292 = scmp.lt.s32.totalorder %s20, 1
      %s293 = scalar_select %p292, %s20, 1
      %s294 = smul.addr %s293, 8
      %s295 = smul.addr %s294, 4
      %s296 = scalar_lea.vmem %s3, %s295
      %p297 = pneg %p135
      %p298 = pneg %p132
      %p299 = scmp.lt.s32.totalorder %s20, 1
      %s300 = scalar_select %p299, %s20, 1
      %s301 = scalar_lea.vmem %s4, %s300
      %p302 = pneg %p161
      %p303 = pneg %p158
      %p304 = scmp.lt.s32.totalorder %s20, 1
      %s305 = scalar_select %p304, %s20, 1
      %s306 = scalar_lea.vmem %s5, %s305
      %p307 = pneg %p187
      %p308 = pneg %p184
      %p309 = scmp.lt.s32.totalorder %s20, 1
      %s310 = scalar_select %p309, %s20, 1
      %s311 = smul.addr %s310, 8
      %s312 = smul.addr %s311, 4
      %s313 = scalar_lea.vmem %s6, %s312
      %p314 = pneg %p213
      %p315 = pneg %p210
      %p316 = scmp.lt.s32.totalorder %s20, 1
      %s317 = scalar_select %p316, %s20, 1
      %s318 = scalar_lea.vmem %s7, %s317
      %p319 = pneg %p239
      %p320 = pneg %p236
      %p321 = scmp.lt.s32.totalorder %s20, 1
      %s322 = scalar_select %p321, %s20, 1
      %s323 = scalar_lea.vmem %s8, %s322
      %p324 = scmp.lt.s32.totalorder %s20, 1
      %s325 = scalar_select %p324, %s20, 1
      %s326 = smul.addr %s325, 72
      %s327 = smul.addr %s326, 4
      %s328 = scalar_lea.vmem %s0, %s327
      %p329 = scmp.lt.s32.totalorder %s20, 1
      %s330 = scalar_select %p329, %s20, 1
      %s331 = smul.addr %s330, 8
      %s332 = smul.addr %s331, 4
      %s333 = scalar_lea.vmem %s3, %s332
      %p334 = scmp.lt.s32.totalorder %s20, 1
      %s335 = scalar_select %p334, %s20, 1
      %s336 = scalar_lea.vmem %s4, %s335
      %p337 = scmp.lt.s32.totalorder %s20, 1
      %s338 = scalar_select %p337, %s20, 1
      %s339 = scalar_lea.vmem %s5, %s338
      %p340 = scmp.lt.s32.totalorder %s20, 1
      %s341 = scalar_select %p340, %s20, 1
      %s342 = smul.addr %s341, 8
      %s343 = smul.addr %s342, 4
      %s344 = scalar_lea.vmem %s6, %s343
      %p345 = scmp.lt.s32.totalorder %s20, 1
      %s346 = scalar_select %p345, %s20, 1
      %s347 = scalar_lea.vmem %s7, %s346
      %p348 = scmp.lt.s32.totalorder %s20, 1
      %s349 = scalar_select %p348, %s20, 1
      %s350 = scalar_lea.vmem %s8, %s349
      %v352 = vld [vmem:[%s328] sm:$0xf]
      %v353 = vld [vmem:[%s328 + $0x20] sm:$0xf]
      %v354 = vld [vmem:[%s328 + $0x40] sm:$0xf]
      %v355 = vld [vmem:[%s328 + $0x60] sm:$0xf]
      %v356 = vld [vmem:[%s328 + $0x80] sm:$0xf]
      %v357 = vld [vmem:[%s328 + $0xa0] sm:$0xf]
      %v358 = vld [vmem:[%s328 + $0xc0] sm:$0xf]
      %v359 = vld [vmem:[%s328 + $0xe0] sm:$0xf]
      %v360 = vld [vmem:[%s1] sm:$0xf]
      %v361 = vld [vmem:[%s1 + $0x4] sm:$0xf]
      %v362 = vld [vmem:[%s1 + $0x8] sm:$0xf]
      %v363 = vld [vmem:[%s1 + $0xc] sm:$0xf]
      %v364 = vld [vmem:[%s1 + $0x10] sm:$0xf]
      %v365 = vld [vmem:[%s1 + $0x14] sm:$0xf]
      %v366 = vld [vmem:[%s1 + $0x18] sm:$0xf]
      %v367 = vld [vmem:[%s1 + $0x1c] sm:$0xf]
      %v368 = vld [vmem:[%s1 + $0x20] sm:$0xf]
      %v369 = vld [vmem:[%s1 + $0x24] sm:$0xf]
      %v370 = vld [vmem:[%s1 + $0x28] sm:$0xf]
      %v371 = vld [vmem:[%s1 + $0x2c] sm:$0xf]
      %v372 = vld [vmem:[%s1 + $0x30] sm:$0xf]
      %v373 = vld [vmem:[%s1 + $0x34] sm:$0xf]
      %v374 = vld [vmem:[%s1 + $0x38] sm:$0xf]
      %v375 = vld [vmem:[%s1 + $0x3c] sm:$0xf]
      %v376 = vld [vmem:[%s328 + $0x4] sm:$0xf]
      %v377 = vld [vmem:[%s328 + $0x24] sm:$0xf]
      %v378 = vld [vmem:[%s328 + $0x44] sm:$0xf]
      %v379 = vld [vmem:[%s328 + $0x64] sm:$0xf]
      %v380 = vld [vmem:[%s328 + $0x84] sm:$0xf]
      %v381 = vld [vmem:[%s328 + $0xa4] sm:$0xf]
      %v382 = vld [vmem:[%s328 + $0xc4] sm:$0xf]
      %v383 = vld [vmem:[%s328 + $0xe4] sm:$0xf]
      %s384 = scalar_lea.vmem %s1, 64
      %v385 = vld [vmem:[%s384] sm:$0xf]
      %v386 = vld [vmem:[%s384 + $0x4] sm:$0xf]
      %v387 = vld [vmem:[%s384 + $0x8] sm:$0xf]
      %v388 = vld [vmem:[%s384 + $0xc] sm:$0xf]
      %v389 = vld [vmem:[%s384 + $0x10] sm:$0xf]
      %v390 = vld [vmem:[%s384 + $0x14] sm:$0xf]
      %v391 = vld [vmem:[%s384 + $0x18] sm:$0xf]
      %v392 = vld [vmem:[%s384 + $0x1c] sm:$0xf]
      %v393 = vld [vmem:[%s384 + $0x20] sm:$0xf]
      %v394 = vld [vmem:[%s384 + $0x24] sm:$0xf]
      %v395 = vld [vmem:[%s384 + $0x28] sm:$0xf]
      %v396 = vld [vmem:[%s384 + $0x2c] sm:$0xf]
      %v397 = vld [vmem:[%s384 + $0x30] sm:$0xf]
      %v398 = vld [vmem:[%s384 + $0x34] sm:$0xf]
      %v399 = vld [vmem:[%s384 + $0x38] sm:$0xf]
      %v400 = vld [vmem:[%s384 + $0x3c] sm:$0xf]
      %v409 = vunpack.c.l.b16 %v376
      %v410 = vunpack.c.l.b16 %v377
      %v411 = vunpack.c.l.b16 %v378
      %v412 = vunpack.c.l.b16 %v379
      %v413 = vunpack.c.l.b16 %v380
      %v414 = vunpack.c.l.b16 %v381
      %v415 = vunpack.c.l.b16 %v382
      %v416 = vunpack.c.l.b16 %v383
      %v417 = vpack.c.b16 %v410, %v409
      %v418 = vpack.c.b16 %v412, %v411
      %v419 = vpack.c.b16 %v414, %v413
      %v420 = vpack.c.b16 %v416, %v415
      %v441 = vunpack.c.l.b16 %v385
      %v442 = vunpack.c.l.b16 %v386
      %v443 = vunpack.c.l.b16 %v387
      %v444 = vunpack.c.l.b16 %v388
      %v445 = vunpack.c.l.b16 %v389
      %v446 = vunpack.c.l.b16 %v390
      %v447 = vunpack.c.l.b16 %v391
      %v448 = vunpack.c.l.b16 %v392
      %v449 = vunpack.c.l.b16 %v393
      %v450 = vunpack.c.l.b16 %v394
      %v451 = vunpack.c.l.b16 %v395
      %v452 = vunpack.c.l.b16 %v396
      %v453 = vunpack.c.l.b16 %v397
      %v454 = vunpack.c.l.b16 %v398
      %v455 = vunpack.c.l.b16 %v399
      %v456 = vunpack.c.l.b16 %v400
      %v457 = vpack.c.b16 %v442, %v441
      %v458 = vpack.c.b16 %v444, %v443
      %v459 = vpack.c.b16 %v446, %v445
      %v460 = vpack.c.b16 %v448, %v447
      %v461 = vpack.c.b16 %v450, %v449
      %v462 = vpack.c.b16 %v452, %v451
      %v463 = vpack.c.b16 %v454, %v453
      %v464 = vpack.c.b16 %v456, %v455
      %473 = vmatprep.subr.bf16.mxu0 0
      %474 = vmatpush1.bf16.msra.mxu0 %v464
      %475 = vmatprep.subr.bf16.mxu0 0
      %476 = vmatpush1.bf16.msra.mxu0 %v463
      %477 = vmatprep.subr.bf16.mxu0 0
      %478 = vmatpush1.bf16.msra.mxu0 %v462
      %479 = vmatprep.subr.bf16.mxu0 0
      %480 = vmatpush1.bf16.msra.mxu0 %v461
      %481 = vmatprep.subr.bf16.mxu0 0
      %482 = vmatpush1.bf16.msra.mxu0 %v460
      %483 = vmatprep.subr.bf16.mxu0 0
      %484 = vmatpush1.bf16.msra.mxu0 %v459
      %485 = vmatprep.subr.bf16.mxu0 0
      %486 = vmatpush1.bf16.msra.mxu0 %v458
      %487 = vmatprep.subr.bf16.mxu0 0
      %488 = vmatpush1.bf16.msra.mxu0 %v457
      %489 = vmatprep.subr.bf16.mxu0 0
      %490 = vmatpush2.bf16.msra.mxu0 0
      %491 = vmatprep.subr.bf16.mxu0 0
      %492 = vmatpush2.bf16.msra.mxu0 0
      %493 = vmatprep.subr.bf16.mxu0 0
      %494 = vmatpush2.bf16.msra.mxu0 0
      %495 = vmatprep.subr.bf16.mxu0 0
      %496 = vmatpush2.bf16.msra.mxu0 0
      %497 = vmatprep.subr.bf16.mxu0 0
      %498 = vmatpush2.bf16.msra.mxu0 0
      %499 = vmatprep.subr.bf16.mxu0 0
      %500 = vmatpush2.bf16.msra.mxu0 0
      %501 = vmatprep.subr.bf16.mxu0 0
      %502 = vmatpush2.bf16.msra.mxu0 0
      %503 = vmatprep.subr.bf16.mxu0 0
      %504 = vmatpush2.bf16.msra.mxu0 0
      %505 = vmatprep.mubr.bf16.mxu0 0
      %506 = vmatmul.mubr.bf16.gmra.mxu0 %v417
      %v507 = vpop.f32.mrf.mxu0
      %v508 = vadd.f32 0.0, %v507
      %v509 = vpop.f32.mrf.mxu0
      %v510 = vpop.f32.mrf.mxu0
      %v511 = vadd.f32 0.0, %v510
      %v512 = vpop.f32.mrf.mxu0
      %513 = vmatprep.mubr.bf16.mxu0 0
      %514 = vmatmul.mubr.bf16.gmra.mxu0 %v418
      %v515 = vpop.f32.mrf.mxu0
      %v516 = vadd.f32 0.0, %v515
      %v517 = vpop.f32.mrf.mxu0
      %v518 = vpop.f32.mrf.mxu0
      %v519 = vadd.f32 0.0, %v518
      %v520 = vpop.f32.mrf.mxu0
      %521 = vmatprep.mubr.bf16.mxu0 0
      %522 = vmatmul.mubr.bf16.gmra.mxu0 %v419
      %v523 = vpop.f32.mrf.mxu0
      %v524 = vadd.f32 0.0, %v523
      %v525 = vpop.f32.mrf.mxu0
      %v526 = vpop.f32.mrf.mxu0
      %v527 = vadd.f32 0.0, %v526
      %v528 = vpop.f32.mrf.mxu0
      %529 = vmatprep.mubr.bf16.mxu0 0
      %530 = vmatmul.mubr.bf16.gmra.mxu0 %v420
      %v531 = vpop.f32.mrf.mxu0
      %v532 = vadd.f32 0.0, %v531
      %v533 = vpop.f32.mrf.mxu0
      %v534 = vpop.f32.mrf.mxu0
      %v535 = vadd.f32 0.0, %v534
      %v536 = vpop.f32.mrf.mxu0
      %537 = vdwg.mxu0
      %v546 = vunpack.c.l.b16 %v352
      %v547 = vunpack.c.l.b16 %v353
      %v548 = vunpack.c.l.b16 %v354
      %v549 = vunpack.c.l.b16 %v355
      %v550 = vunpack.c.l.b16 %v356
      %v551 = vunpack.c.l.b16 %v357
      %v552 = vunpack.c.l.b16 %v358
      %v553 = vunpack.c.l.b16 %v359
      %v554 = vpack.c.b16 %v547, %v546
      %v555 = vpack.c.b16 %v549, %v548
      %v556 = vpack.c.b16 %v551, %v550
      %v557 = vpack.c.b16 %v553, %v552
      %v578 = vunpack.c.l.b16 %v360
      %v579 = vunpack.c.l.b16 %v361
      %v580 = vunpack.c.l.b16 %v362
      %v581 = vunpack.c.l.b16 %v363
      %v582 = vunpack.c.l.b16 %v364
      %v583 = vunpack.c.l.b16 %v365
      %v584 = vunpack.c.l.b16 %v366
      %v585 = vunpack.c.l.b16 %v367
      %v586 = vunpack.c.l.b16 %v368
      %v587 = vunpack.c.l.b16 %v369
      %v588 = vunpack.c.l.b16 %v370
      %v589 = vunpack.c.l.b16 %v371
      %v590 = vunpack.c.l.b16 %v372
      %v591 = vunpack.c.l.b16 %v373
      %v592 = vunpack.c.l.b16 %v374
      %v593 = vunpack.c.l.b16 %v375
      %v594 = vpack.c.b16 %v579, %v578
      %v595 = vpack.c.b16 %v581, %v580
      %v596 = vpack.c.b16 %v583, %v582
      %v597 = vpack.c.b16 %v585, %v584
      %v598 = vpack.c.b16 %v587, %v586
      %v599 = vpack.c.b16 %v589, %v588
      %v600 = vpack.c.b16 %v591, %v590
      %v601 = vpack.c.b16 %v593, %v592
      %610 = vmatprep.subr.bf16.mxu0 0
      %611 = vmatpush1.bf16.msra.mxu0 %v601
      %612 = vmatprep.subr.bf16.mxu0 0
      %613 = vmatpush1.bf16.msra.mxu0 %v600
      %614 = vmatprep.subr.bf16.mxu0 0
      %615 = vmatpush1.bf16.msra.mxu0 %v599
      %616 = vmatprep.subr.bf16.mxu0 0
      %617 = vmatpush1.bf16.msra.mxu0 %v598
      %618 = vmatprep.subr.bf16.mxu0 0
      %619 = vmatpush1.bf16.msra.mxu0 %v597
      %620 = vmatprep.subr.bf16.mxu0 0
      %621 = vmatpush1.bf16.msra.mxu0 %v596
      %622 = vmatprep.subr.bf16.mxu0 0
      %623 = vmatpush1.bf16.msra.mxu0 %v595
      %624 = vmatprep.subr.bf16.mxu0 0
      %625 = vmatpush1.bf16.msra.mxu0 %v594
      %626 = vmatprep.subr.bf16.mxu0 0
      %627 = vmatpush2.bf16.msra.mxu0 0
      %628 = vmatprep.subr.bf16.mxu0 0
      %629 = vmatpush2.bf16.msra.mxu0 0
      %630 = vmatprep.subr.bf16.mxu0 0
      %631 = vmatpush2.bf16.msra.mxu0 0
      %632 = vmatprep.subr.bf16.mxu0 0
      %633 = vmatpush2.bf16.msra.mxu0 0
      %634 = vmatprep.subr.bf16.mxu0 0
      %635 = vmatpush2.bf16.msra.mxu0 0
      %636 = vmatprep.subr.bf16.mxu0 0
      %637 = vmatpush2.bf16.msra.mxu0 0
      %638 = vmatprep.subr.bf16.mxu0 0
      %639 = vmatpush2.bf16.msra.mxu0 0
      %640 = vmatprep.subr.bf16.mxu0 0
      %641 = vmatpush2.bf16.msra.mxu0 0
      %642 = vmatprep.mubr.bf16.mxu0 0
      %643 = vmatmul.mubr.bf16.gmra.mxu0 %v554
      %v644 = vpop.f32.mrf.mxu0
      %v645 = vadd.f32 %v508, %v644
      %v646 = vpop.f32.mrf.mxu0
      %v647 = vpop.f32.mrf.mxu0
      %v648 = vadd.f32 %v511, %v647
      %v649 = vpop.f32.mrf.mxu0
      %650 = vmatprep.mubr.bf16.mxu0 0
      %651 = vmatmul.mubr.bf16.gmra.mxu0 %v555
      %v652 = vpop.f32.mrf.mxu0
      %v653 = vadd.f32 %v516, %v652
      %v654 = vpop.f32.mrf.mxu0
      %v655 = vpop.f32.mrf.mxu0
      %v656 = vadd.f32 %v519, %v655
      %v657 = vpop.f32.mrf.mxu0
      %658 = vmatprep.mubr.bf16.mxu0 0
      %659 = vmatmul.mubr.bf16.gmra.mxu0 %v556
      %v660 = vpop.f32.mrf.mxu0
      %v661 = vadd.f32 %v524, %v660
      %v662 = vpop.f32.mrf.mxu0
      %v663 = vpop.f32.mrf.mxu0
      %v664 = vadd.f32 %v527, %v663
      %v665 = vpop.f32.mrf.mxu0
      %666 = vmatprep.mubr.bf16.mxu0 0
      %667 = vmatmul.mubr.bf16.gmra.mxu0 %v557
      %v668 = vpop.f32.mrf.mxu0
      %v669 = vadd.f32 %v532, %v668
      %v670 = vpop.f32.mrf.mxu0
      %v671 = vpop.f32.mrf.mxu0
      %v672 = vadd.f32 %v535, %v671
      %v673 = vpop.f32.mrf.mxu0
      %674 = vdwg.mxu0
      %v675 = vld [vmem:[%s328] sm:$0xf]
      %v676 = vld [vmem:[%s328 + $0x10] sm:$0x1]
      %v677 = vld [vmem:[%s328 + $0x20] sm:$0xf]
      %v678 = vld [vmem:[%s328 + $0x30] sm:$0x1]
      %v679 = vld [vmem:[%s328 + $0x40] sm:$0xf]
      %v680 = vld [vmem:[%s328 + $0x50] sm:$0x1]
      %v681 = vld [vmem:[%s328 + $0x60] sm:$0xf]
      %v682 = vld [vmem:[%s328 + $0x70] sm:$0x1]
      %v683 = vld [vmem:[%s328 + $0x80] sm:$0xf]
      %v684 = vld [vmem:[%s328 + $0x90] sm:$0x1]
      %v685 = vld [vmem:[%s328 + $0xa0] sm:$0xf]
      %v686 = vld [vmem:[%s328 + $0xb0] sm:$0x1]
      %v687 = vld [vmem:[%s328 + $0xc0] sm:$0xf]
      %v688 = vld [vmem:[%s328 + $0xd0] sm:$0x1]
      %v689 = vld [vmem:[%s328 + $0xe0] sm:$0xf]
      %v690 = vld [vmem:[%s328 + $0xf0] sm:$0x1]
      %vm691 = vsmask.f32 3328
      %vm692 = vsmask.f32 7440
      %vm693 = vmor %vm691, %vm692
      %v695 = vshrl.u32 %v675, 16
      %v697 = vrot.slane %v695, 4
      %v698 = vshll.u32 %v675, 16
      %v700 = vrot.slane %v698, 5
      %v701 = vor.u32 %v697, %v700
      %v702 = vrot.slane %v701, 4
      %v704 = vshll.u32 %v676, 16
      %v706 = vrot.slane %v704, 5
      %v707 = vsel %vm693, %v702, %v706
      %v709 = vshrl.u32 %v677, 16
      %v711 = vrot.slane %v709, 4
      %v712 = vshll.u32 %v677, 16
      %v714 = vrot.slane %v712, 5
      %v715 = vor.u32 %v711, %v714
      %v716 = vrot.slane %v715, 4
      %v718 = vshll.u32 %v678, 16
      %v720 = vrot.slane %v718, 5
      %v721 = vsel %vm693, %v716, %v720
      %v723 = vshrl.u32 %v679, 16
      %v725 = vrot.slane %v723, 4
      %v726 = vshll.u32 %v679, 16
      %v728 = vrot.slane %v726, 5
      %v729 = vor.u32 %v725, %v728
      %v730 = vrot.slane %v729, 4
      %v732 = vshll.u32 %v680, 16
      %v734 = vrot.slane %v732, 5
      %v735 = vsel %vm693, %v730, %v734
      %v737 = vshrl.u32 %v681, 16
      %v739 = vrot.slane %v737, 4
      %v740 = vshll.u32 %v681, 16
      %v742 = vrot.slane %v740, 5
      %v743 = vor.u32 %v739, %v742
      %v744 = vrot.slane %v743, 4
      %v746 = vshll.u32 %v682, 16
      %v748 = vrot.slane %v746, 5
      %v749 = vsel %vm693, %v744, %v748
      %v751 = vshrl.u32 %v683, 16
      %v753 = vrot.slane %v751, 4
      %v754 = vshll.u32 %v683, 16
      %v756 = vrot.slane %v754, 5
      %v757 = vor.u32 %v753, %v756
      %v758 = vrot.slane %v757, 4
      %v760 = vshll.u32 %v684, 16
      %v762 = vrot.slane %v760, 5
      %v763 = vsel %vm693, %v758, %v762
      %v765 = vshrl.u32 %v685, 16
      %v767 = vrot.slane %v765, 4
      %v768 = vshll.u32 %v685, 16
      %v770 = vrot.slane %v768, 5
      %v771 = vor.u32 %v767, %v770
      %v772 = vrot.slane %v771, 4
      %v774 = vshll.u32 %v686, 16
      %v776 = vrot.slane %v774, 5
      %v777 = vsel %vm693, %v772, %v776
      %v779 = vshrl.u32 %v687, 16
      %v781 = vrot.slane %v779, 4
      %v782 = vshll.u32 %v687, 16
      %v784 = vrot.slane %v782, 5
      %v785 = vor.u32 %v781, %v784
      %v786 = vrot.slane %v785, 4
      %v788 = vshll.u32 %v688, 16
      %v790 = vrot.slane %v788, 5
      %v791 = vsel %vm693, %v786, %v790
      %v793 = vshrl.u32 %v689, 16
      %v795 = vrot.slane %v793, 4
      %v796 = vshll.u32 %v689, 16
      %v798 = vrot.slane %v796, 5
      %v799 = vor.u32 %v795, %v798
      %v800 = vrot.slane %v799, 4
      %v802 = vshll.u32 %v690, 16
      %v804 = vrot.slane %v802, 5
      %v805 = vsel %vm693, %v800, %v804
      %s806 = scalar_lea.vmem %s1, 128
      %v807 = vld [vmem:[%s806] sm:$0xf]
      %v808 = vld [vmem:[%s806 + $0x4] sm:$0xf]
      %v809 = vld [vmem:[%s806 + $0x8] sm:$0xf]
      %v810 = vld [vmem:[%s806 + $0xc] sm:$0xf]
      %v811 = vld [vmem:[%s806 + $0x10] sm:$0xf]
      %v812 = vld [vmem:[%s806 + $0x14] sm:$0xf]
      %v813 = vld [vmem:[%s806 + $0x18] sm:$0xf]
      %v814 = vld [vmem:[%s806 + $0x1c] sm:$0xf]
      %v815 = vld [vmem:[%s806 + $0x20] sm:$0xf]
      %v816 = vld [vmem:[%s806 + $0x24] sm:$0xf]
      %v817 = vld [vmem:[%s806 + $0x28] sm:$0xf]
      %v818 = vld [vmem:[%s806 + $0x2c] sm:$0xf]
      %v819 = vld [vmem:[%s806 + $0x30] sm:$0xf]
      %v820 = vld [vmem:[%s806 + $0x34] sm:$0xf]
      %v821 = vld [vmem:[%s806 + $0x38] sm:$0xf]
      %v822 = vld [vmem:[%s806 + $0x3c] sm:$0xf]
      %v823 = vunpack.c.l.b16 %v707
      %v824 = vunpack.c.l.b16 %v721
      %v825 = vunpack.c.l.b16 %v735
      %v826 = vunpack.c.l.b16 %v749
      %v827 = vunpack.c.l.b16 %v763
      %v828 = vunpack.c.l.b16 %v777
      %v829 = vunpack.c.l.b16 %v791
      %v830 = vunpack.c.l.b16 %v805
      %v831 = vpack.c.b16 %v824, %v823
      %v832 = vpack.c.b16 %v826, %v825
      %v833 = vpack.c.b16 %v828, %v827
      %v834 = vpack.c.b16 %v830, %v829
      %v855 = vunpack.c.l.b16 %v807
      %v856 = vunpack.c.l.b16 %v808
      %v857 = vunpack.c.l.b16 %v809
      %v858 = vunpack.c.l.b16 %v810
      %v859 = vunpack.c.l.b16 %v811
      %v860 = vunpack.c.l.b16 %v812
      %v861 = vunpack.c.l.b16 %v813
      %v862 = vunpack.c.l.b16 %v814
      %v863 = vunpack.c.l.b16 %v815
      %v864 = vunpack.c.l.b16 %v816
      %v865 = vunpack.c.l.b16 %v817
      %v866 = vunpack.c.l.b16 %v818
      %v867 = vunpack.c.l.b16 %v819
      %v868 = vunpack.c.l.b16 %v820
      %v869 = vunpack.c.l.b16 %v821
      %v870 = vunpack.c.l.b16 %v822
      %v871 = vpack.c.b16 %v856, %v855
      %v872 = vpack.c.b16 %v858, %v857
      %v873 = vpack.c.b16 %v860, %v859
      %v874 = vpack.c.b16 %v862, %v861
      %v875 = vpack.c.b16 %v864, %v863
      %v876 = vpack.c.b16 %v866, %v865
      %v877 = vpack.c.b16 %v868, %v867
      %v878 = vpack.c.b16 %v870, %v869
      %887 = vmatprep.subr.bf16.mxu0 0
      %888 = vmatpush1.bf16.msra.mxu0 %v878
      %889 = vmatprep.subr.bf16.mxu0 0
      %890 = vmatpush1.bf16.msra.mxu0 %v877
      %891 = vmatprep.subr.bf16.mxu0 0
      %892 = vmatpush1.bf16.msra.mxu0 %v876
      %893 = vmatprep.subr.bf16.mxu0 0
      %894 = vmatpush1.bf16.msra.mxu0 %v875
      %895 = vmatprep.subr.bf16.mxu0 0
      %896 = vmatpush1.bf16.msra.mxu0 %v874
      %897 = vmatprep.subr.bf16.mxu0 0
      %898 = vmatpush1.bf16.msra.mxu0 %v873
      %899 = vmatprep.subr.bf16.mxu0 0
      %900 = vmatpush1.bf16.msra.mxu0 %v872
      %901 = vmatprep.subr.bf16.mxu0 0
      %902 = vmatpush1.bf16.msra.mxu0 %v871
      %903 = vmatprep.subr.bf16.mxu0 0
      %904 = vmatpush2.bf16.msra.mxu0 0
      %905 = vmatprep.subr.bf16.mxu0 0
      %906 = vmatpush2.bf16.msra.mxu0 0
      %907 = vmatprep.subr.bf16.mxu0 0
      %908 = vmatpush2.bf16.msra.mxu0 0
      %909 = vmatprep.subr.bf16.mxu0 0
      %910 = vmatpush2.bf16.msra.mxu0 0
      %911 = vmatprep.subr.bf16.mxu0 0
      %912 = vmatpush2.bf16.msra.mxu0 0
      %913 = vmatprep.subr.bf16.mxu0 0
      %914 = vmatpush2.bf16.msra.mxu0 0
      %915 = vmatprep.subr.bf16.mxu0 0
      %916 = vmatpush2.bf16.msra.mxu0 0
      %917 = vmatprep.subr.bf16.mxu0 0
      %918 = vmatpush2.bf16.msra.mxu0 0
      %919 = vmatprep.mubr.bf16.mxu0 0
      %920 = vmatmul.mubr.bf16.gmra.mxu0 %v831
      %v921 = vpop.f32.mrf.mxu0
      %v922 = vadd.f32 0.0, %v921
      %v923 = vpop.f32.mrf.mxu0
      %v924 = vpop.f32.mrf.mxu0
      %v925 = vadd.f32 0.0, %v924
      %v926 = vpop.f32.mrf.mxu0
      %927 = vmatprep.mubr.bf16.mxu0 0
      %928 = vmatmul.mubr.bf16.gmra.mxu0 %v832
      %v929 = vpop.f32.mrf.mxu0
      %v930 = vadd.f32 0.0, %v929
      %v931 = vpop.f32.mrf.mxu0
      %v932 = vpop.f32.mrf.mxu0
      %v933 = vadd.f32 0.0, %v932
      %v934 = vpop.f32.mrf.mxu0
      %935 = vmatprep.mubr.bf16.mxu0 0
      %936 = vmatmul.mubr.bf16.gmra.mxu0 %v833
      %v937 = vpop.f32.mrf.mxu0
      %v938 = vadd.f32 0.0, %v937
      %v939 = vpop.f32.mrf.mxu0
      %v940 = vpop.f32.mrf.mxu0
      %v941 = vadd.f32 0.0, %v940
      %v942 = vpop.f32.mrf.mxu0
      %943 = vmatprep.mubr.bf16.mxu0 0
      %944 = vmatmul.mubr.bf16.gmra.mxu0 %v834
      %v945 = vpop.f32.mrf.mxu0
      %v946 = vadd.f32 0.0, %v945
      %v947 = vpop.f32.mrf.mxu0
      %v948 = vpop.f32.mrf.mxu0
      %v949 = vadd.f32 0.0, %v948
      %v950 = vpop.f32.mrf.mxu0
      %951 = vdwg.mxu0
      %v952 = vadd.f32 %v645, %v922
      %v953 = vadd.f32 %v648, %v925
      %v954 = vadd.f32 %v653, %v930
      %v955 = vadd.f32 %v656, %v933
      %v956 = vadd.f32 %v661, %v938
      %v957 = vadd.f32 %v664, %v941
      %v958 = vadd.f32 %v669, %v946
      %v959 = vadd.f32 %v672, %v949
      %v960 = vld [vmem:[%s328 + $0x8] sm:$0xf]
      %v961 = vld [vmem:[%s328 + $0x28] sm:$0xf]
      %v962 = vld [vmem:[%s328 + $0x48] sm:$0xf]
      %v963 = vld [vmem:[%s328 + $0x68] sm:$0xf]
      %v964 = vld [vmem:[%s328 + $0x88] sm:$0xf]
      %v965 = vld [vmem:[%s328 + $0xa8] sm:$0xf]
      %v966 = vld [vmem:[%s328 + $0xc8] sm:$0xf]
      %v967 = vld [vmem:[%s328 + $0xe8] sm:$0xf]
      %s968 = scalar_lea.vmem %s1, 192
      %v969 = vld [vmem:[%s968] sm:$0xf]
      %v970 = vld [vmem:[%s968 + $0x4] sm:$0xf]
      %v971 = vld [vmem:[%s968 + $0x8] sm:$0xf]
      %v972 = vld [vmem:[%s968 + $0xc] sm:$0xf]
      %v973 = vld [vmem:[%s968 + $0x10] sm:$0xf]
      %v974 = vld [vmem:[%s968 + $0x14] sm:$0xf]
      %v975 = vld [vmem:[%s968 + $0x18] sm:$0xf]
      %v976 = vld [vmem:[%s968 + $0x1c] sm:$0xf]
      %v977 = vld [vmem:[%s968 + $0x20] sm:$0xf]
      %v978 = vld [vmem:[%s968 + $0x24] sm:$0xf]
      %v979 = vld [vmem:[%s968 + $0x28] sm:$0xf]
      %v980 = vld [vmem:[%s968 + $0x2c] sm:$0xf]
      %v981 = vld [vmem:[%s968 + $0x30] sm:$0xf]
      %v982 = vld [vmem:[%s968 + $0x34] sm:$0xf]
      %v983 = vld [vmem:[%s968 + $0x38] sm:$0xf]
      %v984 = vld [vmem:[%s968 + $0x3c] sm:$0xf]
      %v993 = vunpack.c.l.b16 %v960
      %v994 = vunpack.c.l.b16 %v961
      %v995 = vunpack.c.l.b16 %v962
      %v996 = vunpack.c.l.b16 %v963
      %v997 = vunpack.c.l.b16 %v964
      %v998 = vunpack.c.l.b16 %v965
      %v999 = vunpack.c.l.b16 %v966
      %v1000 = vunpack.c.l.b16 %v967
      %v1001 = vpack.c.b16 %v994, %v993
      %v1002 = vpack.c.b16 %v996, %v995
      %v1003 = vpack.c.b16 %v998, %v997
      %v1004 = vpack.c.b16 %v1000, %v999
      %v1025 = vunpack.c.l.b16 %v969
      %v1026 = vunpack.c.l.b16 %v970
      %v1027 = vunpack.c.l.b16 %v971
      %v1028 = vunpack.c.l.b16 %v972
      %v1029 = vunpack.c.l.b16 %v973
      %v1030 = vunpack.c.l.b16 %v974
      %v1031 = vunpack.c.l.b16 %v975
      %v1032 = vunpack.c.l.b16 %v976
      %v1033 = vunpack.c.l.b16 %v977
      %v1034 = vunpack.c.l.b16 %v978
      %v1035 = vunpack.c.l.b16 %v979
      %v1036 = vunpack.c.l.b16 %v980
      %v1037 = vunpack.c.l.b16 %v981
      %v1038 = vunpack.c.l.b16 %v982
      %v1039 = vunpack.c.l.b16 %v983
      %v1040 = vunpack.c.l.b16 %v984
      %v1041 = vpack.c.b16 %v1026, %v1025
      %v1042 = vpack.c.b16 %v1028, %v1027
      %v1043 = vpack.c.b16 %v1030, %v1029
      %v1044 = vpack.c.b16 %v1032, %v1031
      %v1045 = vpack.c.b16 %v1034, %v1033
      %v1046 = vpack.c.b16 %v1036, %v1035
      %v1047 = vpack.c.b16 %v1038, %v1037
      %v1048 = vpack.c.b16 %v1040, %v1039
      %1057 = vmatprep.subr.bf16.mxu0 0
      %1058 = vmatpush1.bf16.msra.mxu0 %v1048
      %1059 = vmatprep.subr.bf16.mxu0 0
      %1060 = vmatpush1.bf16.msra.mxu0 %v1047
      %1061 = vmatprep.subr.bf16.mxu0 0
      %1062 = vmatpush1.bf16.msra.mxu0 %v1046
      %1063 = vmatprep.subr.bf16.mxu0 0
      %1064 = vmatpush1.bf16.msra.mxu0 %v1045
      %1065 = vmatprep.subr.bf16.mxu0 0
      %1066 = vmatpush1.bf16.msra.mxu0 %v1044
      %1067 = vmatprep.subr.bf16.mxu0 0
      %1068 = vmatpush1.bf16.msra.mxu0 %v1043
      %1069 = vmatprep.subr.bf16.mxu0 0
      %1070 = vmatpush1.bf16.msra.mxu0 %v1042
      %1071 = vmatprep.subr.bf16.mxu0 0
      %1072 = vmatpush1.bf16.msra.mxu0 %v1041
      %1073 = vmatprep.subr.bf16.mxu0 0
      %1074 = vmatpush2.bf16.msra.mxu0 0
      %1075 = vmatprep.subr.bf16.mxu0 0
      %1076 = vmatpush2.bf16.msra.mxu0 0
      %1077 = vmatprep.subr.bf16.mxu0 0
      %1078 = vmatpush2.bf16.msra.mxu0 0
      %1079 = vmatprep.subr.bf16.mxu0 0
      %1080 = vmatpush2.bf16.msra.mxu0 0
      %1081 = vmatprep.subr.bf16.mxu0 0
      %1082 = vmatpush2.bf16.msra.mxu0 0
      %1083 = vmatprep.subr.bf16.mxu0 0
      %1084 = vmatpush2.bf16.msra.mxu0 0
      %1085 = vmatprep.subr.bf16.mxu0 0
      %1086 = vmatpush2.bf16.msra.mxu0 0
      %1087 = vmatprep.subr.bf16.mxu0 0
      %1088 = vmatpush2.bf16.msra.mxu0 0
      %1089 = vmatprep.mubr.bf16.mxu0 0
      %1090 = vmatmul.mubr.bf16.gmra.mxu0 %v1001
      %v1091 = vpop.f32.mrf.mxu0
      %v1092 = vadd.f32 0.0, %v1091
      %v1093 = vpop.f32.mrf.mxu0
      %v1094 = vpop.f32.mrf.mxu0
      %v1095 = vadd.f32 0.0, %v1094
      %v1096 = vpop.f32.mrf.mxu0
      %1097 = vmatprep.mubr.bf16.mxu0 0
      %1098 = vmatmul.mubr.bf16.gmra.mxu0 %v1002
      %v1099 = vpop.f32.mrf.mxu0
      %v1100 = vadd.f32 0.0, %v1099
      %v1101 = vpop.f32.mrf.mxu0
      %v1102 = vpop.f32.mrf.mxu0
      %v1103 = vadd.f32 0.0, %v1102
      %v1104 = vpop.f32.mrf.mxu0
      %1105 = vmatprep.mubr.bf16.mxu0 0
      %1106 = vmatmul.mubr.bf16.gmra.mxu0 %v1003
      %v1107 = vpop.f32.mrf.mxu0
      %v1108 = vadd.f32 0.0, %v1107
      %v1109 = vpop.f32.mrf.mxu0
      %v1110 = vpop.f32.mrf.mxu0
      %v1111 = vadd.f32 0.0, %v1110
      %v1112 = vpop.f32.mrf.mxu0
      %1113 = vmatprep.mubr.bf16.mxu0 0
      %1114 = vmatmul.mubr.bf16.gmra.mxu0 %v1004
      %v1115 = vpop.f32.mrf.mxu0
      %v1116 = vadd.f32 0.0, %v1115
      %v1117 = vpop.f32.mrf.mxu0
      %v1118 = vpop.f32.mrf.mxu0
      %v1119 = vadd.f32 0.0, %v1118
      %v1120 = vpop.f32.mrf.mxu0
      %1121 = vdwg.mxu0
      %v1122 = vadd.f32 %v952, %v1092
      %v1123 = vadd.f32 %v953, %v1095
      %v1124 = vadd.f32 %v954, %v1100
      %v1125 = vadd.f32 %v955, %v1103
      %v1126 = vadd.f32 %v956, %v1108
      %v1127 = vadd.f32 %v957, %v1111
      %v1128 = vadd.f32 %v958, %v1116
      %v1129 = vadd.f32 %v959, %v1119
      %v1130 = vld [vmem:[%s328 + $0xc] sm:$0xf]
      %v1131 = vld [vmem:[%s328 + $0x2c] sm:$0xf]
      %v1132 = vld [vmem:[%s328 + $0x4c] sm:$0xf]
      %v1133 = vld [vmem:[%s328 + $0x6c] sm:$0xf]
      %v1134 = vld [vmem:[%s328 + $0x8c] sm:$0xf]
      %v1135 = vld [vmem:[%s328 + $0xac] sm:$0xf]
      %v1136 = vld [vmem:[%s328 + $0xcc] sm:$0xf]
      %v1137 = vld [vmem:[%s328 + $0xec] sm:$0xf]
      %s1138 = scalar_lea.vmem %s1, 256
      %v1139 = vld [vmem:[%s1138] sm:$0xf]
      %v1140 = vld [vmem:[%s1138 + $0x4] sm:$0xf]
      %v1141 = vld [vmem:[%s1138 + $0x8] sm:$0xf]
      %v1142 = vld [vmem:[%s1138 + $0xc] sm:$0xf]
      %v1143 = vld [vmem:[%s1138 + $0x10] sm:$0xf]
      %v1144 = vld [vmem:[%s1138 + $0x14] sm:$0xf]
      %v1145 = vld [vmem:[%s1138 + $0x18] sm:$0xf]
      %v1146 = vld [vmem:[%s1138 + $0x1c] sm:$0xf]
      %v1147 = vld [vmem:[%s1138 + $0x20] sm:$0xf]
      %v1148 = vld [vmem:[%s1138 + $0x24] sm:$0xf]
      %v1149 = vld [vmem:[%s1138 + $0x28] sm:$0xf]
      %v1150 = vld [vmem:[%s1138 + $0x2c] sm:$0xf]
      %v1151 = vld [vmem:[%s1138 + $0x30] sm:$0xf]
      %v1152 = vld [vmem:[%s1138 + $0x34] sm:$0xf]
      %v1153 = vld [vmem:[%s1138 + $0x38] sm:$0xf]
      %v1154 = vld [vmem:[%s1138 + $0x3c] sm:$0xf]
      %v1163 = vunpack.c.l.b16 %v1130
      %v1164 = vunpack.c.l.b16 %v1131
      %v1165 = vunpack.c.l.b16 %v1132
      %v1166 = vunpack.c.l.b16 %v1133
      %v1167 = vunpack.c.l.b16 %v1134
      %v1168 = vunpack.c.l.b16 %v1135
      %v1169 = vunpack.c.l.b16 %v1136
      %v1170 = vunpack.c.l.b16 %v1137
      %v1171 = vpack.c.b16 %v1164, %v1163
      %v1172 = vpack.c.b16 %v1166, %v1165
      %v1173 = vpack.c.b16 %v1168, %v1167
      %v1174 = vpack.c.b16 %v1170, %v1169
      %v1195 = vunpack.c.l.b16 %v1139
      %v1196 = vunpack.c.l.b16 %v1140
      %v1197 = vunpack.c.l.b16 %v1141
      %v1198 = vunpack.c.l.b16 %v1142
      %v1199 = vunpack.c.l.b16 %v1143
      %v1200 = vunpack.c.l.b16 %v1144
      %v1201 = vunpack.c.l.b16 %v1145
      %v1202 = vunpack.c.l.b16 %v1146
      %v1203 = vunpack.c.l.b16 %v1147
      %v1204 = vunpack.c.l.b16 %v1148
      %v1205 = vunpack.c.l.b16 %v1149
      %v1206 = vunpack.c.l.b16 %v1150
      %v1207 = vunpack.c.l.b16 %v1151
      %v1208 = vunpack.c.l.b16 %v1152
      %v1209 = vunpack.c.l.b16 %v1153
      %v1210 = vunpack.c.l.b16 %v1154
      %v1211 = vpack.c.b16 %v1196, %v1195
      %v1212 = vpack.c.b16 %v1198, %v1197
      %v1213 = vpack.c.b16 %v1200, %v1199
      %v1214 = vpack.c.b16 %v1202, %v1201
      %v1215 = vpack.c.b16 %v1204, %v1203
      %v1216 = vpack.c.b16 %v1206, %v1205
      %v1217 = vpack.c.b16 %v1208, %v1207
      %v1218 = vpack.c.b16 %v1210, %v1209
      %1227 = vmatprep.subr.bf16.mxu0 0
      %1228 = vmatpush1.bf16.msra.mxu0 %v1218
      %1229 = vmatprep.subr.bf16.mxu0 0
      %1230 = vmatpush1.bf16.msra.mxu0 %v1217
      %1231 = vmatprep.subr.bf16.mxu0 0
      %1232 = vmatpush1.bf16.msra.mxu0 %v1216
      %1233 = vmatprep.subr.bf16.mxu0 0
      %1234 = vmatpush1.bf16.msra.mxu0 %v1215
      %1235 = vmatprep.subr.bf16.mxu0 0
      %1236 = vmatpush1.bf16.msra.mxu0 %v1214
      %1237 = vmatprep.subr.bf16.mxu0 0
      %1238 = vmatpush1.bf16.msra.mxu0 %v1213
      %1239 = vmatprep.subr.bf16.mxu0 0
      %1240 = vmatpush1.bf16.msra.mxu0 %v1212
      %1241 = vmatprep.subr.bf16.mxu0 0
      %1242 = vmatpush1.bf16.msra.mxu0 %v1211
      %1243 = vmatprep.subr.bf16.mxu0 0
      %1244 = vmatpush2.bf16.msra.mxu0 0
      %1245 = vmatprep.subr.bf16.mxu0 0
      %1246 = vmatpush2.bf16.msra.mxu0 0
      %1247 = vmatprep.subr.bf16.mxu0 0
      %1248 = vmatpush2.bf16.msra.mxu0 0
      %1249 = vmatprep.subr.bf16.mxu0 0
      %1250 = vmatpush2.bf16.msra.mxu0 0
      %1251 = vmatprep.subr.bf16.mxu0 0
      %1252 = vmatpush2.bf16.msra.mxu0 0
      %1253 = vmatprep.subr.bf16.mxu0 0
      %1254 = vmatpush2.bf16.msra.mxu0 0
      %1255 = vmatprep.subr.bf16.mxu0 0
      %1256 = vmatpush2.bf16.msra.mxu0 0
      %1257 = vmatprep.subr.bf16.mxu0 0
      %1258 = vmatpush2.bf16.msra.mxu0 0
      %1259 = vmatprep.mubr.bf16.mxu0 0
      %1260 = vmatmul.mubr.bf16.gmra.mxu0 %v1171
      %v1261 = vpop.f32.mrf.mxu0
      %v1262 = vadd.f32 0.0, %v1261
      %v1263 = vpop.f32.mrf.mxu0
      %v1264 = vpop.f32.mrf.mxu0
      %v1265 = vadd.f32 0.0, %v1264
      %v1266 = vpop.f32.mrf.mxu0
      %1267 = vmatprep.mubr.bf16.mxu0 0
      %1268 = vmatmul.mubr.bf16.gmra.mxu0 %v1172
      %v1269 = vpop.f32.mrf.mxu0
      %v1270 = vadd.f32 0.0, %v1269
      %v1271 = vpop.f32.mrf.mxu0
      %v1272 = vpop.f32.mrf.mxu0
      %v1273 = vadd.f32 0.0, %v1272
      %v1274 = vpop.f32.mrf.mxu0
      %1275 = vmatprep.mubr.bf16.mxu0 0
      %1276 = vmatmul.mubr.bf16.gmra.mxu0 %v1173
      %v1277 = vpop.f32.mrf.mxu0
      %v1278 = vadd.f32 0.0, %v1277
      %v1279 = vpop.f32.mrf.mxu0
      %v1280 = vpop.f32.mrf.mxu0
      %v1281 = vadd.f32 0.0, %v1280
      %v1282 = vpop.f32.mrf.mxu0
      %1283 = vmatprep.mubr.bf16.mxu0 0
      %1284 = vmatmul.mubr.bf16.gmra.mxu0 %v1174
      %v1285 = vpop.f32.mrf.mxu0
      %v1286 = vadd.f32 0.0, %v1285
      %v1287 = vpop.f32.mrf.mxu0
      %v1288 = vpop.f32.mrf.mxu0
      %v1289 = vadd.f32 0.0, %v1288
      %v1290 = vpop.f32.mrf.mxu0
      %1291 = vdwg.mxu0
      %v1292 = vadd.f32 %v1122, %v1262
      %v1293 = vadd.f32 %v1123, %v1265
      %v1294 = vadd.f32 %v1124, %v1270
      %v1295 = vadd.f32 %v1125, %v1273
      %v1296 = vadd.f32 %v1126, %v1278
      %v1297 = vadd.f32 %v1127, %v1281
      %v1298 = vadd.f32 %v1128, %v1286
      %v1299 = vadd.f32 %v1129, %v1289
      %v1300 = vld [vmem:[%s328 + $0x8] sm:$0xf]
      %v1301 = vld [vmem:[%s328 + $0x18] sm:$0x1]
      %v1302 = vld [vmem:[%s328 + $0x28] sm:$0xf]
      %v1303 = vld [vmem:[%s328 + $0x38] sm:$0x1]
      %v1304 = vld [vmem:[%s328 + $0x48] sm:$0xf]
      %v1305 = vld [vmem:[%s328 + $0x58] sm:$0x1]
      %v1306 = vld [vmem:[%s328 + $0x68] sm:$0xf]
      %v1307 = vld [vmem:[%s328 + $0x78] sm:$0x1]
      %v1308 = vld [vmem:[%s328 + $0x88] sm:$0xf]
      %v1309 = vld [vmem:[%s328 + $0x98] sm:$0x1]
      %v1310 = vld [vmem:[%s328 + $0xa8] sm:$0xf]
      %v1311 = vld [vmem:[%s328 + $0xb8] sm:$0x1]
      %v1312 = vld [vmem:[%s328 + $0xc8] sm:$0xf]
      %v1313 = vld [vmem:[%s328 + $0xd8] sm:$0x1]
      %v1314 = vld [vmem:[%s328 + $0xe8] sm:$0xf]
      %v1315 = vld [vmem:[%s328 + $0xf8] sm:$0x1]
      %v1317 = vshrl.u32 %v1300, 16
      %v1319 = vrot.slane %v1317, 4
      %v1320 = vshll.u32 %v1300, 16
      %v1322 = vrot.slane %v1320, 5
      %v1323 = vor.u32 %v1319, %v1322
      %v1324 = vrot.slane %v1323, 4
      %v1326 = vshll.u32 %v1301, 16
      %v1328 = vrot.slane %v1326, 5
      %v1329 = vsel %vm693, %v1324, %v1328
      %v1331 = vshrl.u32 %v1302, 16
      %v1333 = vrot.slane %v1331, 4
      %v1334 = vshll.u32 %v1302, 16
      %v1336 = vrot.slane %v1334, 5
      %v1337 = vor.u32 %v1333, %v1336
      %v1338 = vrot.slane %v1337, 4
      %v1340 = vshll.u32 %v1303, 16
      %v1342 = vrot.slane %v1340, 5
      %v1343 = vsel %vm693, %v1338, %v1342
      %v1345 = vshrl.u32 %v1304, 16
      %v1347 = vrot.slane %v1345, 4
      %v1348 = vshll.u32 %v1304, 16
      %v1350 = vrot.slane %v1348, 5
      %v1351 = vor.u32 %v1347, %v1350
      %v1352 = vrot.slane %v1351, 4
      %v1354 = vshll.u32 %v1305, 16
      %v1356 = vrot.slane %v1354, 5
      %v1357 = vsel %vm693, %v1352, %v1356
      %v1359 = vshrl.u32 %v1306, 16
      %v1361 = vrot.slane %v1359, 4
      %v1362 = vshll.u32 %v1306, 16
      %v1364 = vrot.slane %v1362, 5
      %v1365 = vor.u32 %v1361, %v1364
      %v1366 = vrot.slane %v1365, 4
      %v1368 = vshll.u32 %v1307, 16
      %v1370 = vrot.slane %v1368, 5
      %v1371 = vsel %vm693, %v1366, %v1370
      %v1373 = vshrl.u32 %v1308, 16
      %v1375 = vrot.slane %v1373, 4
      %v1376 = vshll.u32 %v1308, 16
      %v1378 = vrot.slane %v1376, 5
      %v1379 = vor.u32 %v1375, %v1378
      %v1380 = vrot.slane %v1379, 4
      %v1382 = vshll.u32 %v1309, 16
      %v1384 = vrot.slane %v1382, 5
      %v1385 = vsel %vm693, %v1380, %v1384
      %v1387 = vshrl.u32 %v1310, 16
      %v1389 = vrot.slane %v1387, 4
      %v1390 = vshll.u32 %v1310, 16
      %v1392 = vrot.slane %v1390, 5
      %v1393 = vor.u32 %v1389, %v1392
      %v1394 = vrot.slane %v1393, 4
      %v1396 = vshll.u32 %v1311, 16
      %v1398 = vrot.slane %v1396, 5
      %v1399 = vsel %vm693, %v1394, %v1398
      %v1401 = vshrl.u32 %v1312, 16
      %v1403 = vrot.slane %v1401, 4
      %v1404 = vshll.u32 %v1312, 16
      %v1406 = vrot.slane %v1404, 5
      %v1407 = vor.u32 %v1403, %v1406
      %v1408 = vrot.slane %v1407, 4
      %v1410 = vshll.u32 %v1313, 16
      %v1412 = vrot.slane %v1410, 5
      %v1413 = vsel %vm693, %v1408, %v1412
      %v1415 = vshrl.u32 %v1314, 16
      %v1417 = vrot.slane %v1415, 4
      %v1418 = vshll.u32 %v1314, 16
      %v1420 = vrot.slane %v1418, 5
      %v1421 = vor.u32 %v1417, %v1420
      %v1422 = vrot.slane %v1421, 4
      %v1424 = vshll.u32 %v1315, 16
      %v1426 = vrot.slane %v1424, 5
      %v1427 = vsel %vm693, %v1422, %v1426
      %s1428 = scalar_lea.vmem %s1, 320
      %v1429 = vld [vmem:[%s1428] sm:$0xf]
      %v1430 = vld [vmem:[%s1428 + $0x4] sm:$0xf]
      %v1431 = vld [vmem:[%s1428 + $0x8] sm:$0xf]
      %v1432 = vld [vmem:[%s1428 + $0xc] sm:$0xf]
      %v1433 = vld [vmem:[%s1428 + $0x10] sm:$0xf]
      %v1434 = vld [vmem:[%s1428 + $0x14] sm:$0xf]
      %v1435 = vld [vmem:[%s1428 + $0x18] sm:$0xf]
      %v1436 = vld [vmem:[%s1428 + $0x1c] sm:$0xf]
      %v1437 = vld [vmem:[%s1428 + $0x20] sm:$0xf]
      %v1438 = vld [vmem:[%s1428 + $0x24] sm:$0xf]
      %v1439 = vld [vmem:[%s1428 + $0x28] sm:$0xf]
      %v1440 = vld [vmem:[%s1428 + $0x2c] sm:$0xf]
      %v1441 = vld [vmem:[%s1428 + $0x30] sm:$0xf]
      %v1442 = vld [vmem:[%s1428 + $0x34] sm:$0xf]
      %v1443 = vld [vmem:[%s1428 + $0x38] sm:$0xf]
      %v1444 = vld [vmem:[%s1428 + $0x3c] sm:$0xf]
      %v1445 = vunpack.c.l.b16 %v1329
      %v1446 = vunpack.c.l.b16 %v1343
      %v1447 = vunpack.c.l.b16 %v1357
      %v1448 = vunpack.c.l.b16 %v1371
      %v1449 = vunpack.c.l.b16 %v1385
      %v1450 = vunpack.c.l.b16 %v1399
      %v1451 = vunpack.c.l.b16 %v1413
      %v1452 = vunpack.c.l.b16 %v1427
      %v1453 = vpack.c.b16 %v1446, %v1445
      %v1454 = vpack.c.b16 %v1448, %v1447
      %v1455 = vpack.c.b16 %v1450, %v1449
      %v1456 = vpack.c.b16 %v1452, %v1451
      %v1477 = vunpack.c.l.b16 %v1429
      %v1478 = vunpack.c.l.b16 %v1430
      %v1479 = vunpack.c.l.b16 %v1431
      %v1480 = vunpack.c.l.b16 %v1432
      %v1481 = vunpack.c.l.b16 %v1433
      %v1482 = vunpack.c.l.b16 %v1434
      %v1483 = vunpack.c.l.b16 %v1435
      %v1484 = vunpack.c.l.b16 %v1436
      %v1485 = vunpack.c.l.b16 %v1437
      %v1486 = vunpack.c.l.b16 %v1438
      %v1487 = vunpack.c.l.b16 %v1439
      %v1488 = vunpack.c.l.b16 %v1440
      %v1489 = vunpack.c.l.b16 %v1441
      %v1490 = vunpack.c.l.b16 %v1442
      %v1491 = vunpack.c.l.b16 %v1443
      %v1492 = vunpack.c.l.b16 %v1444
      %v1493 = vpack.c.b16 %v1478, %v1477
      %v1494 = vpack.c.b16 %v1480, %v1479
      %v1495 = vpack.c.b16 %v1482, %v1481
      %v1496 = vpack.c.b16 %v1484, %v1483
      %v1497 = vpack.c.b16 %v1486, %v1485
      %v1498 = vpack.c.b16 %v1488, %v1487
      %v1499 = vpack.c.b16 %v1490, %v1489
      %v1500 = vpack.c.b16 %v1492, %v1491
      %1509 = vmatprep.subr.bf16.mxu0 0
      %1510 = vmatpush1.bf16.msra.mxu0 %v1500
      %1511 = vmatprep.subr.bf16.mxu0 0
      %1512 = vmatpush1.bf16.msra.mxu0 %v1499
      %1513 = vmatprep.subr.bf16.mxu0 0
      %1514 = vmatpush1.bf16.msra.mxu0 %v1498
      %1515 = vmatprep.subr.bf16.mxu0 0
      %1516 = vmatpush1.bf16.msra.mxu0 %v1497
      %1517 = vmatprep.subr.bf16.mxu0 0
      %1518 = vmatpush1.bf16.msra.mxu0 %v1496
      %1519 = vmatprep.subr.bf16.mxu0 0
      %1520 = vmatpush1.bf16.msra.mxu0 %v1495
      %1521 = vmatprep.subr.bf16.mxu0 0
      %1522 = vmatpush1.bf16.msra.mxu0 %v1494
      %1523 = vmatprep.subr.bf16.mxu0 0
      %1524 = vmatpush1.bf16.msra.mxu0 %v1493
      %1525 = vmatprep.subr.bf16.mxu0 0
      %1526 = vmatpush2.bf16.msra.mxu0 0
      %1527 = vmatprep.subr.bf16.mxu0 0
      %1528 = vmatpush2.bf16.msra.mxu0 0
      %1529 = vmatprep.subr.bf16.mxu0 0
      %1530 = vmatpush2.bf16.msra.mxu0 0
      %1531 = vmatprep.subr.bf16.mxu0 0
      %1532 = vmatpush2.bf16.msra.mxu0 0
      %1533 = vmatprep.subr.bf16.mxu0 0
      %1534 = vmatpush2.bf16.msra.mxu0 0
      %1535 = vmatprep.subr.bf16.mxu0 0
      %1536 = vmatpush2.bf16.msra.mxu0 0
      %1537 = vmatprep.subr.bf16.mxu0 0
      %1538 = vmatpush2.bf16.msra.mxu0 0
      %1539 = vmatprep.subr.bf16.mxu0 0
      %1540 = vmatpush2.bf16.msra.mxu0 0
      %1541 = vmatprep.mubr.bf16.mxu0 0
      %1542 = vmatmul.mubr.bf16.gmra.mxu0 %v1453
      %v1543 = vpop.f32.mrf.mxu0
      %v1544 = vadd.f32 0.0, %v1543
      %v1545 = vpop.f32.mrf.mxu0
      %v1546 = vpop.f32.mrf.mxu0
      %v1547 = vadd.f32 0.0, %v1546
      %v1548 = vpop.f32.mrf.mxu0
      %1549 = vmatprep.mubr.bf16.mxu0 0
      %1550 = vmatmul.mubr.bf16.gmra.mxu0 %v1454
      %v1551 = vpop.f32.mrf.mxu0
      %v1552 = vadd.f32 0.0, %v1551
      %v1553 = vpop.f32.mrf.mxu0
      %v1554 = vpop.f32.mrf.mxu0
      %v1555 = vadd.f32 0.0, %v1554
      %v1556 = vpop.f32.mrf.mxu0
      %1557 = vmatprep.mubr.bf16.mxu0 0
      %1558 = vmatmul.mubr.bf16.gmra.mxu0 %v1455
      %v1559 = vpop.f32.mrf.mxu0
      %v1560 = vadd.f32 0.0, %v1559
      %v1561 = vpop.f32.mrf.mxu0
      %v1562 = vpop.f32.mrf.mxu0
      %v1563 = vadd.f32 0.0, %v1562
      %v1564 = vpop.f32.mrf.mxu0
      %1565 = vmatprep.mubr.bf16.mxu0 0
      %1566 = vmatmul.mubr.bf16.gmra.mxu0 %v1456
      %v1567 = vpop.f32.mrf.mxu0
      %v1568 = vadd.f32 0.0, %v1567
      %v1569 = vpop.f32.mrf.mxu0
      %v1570 = vpop.f32.mrf.mxu0
      %v1571 = vadd.f32 0.0, %v1570
      %v1572 = vpop.f32.mrf.mxu0
      %1573 = vdwg.mxu0
      %v1574 = vadd.f32 %v1292, %v1544
      %v1575 = vadd.f32 %v1293, %v1547
      %v1576 = vadd.f32 %v1294, %v1552
      %v1577 = vadd.f32 %v1295, %v1555
      %v1578 = vadd.f32 %v1296, %v1560
      %v1579 = vadd.f32 %v1297, %v1563
      %v1580 = vadd.f32 %v1298, %v1568
      %v1581 = vadd.f32 %v1299, %v1571
      %s1582 = scalar_lea.vmem %s328, 32
      %v1583 = vld [vmem:[%s1582] sm:$0xf]
      %v1584 = vld [vmem:[%s1582 + $0x20] sm:$0xf]
      %v1585 = vld [vmem:[%s1582 + $0x40] sm:$0xf]
      %v1586 = vld [vmem:[%s1582 + $0x60] sm:$0xf]
      %v1587 = vld [vmem:[%s1582 + $0x80] sm:$0xf]
      %v1588 = vld [vmem:[%s1582 + $0xa0] sm:$0xf]
      %v1589 = vld [vmem:[%s1582 + $0xc0] sm:$0xf]
      %v1590 = vld [vmem:[%s1582 + $0xe0] sm:$0xf]
      %s1591 = scalar_lea.vmem %s1, 384
      %v1592 = vld [vmem:[%s1591] sm:$0xf]
      %v1593 = vld [vmem:[%s1591 + $0x4] sm:$0xf]
      %v1594 = vld [vmem:[%s1591 + $0x8] sm:$0xf]
      %v1595 = vld [vmem:[%s1591 + $0xc] sm:$0xf]
      %v1596 = vld [vmem:[%s1591 + $0x10] sm:$0xf]
      %v1597 = vld [vmem:[%s1591 + $0x14] sm:$0xf]
      %v1598 = vld [vmem:[%s1591 + $0x18] sm:$0xf]
      %v1599 = vld [vmem:[%s1591 + $0x1c] sm:$0xf]
      %v1600 = vld [vmem:[%s1591 + $0x20] sm:$0xf]
      %v1601 = vld [vmem:[%s1591 + $0x24] sm:$0xf]
      %v1602 = vld [vmem:[%s1591 + $0x28] sm:$0xf]
      %v1603 = vld [vmem:[%s1591 + $0x2c] sm:$0xf]
      %v1604 = vld [vmem:[%s1591 + $0x30] sm:$0xf]
      %v1605 = vld [vmem:[%s1591 + $0x34] sm:$0xf]
      %v1606 = vld [vmem:[%s1591 + $0x38] sm:$0xf]
      %v1607 = vld [vmem:[%s1591 + $0x3c] sm:$0xf]
      %v1616 = vunpack.c.l.b16 %v1583
      %v1617 = vunpack.c.l.b16 %v1584
      %v1618 = vunpack.c.l.b16 %v1585
      %v1619 = vunpack.c.l.b16 %v1586
      %v1620 = vunpack.c.l.b16 %v1587
      %v1621 = vunpack.c.l.b16 %v1588
      %v1622 = vunpack.c.l.b16 %v1589
      %v1623 = vunpack.c.l.b16 %v1590
      %v1624 = vpack.c.b16 %v1617, %v1616
      %v1625 = vpack.c.b16 %v1619, %v1618
      %v1626 = vpack.c.b16 %v1621, %v1620
      %v1627 = vpack.c.b16 %v1623, %v1622
      %v1648 = vunpack.c.l.b16 %v1592
      %v1649 = vunpack.c.l.b16 %v1593
      %v1650 = vunpack.c.l.b16 %v1594
      %v1651 = vunpack.c.l.b16 %v1595
      %v1652 = vunpack.c.l.b16 %v1596
      %v1653 = vunpack.c.l.b16 %v1597
      %v1654 = vunpack.c.l.b16 %v1598
      %v1655 = vunpack.c.l.b16 %v1599
      %v1656 = vunpack.c.l.b16 %v1600
      %v1657 = vunpack.c.l.b16 %v1601
      %v1658 = vunpack.c.l.b16 %v1602
      %v1659 = vunpack.c.l.b16 %v1603
      %v1660 = vunpack.c.l.b16 %v1604
      %v1661 = vunpack.c.l.b16 %v1605
      %v1662 = vunpack.c.l.b16 %v1606
      %v1663 = vunpack.c.l.b16 %v1607
      %v1664 = vpack.c.b16 %v1649, %v1648
      %v1665 = vpack.c.b16 %v1651, %v1650
      %v1666 = vpack.c.b16 %v1653, %v1652
      %v1667 = vpack.c.b16 %v1655, %v1654
      %v1668 = vpack.c.b16 %v1657, %v1656
      %v1669 = vpack.c.b16 %v1659, %v1658
      %v1670 = vpack.c.b16 %v1661, %v1660
      %v1671 = vpack.c.b16 %v1663, %v1662
      %1680 = vmatprep.subr.bf16.mxu0 0
      %1681 = vmatpush1.bf16.msra.mxu0 %v1671
      %1682 = vmatprep.subr.bf16.mxu0 0
      %1683 = vmatpush1.bf16.msra.mxu0 %v1670
      %1684 = vmatprep.subr.bf16.mxu0 0
      %1685 = vmatpush1.bf16.msra.mxu0 %v1669
      %1686 = vmatprep.subr.bf16.mxu0 0
      %1687 = vmatpush1.bf16.msra.mxu0 %v1668
      %1688 = vmatprep.subr.bf16.mxu0 0
      %1689 = vmatpush1.bf16.msra.mxu0 %v1667
      %1690 = vmatprep.subr.bf16.mxu0 0
      %1691 = vmatpush1.bf16.msra.mxu0 %v1666
      %1692 = vmatprep.subr.bf16.mxu0 0
      %1693 = vmatpush1.bf16.msra.mxu0 %v1665
      %1694 = vmatprep.subr.bf16.mxu0 0
      %1695 = vmatpush1.bf16.msra.mxu0 %v1664
      %1696 = vmatprep.subr.bf16.mxu0 0
      %1697 = vmatpush2.bf16.msra.mxu0 0
      %1698 = vmatprep.subr.bf16.mxu0 0
      %1699 = vmatpush2.bf16.msra.mxu0 0
      %1700 = vmatprep.subr.bf16.mxu0 0
      %1701 = vmatpush2.bf16.msra.mxu0 0
      %1702 = vmatprep.subr.bf16.mxu0 0
      %1703 = vmatpush2.bf16.msra.mxu0 0
      %1704 = vmatprep.subr.bf16.mxu0 0
      %1705 = vmatpush2.bf16.msra.mxu0 0
      %1706 = vmatprep.subr.bf16.mxu0 0
      %1707 = vmatpush2.bf16.msra.mxu0 0
      %1708 = vmatprep.subr.bf16.mxu0 0
      %1709 = vmatpush2.bf16.msra.mxu0 0
      %1710 = vmatprep.subr.bf16.mxu0 0
      %1711 = vmatpush2.bf16.msra.mxu0 0
      %1712 = vmatprep.mubr.bf16.mxu0 0
      %1713 = vmatmul.mubr.bf16.gmra.mxu0 %v1624
      %v1714 = vpop.f32.mrf.mxu0
      %v1715 = vadd.f32 0.0, %v1714
      %v1716 = vpop.f32.mrf.mxu0
      %v1717 = vpop.f32.mrf.mxu0
      %v1718 = vadd.f32 0.0, %v1717
      %v1719 = vpop.f32.mrf.mxu0
      %1720 = vmatprep.mubr.bf16.mxu0 0
      %1721 = vmatmul.mubr.bf16.gmra.mxu0 %v1625
      %v1722 = vpop.f32.mrf.mxu0
      %v1723 = vadd.f32 0.0, %v1722
      %v1724 = vpop.f32.mrf.mxu0
      %v1725 = vpop.f32.mrf.mxu0
      %v1726 = vadd.f32 0.0, %v1725
      %v1727 = vpop.f32.mrf.mxu0
      %1728 = vmatprep.mubr.bf16.mxu0 0
      %1729 = vmatmul.mubr.bf16.gmra.mxu0 %v1626
      %v1730 = vpop.f32.mrf.mxu0
      %v1731 = vadd.f32 0.0, %v1730
      %v1732 = vpop.f32.mrf.mxu0
      %v1733 = vpop.f32.mrf.mxu0
      %v1734 = vadd.f32 0.0, %v1733
      %v1735 = vpop.f32.mrf.mxu0
      %1736 = vmatprep.mubr.bf16.mxu0 0
      %1737 = vmatmul.mubr.bf16.gmra.mxu0 %v1627
      %v1738 = vpop.f32.mrf.mxu0
      %v1739 = vadd.f32 0.0, %v1738
      %v1740 = vpop.f32.mrf.mxu0
      %v1741 = vpop.f32.mrf.mxu0
      %v1742 = vadd.f32 0.0, %v1741
      %v1743 = vpop.f32.mrf.mxu0
      %1744 = vdwg.mxu0
      %v1745 = vadd.f32 %v1574, %v1715
      %v1746 = vadd.f32 %v1575, %v1718
      %v1747 = vadd.f32 %v1576, %v1723
      %v1748 = vadd.f32 %v1577, %v1726
      %v1749 = vadd.f32 %v1578, %v1731
      %v1750 = vadd.f32 %v1579, %v1734
      %v1751 = vadd.f32 %v1580, %v1739
      %v1752 = vadd.f32 %v1581, %v1742
      %v1753 = vld [vmem:[%s1582 + $0x4] sm:$0xf]
      %v1754 = vld [vmem:[%s1582 + $0x24] sm:$0xf]
      %v1755 = vld [vmem:[%s1582 + $0x44] sm:$0xf]
      %v1756 = vld [vmem:[%s1582 + $0x64] sm:$0xf]
      %v1757 = vld [vmem:[%s1582 + $0x84] sm:$0xf]
      %v1758 = vld [vmem:[%s1582 + $0xa4] sm:$0xf]
      %v1759 = vld [vmem:[%s1582 + $0xc4] sm:$0xf]
      %v1760 = vld [vmem:[%s1582 + $0xe4] sm:$0xf]
      %s1761 = scalar_lea.vmem %s1, 448
      %v1762 = vld [vmem:[%s1761] sm:$0xf]
      %v1763 = vld [vmem:[%s1761 + $0x4] sm:$0xf]
      %v1764 = vld [vmem:[%s1761 + $0x8] sm:$0xf]
      %v1765 = vld [vmem:[%s1761 + $0xc] sm:$0xf]
      %v1766 = vld [vmem:[%s1761 + $0x10] sm:$0xf]
      %v1767 = vld [vmem:[%s1761 + $0x14] sm:$0xf]
      %v1768 = vld [vmem:[%s1761 + $0x18] sm:$0xf]
      %v1769 = vld [vmem:[%s1761 + $0x1c] sm:$0xf]
      %v1770 = vld [vmem:[%s1761 + $0x20] sm:$0xf]
      %v1771 = vld [vmem:[%s1761 + $0x24] sm:$0xf]
      %v1772 = vld [vmem:[%s1761 + $0x28] sm:$0xf]
      %v1773 = vld [vmem:[%s1761 + $0x2c] sm:$0xf]
      %v1774 = vld [vmem:[%s1761 + $0x30] sm:$0xf]
      %v1775 = vld [vmem:[%s1761 + $0x34] sm:$0xf]
      %v1776 = vld [vmem:[%s1761 + $0x38] sm:$0xf]
      %v1777 = vld [vmem:[%s1761 + $0x3c] sm:$0xf]
      %v1786 = vunpack.c.l.b16 %v1753
      %v1787 = vunpack.c.l.b16 %v1754
      %v1788 = vunpack.c.l.b16 %v1755
      %v1789 = vunpack.c.l.b16 %v1756
      %v1790 = vunpack.c.l.b16 %v1757
      %v1791 = vunpack.c.l.b16 %v1758
      %v1792 = vunpack.c.l.b16 %v1759
      %v1793 = vunpack.c.l.b16 %v1760
      %v1794 = vpack.c.b16 %v1787, %v1786
      %v1795 = vpack.c.b16 %v1789, %v1788
      %v1796 = vpack.c.b16 %v1791, %v1790
      %v1797 = vpack.c.b16 %v1793, %v1792
      %v1818 = vunpack.c.l.b16 %v1762
      %v1819 = vunpack.c.l.b16 %v1763
      %v1820 = vunpack.c.l.b16 %v1764
      %v1821 = vunpack.c.l.b16 %v1765
      %v1822 = vunpack.c.l.b16 %v1766
      %v1823 = vunpack.c.l.b16 %v1767
      %v1824 = vunpack.c.l.b16 %v1768
      %v1825 = vunpack.c.l.b16 %v1769
      %v1826 = vunpack.c.l.b16 %v1770
      %v1827 = vunpack.c.l.b16 %v1771
      %v1828 = vunpack.c.l.b16 %v1772
      %v1829 = vunpack.c.l.b16 %v1773
      %v1830 = vunpack.c.l.b16 %v1774
      %v1831 = vunpack.c.l.b16 %v1775
      %v1832 = vunpack.c.l.b16 %v1776
      %v1833 = vunpack.c.l.b16 %v1777
      %v1834 = vpack.c.b16 %v1819, %v1818
      %v1835 = vpack.c.b16 %v1821, %v1820
      %v1836 = vpack.c.b16 %v1823, %v1822
      %v1837 = vpack.c.b16 %v1825, %v1824
      %v1838 = vpack.c.b16 %v1827, %v1826
      %v1839 = vpack.c.b16 %v1829, %v1828
      %v1840 = vpack.c.b16 %v1831, %v1830
      %v1841 = vpack.c.b16 %v1833, %v1832
      %1850 = vmatprep.subr.bf16.mxu0 0
      %1851 = vmatpush1.bf16.msra.mxu0 %v1841
      %1852 = vmatprep.subr.bf16.mxu0 0
      %1853 = vmatpush1.bf16.msra.mxu0 %v1840
      %1854 = vmatprep.subr.bf16.mxu0 0
      %1855 = vmatpush1.bf16.msra.mxu0 %v1839
      %1856 = vmatprep.subr.bf16.mxu0 0
      %1857 = vmatpush1.bf16.msra.mxu0 %v1838
      %1858 = vmatprep.subr.bf16.mxu0 0
      %1859 = vmatpush1.bf16.msra.mxu0 %v1837
      %1860 = vmatprep.subr.bf16.mxu0 0
      %1861 = vmatpush1.bf16.msra.mxu0 %v1836
      %1862 = vmatprep.subr.bf16.mxu0 0
      %1863 = vmatpush1.bf16.msra.mxu0 %v1835
      %1864 = vmatprep.subr.bf16.mxu0 0
      %1865 = vmatpush1.bf16.msra.mxu0 %v1834
      %1866 = vmatprep.subr.bf16.mxu0 0
      %1867 = vmatpush2.bf16.msra.mxu0 0
      %1868 = vmatprep.subr.bf16.mxu0 0
      %1869 = vmatpush2.bf16.msra.mxu0 0
      %1870 = vmatprep.subr.bf16.mxu0 0
      %1871 = vmatpush2.bf16.msra.mxu0 0
      %1872 = vmatprep.subr.bf16.mxu0 0
      %1873 = vmatpush2.bf16.msra.mxu0 0
      %1874 = vmatprep.subr.bf16.mxu0 0
      %1875 = vmatpush2.bf16.msra.mxu0 0
      %1876 = vmatprep.subr.bf16.mxu0 0
      %1877 = vmatpush2.bf16.msra.mxu0 0
      %1878 = vmatprep.subr.bf16.mxu0 0
      %1879 = vmatpush2.bf16.msra.mxu0 0
      %1880 = vmatprep.subr.bf16.mxu0 0
      %1881 = vmatpush2.bf16.msra.mxu0 0
      %1882 = vmatprep.mubr.bf16.mxu0 0
      %1883 = vmatmul.mubr.bf16.gmra.mxu0 %v1794
      %v1884 = vpop.f32.mrf.mxu0
      %v1885 = vadd.f32 0.0, %v1884
      %v1886 = vpop.f32.mrf.mxu0
      %v1887 = vpop.f32.mrf.mxu0
      %v1888 = vadd.f32 0.0, %v1887
      %v1889 = vpop.f32.mrf.mxu0
      %1890 = vmatprep.mubr.bf16.mxu0 0
      %1891 = vmatmul.mubr.bf16.gmra.mxu0 %v1795
      %v1892 = vpop.f32.mrf.mxu0
      %v1893 = vadd.f32 0.0, %v1892
      %v1894 = vpop.f32.mrf.mxu0
      %v1895 = vpop.f32.mrf.mxu0
      %v1896 = vadd.f32 0.0, %v1895
      %v1897 = vpop.f32.mrf.mxu0
      %1898 = vmatprep.mubr.bf16.mxu0 0
      %1899 = vmatmul.mubr.bf16.gmra.mxu0 %v1796
      %v1900 = vpop.f32.mrf.mxu0
      %v1901 = vadd.f32 0.0, %v1900
      %v1902 = vpop.f32.mrf.mxu0
      %v1903 = vpop.f32.mrf.mxu0
      %v1904 = vadd.f32 0.0, %v1903
      %v1905 = vpop.f32.mrf.mxu0
      %1906 = vmatprep.mubr.bf16.mxu0 0
      %1907 = vmatmul.mubr.bf16.gmra.mxu0 %v1797
      %v1908 = vpop.f32.mrf.mxu0
      %v1909 = vadd.f32 0.0, %v1908
      %v1910 = vpop.f32.mrf.mxu0
      %v1911 = vpop.f32.mrf.mxu0
      %v1912 = vadd.f32 0.0, %v1911
      %v1913 = vpop.f32.mrf.mxu0
      %1914 = vdwg.mxu0
      %v1915 = vadd.f32 %v1745, %v1885
      %v1916 = vadd.f32 %v1746, %v1888
      %v1917 = vadd.f32 %v1747, %v1893
      %v1918 = vadd.f32 %v1748, %v1896
      %v1919 = vadd.f32 %v1749, %v1901
      %v1920 = vadd.f32 %v1750, %v1904
      %v1921 = vadd.f32 %v1751, %v1909
      %v1922 = vadd.f32 %v1752, %v1912
      %v1923 = vld [vmem:[%s1582] sm:$0xf]
      %v1924 = vld [vmem:[%s1582 + $0x10] sm:$0x1]
      %v1925 = vld [vmem:[%s1582 + $0x20] sm:$0xf]
      %v1926 = vld [vmem:[%s1582 + $0x30] sm:$0x1]
      %v1927 = vld [vmem:[%s1582 + $0x40] sm:$0xf]
      %v1928 = vld [vmem:[%s1582 + $0x50] sm:$0x1]
      %v1929 = vld [vmem:[%s1582 + $0x60] sm:$0xf]
      %v1930 = vld [vmem:[%s1582 + $0x70] sm:$0x1]
      %v1931 = vld [vmem:[%s1582 + $0x80] sm:$0xf]
      %v1932 = vld [vmem:[%s1582 + $0x90] sm:$0x1]
      %v1933 = vld [vmem:[%s1582 + $0xa0] sm:$0xf]
      %v1934 = vld [vmem:[%s1582 + $0xb0] sm:$0x1]
      %v1935 = vld [vmem:[%s1582 + $0xc0] sm:$0xf]
      %v1936 = vld [vmem:[%s1582 + $0xd0] sm:$0x1]
      %v1937 = vld [vmem:[%s1582 + $0xe0] sm:$0xf]
      %v1938 = vld [vmem:[%s1582 + $0xf0] sm:$0x1]
      %v1940 = vshrl.u32 %v1923, 16
      %v1942 = vrot.slane %v1940, 4
      %v1943 = vshll.u32 %v1923, 16
      %v1945 = vrot.slane %v1943, 5
      %v1946 = vor.u32 %v1942, %v1945
      %v1947 = vrot.slane %v1946, 4
      %v1949 = vshll.u32 %v1924, 16
      %v1951 = vrot.slane %v1949, 5
      %v1952 = vsel %vm693, %v1947, %v1951
      %v1954 = vshrl.u32 %v1925, 16
      %v1956 = vrot.slane %v1954, 4
      %v1957 = vshll.u32 %v1925, 16
      %v1959 = vrot.slane %v1957, 5
      %v1960 = vor.u32 %v1956, %v1959
      %v1961 = vrot.slane %v1960, 4
      %v1963 = vshll.u32 %v1926, 16
      %v1965 = vrot.slane %v1963, 5
      %v1966 = vsel %vm693, %v1961, %v1965
      %v1968 = vshrl.u32 %v1927, 16
      %v1970 = vrot.slane %v1968, 4
      %v1971 = vshll.u32 %v1927, 16
      %v1973 = vrot.slane %v1971, 5
      %v1974 = vor.u32 %v1970, %v1973
      %v1975 = vrot.slane %v1974, 4
      %v1977 = vshll.u32 %v1928, 16
      %v1979 = vrot.slane %v1977, 5
      %v1980 = vsel %vm693, %v1975, %v1979
      %v1982 = vshrl.u32 %v1929, 16
      %v1984 = vrot.slane %v1982, 4
      %v1985 = vshll.u32 %v1929, 16
      %v1987 = vrot.slane %v1985, 5
      %v1988 = vor.u32 %v1984, %v1987
      %v1989 = vrot.slane %v1988, 4
      %v1991 = vshll.u32 %v1930, 16
      %v1993 = vrot.slane %v1991, 5
      %v1994 = vsel %vm693, %v1989, %v1993
      %v1996 = vshrl.u32 %v1931, 16
      %v1998 = vrot.slane %v1996, 4
      %v1999 = vshll.u32 %v1931, 16
      %v2001 = vrot.slane %v1999, 5
      %v2002 = vor.u32 %v1998, %v2001
      %v2003 = vrot.slane %v2002, 4
      %v2005 = vshll.u32 %v1932, 16
      %v2007 = vrot.slane %v2005, 5
      %v2008 = vsel %vm693, %v2003, %v2007
      %v2010 = vshrl.u32 %v1933, 16
      %v2012 = vrot.slane %v2010, 4
      %v2013 = vshll.u32 %v1933, 16
      %v2015 = vrot.slane %v2013, 5
      %v2016 = vor.u32 %v2012, %v2015
      %v2017 = vrot.slane %v2016, 4
      %v2019 = vshll.u32 %v1934, 16
      %v2021 = vrot.slane %v2019, 5
      %v2022 = vsel %vm693, %v2017, %v2021
      %v2024 = vshrl.u32 %v1935, 16
      %v2026 = vrot.slane %v2024, 4
      %v2027 = vshll.u32 %v1935, 16
      %v2029 = vrot.slane %v2027, 5
      %v2030 = vor.u32 %v2026, %v2029
      %v2031 = vrot.slane %v2030, 4
      %v2033 = vshll.u32 %v1936, 16
      %v2035 = vrot.slane %v2033, 5
      %v2036 = vsel %vm693, %v2031, %v2035
      %v2038 = vshrl.u32 %v1937, 16
      %v2040 = vrot.slane %v2038, 4
      %v2041 = vshll.u32 %v1937, 16
      %v2043 = vrot.slane %v2041, 5
      %v2044 = vor.u32 %v2040, %v2043
      %v2045 = vrot.slane %v2044, 4
      %v2047 = vshll.u32 %v1938, 16
      %v2049 = vrot.slane %v2047, 5
      %v2050 = vsel %vm693, %v2045, %v2049
      %s2051 = scalar_lea.vmem %s1, 512
      %v2052 = vld [vmem:[%s2051] sm:$0xf]
      %v2053 = vld [vmem:[%s2051 + $0x4] sm:$0xf]
      %v2054 = vld [vmem:[%s2051 + $0x8] sm:$0xf]
      %v2055 = vld [vmem:[%s2051 + $0xc] sm:$0xf]
      %v2056 = vld [vmem:[%s2051 + $0x10] sm:$0xf]
      %v2057 = vld [vmem:[%s2051 + $0x14] sm:$0xf]
      %v2058 = vld [vmem:[%s2051 + $0x18] sm:$0xf]
      %v2059 = vld [vmem:[%s2051 + $0x1c] sm:$0xf]
      %v2060 = vld [vmem:[%s2051 + $0x20] sm:$0xf]
      %v2061 = vld [vmem:[%s2051 + $0x24] sm:$0xf]
      %v2062 = vld [vmem:[%s2051 + $0x28] sm:$0xf]
      %v2063 = vld [vmem:[%s2051 + $0x2c] sm:$0xf]
      %v2064 = vld [vmem:[%s2051 + $0x30] sm:$0xf]
      %v2065 = vld [vmem:[%s2051 + $0x34] sm:$0xf]
      %v2066 = vld [vmem:[%s2051 + $0x38] sm:$0xf]
      %v2067 = vld [vmem:[%s2051 + $0x3c] sm:$0xf]
      %v2068 = vunpack.c.l.b16 %v1952
      %v2069 = vunpack.c.l.b16 %v1966
      %v2070 = vunpack.c.l.b16 %v1980
      %v2071 = vunpack.c.l.b16 %v1994
      %v2072 = vunpack.c.l.b16 %v2008
      %v2073 = vunpack.c.l.b16 %v2022
      %v2074 = vunpack.c.l.b16 %v2036
      %v2075 = vunpack.c.l.b16 %v2050
      %v2076 = vpack.c.b16 %v2069, %v2068
      %v2077 = vpack.c.b16 %v2071, %v2070
      %v2078 = vpack.c.b16 %v2073, %v2072
      %v2079 = vpack.c.b16 %v2075, %v2074
      %v2100 = vunpack.c.l.b16 %v2052
      %v2101 = vunpack.c.l.b16 %v2053
      %v2102 = vunpack.c.l.b16 %v2054
      %v2103 = vunpack.c.l.b16 %v2055
      %v2104 = vunpack.c.l.b16 %v2056
      %v2105 = vunpack.c.l.b16 %v2057
      %v2106 = vunpack.c.l.b16 %v2058
      %v2107 = vunpack.c.l.b16 %v2059
      %v2108 = vunpack.c.l.b16 %v2060
      %v2109 = vunpack.c.l.b16 %v2061
      %v2110 = vunpack.c.l.b16 %v2062
      %v2111 = vunpack.c.l.b16 %v2063
      %v2112 = vunpack.c.l.b16 %v2064
      %v2113 = vunpack.c.l.b16 %v2065
      %v2114 = vunpack.c.l.b16 %v2066
      %v2115 = vunpack.c.l.b16 %v2067
      %v2116 = vpack.c.b16 %v2101, %v2100
      %v2117 = vpack.c.b16 %v2103, %v2102
      %v2118 = vpack.c.b16 %v2105, %v2104
      %v2119 = vpack.c.b16 %v2107, %v2106
      %v2120 = vpack.c.b16 %v2109, %v2108
      %v2121 = vpack.c.b16 %v2111, %v2110
      %v2122 = vpack.c.b16 %v2113, %v2112
      %v2123 = vpack.c.b16 %v2115, %v2114
      %2132 = vmatprep.subr.bf16.mxu0 0
      %2133 = vmatpush1.bf16.msra.mxu0 %v2123
      %2134 = vmatprep.subr.bf16.mxu0 0
      %2135 = vmatpush1.bf16.msra.mxu0 %v2122
      %2136 = vmatprep.subr.bf16.mxu0 0
      %2137 = vmatpush1.bf16.msra.mxu0 %v2121
      %2138 = vmatprep.subr.bf16.mxu0 0
      %2139 = vmatpush1.bf16.msra.mxu0 %v2120
      %2140 = vmatprep.subr.bf16.mxu0 0
      %2141 = vmatpush1.bf16.msra.mxu0 %v2119
      %2142 = vmatprep.subr.bf16.mxu0 0
      %2143 = vmatpush1.bf16.msra.mxu0 %v2118
      %2144 = vmatprep.subr.bf16.mxu0 0
      %2145 = vmatpush1.bf16.msra.mxu0 %v2117
      %2146 = vmatprep.subr.bf16.mxu0 0
      %2147 = vmatpush1.bf16.msra.mxu0 %v2116
      %2148 = vmatprep.subr.bf16.mxu0 0
      %2149 = vmatpush2.bf16.msra.mxu0 0
      %2150 = vmatprep.subr.bf16.mxu0 0
      %2151 = vmatpush2.bf16.msra.mxu0 0
      %2152 = vmatprep.subr.bf16.mxu0 0
      %2153 = vmatpush2.bf16.msra.mxu0 0
      %2154 = vmatprep.subr.bf16.mxu0 0
      %2155 = vmatpush2.bf16.msra.mxu0 0
      %2156 = vmatprep.subr.bf16.mxu0 0
      %2157 = vmatpush2.bf16.msra.mxu0 0
      %2158 = vmatprep.subr.bf16.mxu0 0
      %2159 = vmatpush2.bf16.msra.mxu0 0
      %2160 = vmatprep.subr.bf16.mxu0 0
      %2161 = vmatpush2.bf16.msra.mxu0 0
      %2162 = vmatprep.subr.bf16.mxu0 0
      %2163 = vmatpush2.bf16.msra.mxu0 0
      %2164 = vmatprep.mubr.bf16.mxu0 0
      %2165 = vmatmul.mubr.bf16.gmra.mxu0 %v2076
      %v2166 = vpop.f32.mrf.mxu0
      %v2167 = vadd.f32 0.0, %v2166
      %v2168 = vpop.f32.mrf.mxu0
      %v2169 = vpop.f32.mrf.mxu0
      %v2170 = vadd.f32 0.0, %v2169
      %v2171 = vpop.f32.mrf.mxu0
      %2172 = vmatprep.mubr.bf16.mxu0 0
      %2173 = vmatmul.mubr.bf16.gmra.mxu0 %v2077
      %v2174 = vpop.f32.mrf.mxu0
      %v2175 = vadd.f32 0.0, %v2174
      %v2176 = vpop.f32.mrf.mxu0
      %v2177 = vpop.f32.mrf.mxu0
      %v2178 = vadd.f32 0.0, %v2177
      %v2179 = vpop.f32.mrf.mxu0
      %2180 = vmatprep.mubr.bf16.mxu0 0
      %2181 = vmatmul.mubr.bf16.gmra.mxu0 %v2078
      %v2182 = vpop.f32.mrf.mxu0
      %v2183 = vadd.f32 0.0, %v2182
      %v2184 = vpop.f32.mrf.mxu0
      %v2185 = vpop.f32.mrf.mxu0
      %v2186 = vadd.f32 0.0, %v2185
      %v2187 = vpop.f32.mrf.mxu0
      %2188 = vmatprep.mubr.bf16.mxu0 0
      %2189 = vmatmul.mubr.bf16.gmra.mxu0 %v2079
      %v2190 = vpop.f32.mrf.mxu0
      %v2191 = vadd.f32 0.0, %v2190
      %v2192 = vpop.f32.mrf.mxu0
      %v2193 = vpop.f32.mrf.mxu0
      %v2194 = vadd.f32 0.0, %v2193
      %v2195 = vpop.f32.mrf.mxu0
      %2196 = vdwg.mxu0
      %v2197 = vadd.f32 %v1915, %v2167
      %v2198 = vadd.f32 %v1916, %v2170
      %v2199 = vadd.f32 %v1917, %v2175
      %v2200 = vadd.f32 %v1918, %v2178
      %v2201 = vadd.f32 %v1919, %v2183
      %v2202 = vadd.f32 %v1920, %v2186
      %v2203 = vadd.f32 %v1921, %v2191
      %v2204 = vadd.f32 %v1922, %v2194
      %v2205 = vadd.f32 %v2197, %v2198
      %v2206 = vadd.f32 %v2205, %v2199
      %v2207 = vadd.f32 %v2206, %v2200
      %v2208 = vadd.f32 %v2207, %v2201
      %v2209 = vadd.f32 %v2208, %v2202
      %v2210 = vadd.f32 %v2209, %v2203
      %v2211 = vadd.f32 %v2210, %v2204
      %v2212 = vrot.slane %v2211, 4
      %v2213 = vadd.f32 %v2211, %v2212
      %v2214 = vrot.slane %v2213, 2
      %v2215 = vadd.f32 %v2213, %v2214
      %v2216 = vrot.slane %v2215, 1
      %v2217 = vadd.f32 %v2215, %v2216
      %2218 = vst [vmem:[%s336] sm:$0x1] %v2217
      %v2219 = vmul.f32 %v2197, %v2197
      %v2220 = vmul.f32 %v2198, %v2198
      %v2221 = vmul.f32 %v2199, %v2199
      %v2222 = vmul.f32 %v2200, %v2200
      %v2223 = vmul.f32 %v2201, %v2201
      %v2224 = vmul.f32 %v2202, %v2202
      %v2225 = vmul.f32 %v2203, %v2203
      %v2226 = vmul.f32 %v2204, %v2204
      %v2227 = vadd.f32 %v2219, %v2220
      %v2228 = vadd.f32 %v2227, %v2221
      %v2229 = vadd.f32 %v2228, %v2222
      %v2230 = vadd.f32 %v2229, %v2223
      %v2231 = vadd.f32 %v2230, %v2224
      %v2232 = vadd.f32 %v2231, %v2225
      %v2233 = vadd.f32 %v2232, %v2226
      %v2234 = vrot.slane %v2233, 4
      %v2235 = vadd.f32 %v2233, %v2234
      %v2236 = vrot.slane %v2235, 2
      %v2237 = vadd.f32 %v2235, %v2236
      %v2238 = vrot.slane %v2237, 1
      %v2239 = vadd.f32 %v2237, %v2238
      %2240 = vst [vmem:[%s339] sm:$0x1] %v2239
      %v2241 = vpack.c.bf16 %v2198, %v2197
      %v2242 = vpack.c.bf16 %v2200, %v2199
      %v2243 = vpack.c.bf16 %v2202, %v2201
      %v2244 = vpack.c.bf16 %v2204, %v2203
      %v2249 = vunpack.c.l.b16 %v2241
      %v2250 = vunpack.c.h.b16 %v2241
      %v2251 = vunpack.c.l.b16 %v2242
      %v2252 = vunpack.c.h.b16 %v2242
      %v2253 = vunpack.c.l.b16 %v2243
      %v2254 = vunpack.c.h.b16 %v2243
      %v2255 = vunpack.c.l.b16 %v2244
      %v2256 = vunpack.c.h.b16 %v2244
      %v2257 = vpack.c.b16 %v2249, %v2249
      %v2258 = vpack.c.b16 %v2250, %v2250
      %v2259 = vpack.c.b16 %v2251, %v2251
      %v2260 = vpack.c.b16 %v2252, %v2252
      %v2261 = vpack.c.b16 %v2253, %v2253
      %v2262 = vpack.c.b16 %v2254, %v2254
      %v2263 = vpack.c.b16 %v2255, %v2255
      %v2264 = vpack.c.b16 %v2256, %v2256
      %2273 = vst [vmem:[%s333] sm:$0xf] %v2257
      %2274 = vst [vmem:[%s333 + $0x4] sm:$0xf] %v2258
      %2275 = vst [vmem:[%s333 + $0x8] sm:$0xf] %v2259
      %2276 = vst [vmem:[%s333 + $0xc] sm:$0xf] %v2260
      %2277 = vst [vmem:[%s333 + $0x10] sm:$0xf] %v2261
      %2278 = vst [vmem:[%s333 + $0x14] sm:$0xf] %v2262
      %2279 = vst [vmem:[%s333 + $0x18] sm:$0xf] %v2263
      %2280 = vst [vmem:[%s333 + $0x1c] sm:$0xf] %v2264
      %v2281 = vld [vmem:[%s328 + $0xc] sm:$0xf]
      %v2282 = vld [vmem:[%s328 + $0x2c] sm:$0xf]
      %v2283 = vld [vmem:[%s328 + $0x4c] sm:$0xf]
      %v2284 = vld [vmem:[%s328 + $0x6c] sm:$0xf]
      %v2285 = vld [vmem:[%s328 + $0x8c] sm:$0xf]
      %v2286 = vld [vmem:[%s328 + $0xac] sm:$0xf]
      %v2287 = vld [vmem:[%s328 + $0xcc] sm:$0xf]
      %v2288 = vld [vmem:[%s328 + $0xec] sm:$0xf]
      %v2289 = vld [vmem:[%s2] sm:$0xf]
      %v2290 = vld [vmem:[%s2 + $0x4] sm:$0xf]
      %v2291 = vld [vmem:[%s2 + $0x8] sm:$0xf]
      %v2292 = vld [vmem:[%s2 + $0xc] sm:$0xf]
      %v2293 = vld [vmem:[%s2 + $0x10] sm:$0xf]
      %v2294 = vld [vmem:[%s2 + $0x14] sm:$0xf]
      %v2295 = vld [vmem:[%s2 + $0x18] sm:$0xf]
      %v2296 = vld [vmem:[%s2 + $0x1c] sm:$0xf]
      %v2297 = vld [vmem:[%s2 + $0x20] sm:$0xf]
      %v2298 = vld [vmem:[%s2 + $0x24] sm:$0xf]
      %v2299 = vld [vmem:[%s2 + $0x28] sm:$0xf]
      %v2300 = vld [vmem:[%s2 + $0x2c] sm:$0xf]
      %v2301 = vld [vmem:[%s2 + $0x30] sm:$0xf]
      %v2302 = vld [vmem:[%s2 + $0x34] sm:$0xf]
      %v2303 = vld [vmem:[%s2 + $0x38] sm:$0xf]
      %v2304 = vld [vmem:[%s2 + $0x3c] sm:$0xf]
      %v2313 = vunpack.c.l.b16 %v2281
      %v2314 = vunpack.c.l.b16 %v2282
      %v2315 = vunpack.c.l.b16 %v2283
      %v2316 = vunpack.c.l.b16 %v2284
      %v2317 = vunpack.c.l.b16 %v2285
      %v2318 = vunpack.c.l.b16 %v2286
      %v2319 = vunpack.c.l.b16 %v2287
      %v2320 = vunpack.c.l.b16 %v2288
      %v2321 = vpack.c.b16 %v2314, %v2313
      %v2322 = vpack.c.b16 %v2316, %v2315
      %v2323 = vpack.c.b16 %v2318, %v2317
      %v2324 = vpack.c.b16 %v2320, %v2319
      %v2345 = vunpack.c.l.b16 %v2289
      %v2346 = vunpack.c.l.b16 %v2290
      %v2347 = vunpack.c.l.b16 %v2291
      %v2348 = vunpack.c.l.b16 %v2292
      %v2349 = vunpack.c.l.b16 %v2293
      %v2350 = vunpack.c.l.b16 %v2294
      %v2351 = vunpack.c.l.b16 %v2295
      %v2352 = vunpack.c.l.b16 %v2296
      %v2353 = vunpack.c.l.b16 %v2297
      %v2354 = vunpack.c.l.b16 %v2298
      %v2355 = vunpack.c.l.b16 %v2299
      %v2356 = vunpack.c.l.b16 %v2300
      %v2357 = vunpack.c.l.b16 %v2301
      %v2358 = vunpack.c.l.b16 %v2302
      %v2359 = vunpack.c.l.b16 %v2303
      %v2360 = vunpack.c.l.b16 %v2304
      %v2361 = vpack.c.b16 %v2346, %v2345
      %v2362 = vpack.c.b16 %v2348, %v2347
      %v2363 = vpack.c.b16 %v2350, %v2349
      %v2364 = vpack.c.b16 %v2352, %v2351
      %v2365 = vpack.c.b16 %v2354, %v2353
      %v2366 = vpack.c.b16 %v2356, %v2355
      %v2367 = vpack.c.b16 %v2358, %v2357
      %v2368 = vpack.c.b16 %v2360, %v2359
      %2377 = vmatprep.subr.bf16.mxu0 0
      %2378 = vmatpush1.bf16.msra.mxu0 %v2368
      %2379 = vmatprep.subr.bf16.mxu0 0
      %2380 = vmatpush1.bf16.msra.mxu0 %v2367
      %2381 = vmatprep.subr.bf16.mxu0 0
      %2382 = vmatpush1.bf16.msra.mxu0 %v2366
      %2383 = vmatprep.subr.bf16.mxu0 0
      %2384 = vmatpush1.bf16.msra.mxu0 %v2365
      %2385 = vmatprep.subr.bf16.mxu0 0
      %2386 = vmatpush1.bf16.msra.mxu0 %v2364
      %2387 = vmatprep.subr.bf16.mxu0 0
      %2388 = vmatpush1.bf16.msra.mxu0 %v2363
      %2389 = vmatprep.subr.bf16.mxu0 0
      %2390 = vmatpush1.bf16.msra.mxu0 %v2362
      %2391 = vmatprep.subr.bf16.mxu0 0
      %2392 = vmatpush1.bf16.msra.mxu0 %v2361
      %2393 = vmatprep.subr.bf16.mxu0 0
      %2394 = vmatpush2.bf16.msra.mxu0 0
      %2395 = vmatprep.subr.bf16.mxu0 0
      %2396 = vmatpush2.bf16.msra.mxu0 0
      %2397 = vmatprep.subr.bf16.mxu0 0
      %2398 = vmatpush2.bf16.msra.mxu0 0
      %2399 = vmatprep.subr.bf16.mxu0 0
      %2400 = vmatpush2.bf16.msra.mxu0 0
      %2401 = vmatprep.subr.bf16.mxu0 0
      %2402 = vmatpush2.bf16.msra.mxu0 0
      %2403 = vmatprep.subr.bf16.mxu0 0
      %2404 = vmatpush2.bf16.msra.mxu0 0
      %2405 = vmatprep.subr.bf16.mxu0 0
      %2406 = vmatpush2.bf16.msra.mxu0 0
      %2407 = vmatprep.subr.bf16.mxu0 0
      %2408 = vmatpush2.bf16.msra.mxu0 0
      %2409 = vmatprep.mubr.bf16.mxu0 0
      %2410 = vmatmul.mubr.bf16.gmra.mxu0 %v2321
      %v2411 = vpop.f32.mrf.mxu0
      %v2412 = vadd.f32 0.0, %v2411
      %v2413 = vpop.f32.mrf.mxu0
      %v2414 = vpop.f32.mrf.mxu0
      %v2415 = vadd.f32 0.0, %v2414
      %v2416 = vpop.f32.mrf.mxu0
      %2417 = vmatprep.mubr.bf16.mxu0 0
      %2418 = vmatmul.mubr.bf16.gmra.mxu0 %v2322
      %v2419 = vpop.f32.mrf.mxu0
      %v2420 = vadd.f32 0.0, %v2419
      %v2421 = vpop.f32.mrf.mxu0
      %v2422 = vpop.f32.mrf.mxu0
      %v2423 = vadd.f32 0.0, %v2422
      %v2424 = vpop.f32.mrf.mxu0
      %2425 = vmatprep.mubr.bf16.mxu0 0
      %2426 = vmatmul.mubr.bf16.gmra.mxu0 %v2323
      %v2427 = vpop.f32.mrf.mxu0
      %v2428 = vadd.f32 0.0, %v2427
      %v2429 = vpop.f32.mrf.mxu0
      %v2430 = vpop.f32.mrf.mxu0
      %v2431 = vadd.f32 0.0, %v2430
      %v2432 = vpop.f32.mrf.mxu0
      %2433 = vmatprep.mubr.bf16.mxu0 0
      %2434 = vmatmul.mubr.bf16.gmra.mxu0 %v2324
      %v2435 = vpop.f32.mrf.mxu0
      %v2436 = vadd.f32 0.0, %v2435
      %v2437 = vpop.f32.mrf.mxu0
      %v2438 = vpop.f32.mrf.mxu0
      %v2439 = vadd.f32 0.0, %v2438
      %v2440 = vpop.f32.mrf.mxu0
      %2441 = vdwg.mxu0
      %v2442 = vadd.f32 %v2412, %v2415
      %v2443 = vadd.f32 %v2442, %v2420
      %v2444 = vadd.f32 %v2443, %v2423
      %v2445 = vadd.f32 %v2444, %v2428
      %v2446 = vadd.f32 %v2445, %v2431
      %v2447 = vadd.f32 %v2446, %v2436
      %v2448 = vadd.f32 %v2447, %v2439
      %v2449 = vrot.slane %v2448, 4
      %v2450 = vadd.f32 %v2448, %v2449
      %v2451 = vrot.slane %v2450, 2
      %v2452 = vadd.f32 %v2450, %v2451
      %v2453 = vrot.slane %v2452, 1
      %v2454 = vadd.f32 %v2452, %v2453
      %2455 = vst [vmem:[%s347] sm:$0x1] %v2454
      %v2456 = vmul.f32 %v2412, %v2412
      %v2457 = vmul.f32 %v2415, %v2415
      %v2458 = vmul.f32 %v2420, %v2420
      %v2459 = vmul.f32 %v2423, %v2423
      %v2460 = vmul.f32 %v2428, %v2428
      %v2461 = vmul.f32 %v2431, %v2431
      %v2462 = vmul.f32 %v2436, %v2436
      %v2463 = vmul.f32 %v2439, %v2439
      %v2464 = vadd.f32 %v2456, %v2457
      %v2465 = vadd.f32 %v2464, %v2458
      %v2466 = vadd.f32 %v2465, %v2459
      %v2467 = vadd.f32 %v2466, %v2460
      %v2468 = vadd.f32 %v2467, %v2461
      %v2469 = vadd.f32 %v2468, %v2462
      %v2470 = vadd.f32 %v2469, %v2463
      %v2471 = vrot.slane %v2470, 4
      %v2472 = vadd.f32 %v2470, %v2471
      %v2473 = vrot.slane %v2472, 2
      %v2474 = vadd.f32 %v2472, %v2473
      %v2475 = vrot.slane %v2474, 1
      %v2476 = vadd.f32 %v2474, %v2475
      %2477 = vst [vmem:[%s350] sm:$0x1] %v2476
      %v2478 = vpack.c.bf16 %v2415, %v2412
      %v2479 = vpack.c.bf16 %v2423, %v2420
      %v2480 = vpack.c.bf16 %v2431, %v2428
      %v2481 = vpack.c.bf16 %v2439, %v2436
      %v2486 = vunpack.c.l.b16 %v2478
      %v2487 = vunpack.c.h.b16 %v2478
      %v2488 = vunpack.c.l.b16 %v2479
      %v2489 = vunpack.c.h.b16 %v2479
      %v2490 = vunpack.c.l.b16 %v2480
      %v2491 = vunpack.c.h.b16 %v2480
      %v2492 = vunpack.c.l.b16 %v2481
      %v2493 = vunpack.c.h.b16 %v2481
      %v2494 = vpack.c.b16 %v2486, %v2486
      %v2495 = vpack.c.b16 %v2487, %v2487
      %v2496 = vpack.c.b16 %v2488, %v2488
      %v2497 = vpack.c.b16 %v2489, %v2489
      %v2498 = vpack.c.b16 %v2490, %v2490
      %v2499 = vpack.c.b16 %v2491, %v2491
      %v2500 = vpack.c.b16 %v2492, %v2492
      %v2501 = vpack.c.b16 %v2493, %v2493
      %2510 = vst [vmem:[%s344] sm:$0xf] %v2494
      %2511 = vst [vmem:[%s344 + $0x4] sm:$0xf] %v2495
      %2512 = vst [vmem:[%s344 + $0x8] sm:$0xf] %v2496
      %2513 = vst [vmem:[%s344 + $0xc] sm:$0xf] %v2497
      %2514 = vst [vmem:[%s344 + $0x10] sm:$0xf] %v2498
      %2515 = vst [vmem:[%s344 + $0x14] sm:$0xf] %v2499
      %2516 = vst [vmem:[%s344 + $0x18] sm:$0xf] %v2500
      %2517 = vst [vmem:[%s344 + $0x1c] sm:$0xf] %v2501
      %p2518 = scmp.lt.s32.totalorder %s20, 1
      %s2519 = scalar_select %p2518, %s20, 1
      %s2520 = smul.addr %s2519, 8
      %s2521 = smul.addr %s2520, 4
      %s2522 = scalar_lea.vmem %s3, %s2521
      %p2523 = scmp.lt.s32.totalorder %s20, 1
      %s2524 = scalar_select %p2523, %s20, 1
      %s2525 = scalar_lea.vmem %s4, %s2524
      %p2526 = scmp.lt.s32.totalorder %s20, 1
      %s2527 = scalar_select %p2526, %s20, 1
      %s2528 = scalar_lea.vmem %s5, %s2527
      %p2529 = scmp.lt.s32.totalorder %s20, 1
      %s2530 = scalar_select %p2529, %s20, 1
      %s2531 = smul.addr %s2530, 8
      %s2532 = smul.addr %s2531, 4
      %s2533 = scalar_lea.vmem %s6, %s2532
      %p2534 = scmp.lt.s32.totalorder %s20, 1
      %s2535 = scalar_select %p2534, %s20, 1
      %s2536 = scalar_lea.vmem %s7, %s2535
      %p2537 = scmp.lt.s32.totalorder %s20, 1
      %s2538 = scalar_select %p2537, %s20, 1
      %s2539 = scalar_lea.vmem %s8, %s2538
      // Predicated region
      $region33: #{basic_block_forward.3} parent=31 // pred_check
        %p2540 = pneg %p106
      $region34: #{basic_block_forward.3} parent=31 // pred_check_branch
        %2542 = sbr.rel (%p2540) target = $region36
      $region35: #{basic_block_forward.3} parent=31 // pred_region
        _
      $region36: #{basic_block_forward.3} parent=31 // pred_fallthru
        _
      // Predicated region
      $region37: #{basic_block_forward.3} parent=31 // pred_check
        %p2543 = pneg %p132
      $region38: #{basic_block_forward.3} parent=31 // pred_check_branch
        %2545 = sbr.rel (%p2543) target = $region40
      $region39: #{basic_block_forward.3} parent=31 // pred_region
        _
      $region40: #{basic_block_forward.3} parent=31 // pred_fallthru
        _
      // Predicated region
      $region41: #{basic_block_forward.3} parent=31 // pred_check
        %p2546 = pneg %p158
      $region42: #{basic_block_forward.3} parent=31 // pred_check_branch
        %2548 = sbr.rel (%p2546) target = $region44
      $region43: #{basic_block_forward.3} parent=31 // pred_region
        _
      $region44: #{basic_block_forward.3} parent=31 // pred_fallthru
        _
      // Predicated region
      $region45: #{basic_block_forward.3} parent=31 // pred_check
        %p2549 = pneg %p184
      $region46: #{basic_block_forward.3} parent=31 // pred_check_branch
        %2551 = sbr.rel (%p2549) target = $region48
      $region47: #{basic_block_forward.3} parent=31 // pred_region
        _
      $region48: #{basic_block_forward.3} parent=31 // pred_fallthru
        _
      // Predicated region
      $region49: #{basic_block_forward.3} parent=31 // pred_check
        %p2552 = pneg %p210
      $region50: #{basic_block_forward.3} parent=31 // pred_check_branch
        %2554 = sbr.rel (%p2552) target = $region52
      $region51: #{basic_block_forward.3} parent=31 // pred_region
        _
      $region52: #{basic_block_forward.3} parent=31 // pred_fallthru
        _
      // Predicated region
      $region53: #{basic_block_forward.3} parent=31 // pred_check
        %p2555 = pneg %p236
      $region54: #{basic_block_forward.3} parent=31 // pred_check_branch
        %2557 = sbr.rel (%p2555) target = $region56
      $region55: #{basic_block_forward.3} parent=31 // pred_region
        _
      $region56: #{basic_block_forward.3} parent=31 // pred_fallthru
        _
    $region32: #{basic_block_forward.3} parent=5 // pred_fallthru
      _
    %p2558 = scmp.le.s32.totalorder 2, %s15
    // Predicated region
    $region57: #{basic_block_forward.3} parent=5 // pred_check
      %p2559 = pneg %p2558
    $region58: #{basic_block_forward.3} parent=5 // pred_check_branch
      %2561 = sbr.rel (%p2559) target = $region60
    $region59: #{basic_block_forward.3} parent=5 // pred_region
      %s2562 = ssub.s32 %s15, 2
      // Predicated region
      $region61: #{basic_block_forward.3} parent=59 // pred_check
        %p2563 = pneg %p112
      $region62: #{basic_block_forward.3} parent=59 // pred_check_branch
        %2565 = sbr.rel (%p2563) target = $region64
      $region63: #{basic_block_forward.3} parent=59 // pred_region
        %p2566 = scmp.lt.s32.totalorder %s21, 1
        %s2567 = scalar_select %p2566, %s21, 1
        %s2568 = smul.addr %s2567, 8
        %s2569 = smul.addr %s2568, 4
        %s2570 = scalar_lea.vmem %s3, %s2569
      $region64: #{basic_block_forward.3} parent=59 // pred_fallthru
        _
      // Predicated region
      $region65: #{basic_block_forward.3} parent=59 // pred_check
        %p2571 = pneg %p138
      $region66: #{basic_block_forward.3} parent=59 // pred_check_branch
        %2573 = sbr.rel (%p2571) target = $region68
      $region67: #{basic_block_forward.3} parent=59 // pred_region
        %p2574 = scmp.lt.s32.totalorder %s21, 1
        %s2575 = scalar_select %p2574, %s21, 1
        %s2576 = scalar_lea.vmem %s4, %s2575
      $region68: #{basic_block_forward.3} parent=59 // pred_fallthru
        _
      // Predicated region
      $region69: #{basic_block_forward.3} parent=59 // pred_check
        %p2577 = pneg %p164
      $region70: #{basic_block_forward.3} parent=59 // pred_check_branch
        %2579 = sbr.rel (%p2577) target = $region72
      $region71: #{basic_block_forward.3} parent=59 // pred_region
        %p2580 = scmp.lt.s32.totalorder %s21, 1
        %s2581 = scalar_select %p2580, %s21, 1
        %s2582 = scalar_lea.vmem %s5, %s2581
      $region72: #{basic_block_forward.3} parent=59 // pred_fallthru
        _
      // Predicated region
      $region73: #{basic_block_forward.3} parent=59 // pred_check
        %p2583 = pneg %p190
      $region74: #{basic_block_forward.3} parent=59 // pred_check_branch
        %2585 = sbr.rel (%p2583) target = $region76
      $region75: #{basic_block_forward.3} parent=59 // pred_region
        %p2586 = scmp.lt.s32.totalorder %s21, 1
        %s2587 = scalar_select %p2586, %s21, 1
        %s2588 = smul.addr %s2587, 8
        %s2589 = smul.addr %s2588, 4
        %s2590 = scalar_lea.vmem %s6, %s2589
      $region76: #{basic_block_forward.3} parent=59 // pred_fallthru
        _
      // Predicated region
      $region77: #{basic_block_forward.3} parent=59 // pred_check
        %p2591 = pneg %p216
      $region78: #{basic_block_forward.3} parent=59 // pred_check_branch
        %2593 = sbr.rel (%p2591) target = $region80
      $region79: #{basic_block_forward.3} parent=59 // pred_region
        %p2594 = scmp.lt.s32.totalorder %s21, 1
        %s2595 = scalar_select %p2594, %s21, 1
        %s2596 = scalar_lea.vmem %s7, %s2595
      $region80: #{basic_block_forward.3} parent=59 // pred_fallthru
        _
      // Predicated region
      $region81: #{basic_block_forward.3} parent=59 // pred_check
        %p2597 = pneg %p242
      $region82: #{basic_block_forward.3} parent=59 // pred_check_branch
        %2599 = sbr.rel (%p2597) target = $region84
      $region83: #{basic_block_forward.3} parent=59 // pred_region
        %p2600 = scmp.lt.s32.totalorder %s21, 1
        %s2601 = scalar_select %p2600, %s21, 1
        %s2602 = scalar_lea.vmem %s8, %s2601
      $region84: #{basic_block_forward.3} parent=59 // pred_fallthru
        _
    $region60: #{basic_block_forward.3} parent=5 // pred_fallthru
      _
  $region6: #{basic_block_forward.3} parent=0 // loop_footer
    %s19 = sadd.s32 1, %s15
  $region7: #{basic_block_forward.3} parent=0 // loop_footer_branch
    %14 = sbr.rel target = $region3
  $region8: #{basic_block_forward.3} parent=0 // loop_exit
    _

// kernel: basic_block_forward.4
$region0: #{basic_block_forward.4}
  #allocation0 [shape = 'u32[]', space=smem, size = 0x4, offset = 0x4, fixed_abs, tag = 'smem constant byte address 0x4 - core index']
  #allocation1 [shape = 'u32[144,128]{1,0:T(1,128)}', space=vmem, size = 0x12000, scoped, tag = 'internal scratch']
  #allocation2 [shape = 'bf16[10,10,128]{2,1,0:T(8,128)(2,1)}', space=vmem, size = 0xa000, scoped, tag = 'scratch operand']
  %s0 = inlined_call_operand.vmem [shape: bf16[2,64,128], index: 0, kind: input, shape index: {}]
  %s1 = inlined_call_operand.vmem [shape: bf16[3,3,128,128], index: 1, kind: input, shape index: {}]
  %s2 = inlined_call_operand.vmem [shape: f32[1,128], index: 2, kind: input, shape index: {}]
  %s3 = inlined_call_operand.vmem [shape: f32[1,128], index: 3, kind: input, shape index: {}]
  %s4 = inlined_call_operand.vmem [shape: bf16[2,64,128], index: 4, kind: output, shape index: {0}]
  %s5 = inlined_call_operand.vmem [shape: f32[2,1,128], index: 5, kind: output, shape index: {1}]
  %s6 = inlined_call_operand.vmem [shape: f32[2,1,128], index: 6, kind: output, shape index: {2}]
  %7 = xla_tuple %s4, %s5, %s6
  %s8 = sld [smem:[#allocation0]]
  $region65: #{basic_block_forward.4} parent=0
    _
  %s10 = ssub.s32 1, %s8
  %s11 = scalar_select 0, %s10, %s8
  loop: start=0, step=1, limit=4
  $region2: #{basic_block_forward.4} parent=0 // loop_pre_header
    _
  $region3: #{basic_block_forward.4} parent=0 // loop_header
    %s13 = sphi 0, %s17
    %p14 = scmp.ge.s32.totalorder %s13, 4
    %s23 = sphi 0, %s25
    %s26 = sphi 0, %s23
    %s27 = sphi 0, %s26
    %s43 = sphi 0, %s27
    %s47 = sphi 0, %s47
    %s49 = sphi 0, %s47
    %s50 = sphi 0, %s49
    %s64 = sphi 0, %s50
    %s68 = sphi 0, %s68
    %s70 = sphi 0, %s68
    %s71 = sphi 0, %s70
    %s85 = sphi 0, %s71
    %s89 = sphi 0, %s89
    %s91 = sphi 0, %s89
    %s92 = sphi 0, %s91
    %s106 = sphi 0, %s92
    %s112 = sphi 0, %s114
    %s115 = sphi 0, %s112
    %s116 = sphi 0, %s115
    %s132 = sphi 0, %s116
    %s138 = sphi 0, %s140
    %s141 = sphi 0, %s138
    %s142 = sphi 0, %s141
    %s158 = sphi 0, %s142
    %s164 = sphi 0, %s166
    %s167 = sphi 0, %s164
    %s168 = sphi 0, %s167
    %s184 = sphi 0, %s168
  $region4: #{basic_block_forward.4} parent=0 // loop_header_branch
    %16 = sbr.rel (%p14) target = $region8
  $region5: #{basic_block_forward.4} parent=0 // loop_body
    %s18 = ssub.s32 %s13, 1
    %s19 = ssub.s32 %s13, 2
    %s20 = sadd.s32 %s13, 1
    %s21 = ssub.s32 %s13, %s20
    %p22 = scmp.eq.s32.totalorder %s21, 0
    %s24 = sadd.s32 %s23, 1
    %s25 = scalar_select %p22, %s23, %s24
    %p28 = pneg %p22
    %p29 = scmp.eq.s32.totalorder %s13, 1
    %p30 = por %p28, %p29
    %p31 = scmp.ne.s32.totalorder %s23, %s26
    %p32 = scmp.eq.s32.totalorder %s13, 0
    %p33 = por %p31, %p32
    %p34 = scmp.ne.s32.totalorder %s23, %s26
    %p35 = scmp.eq.s32.totalorder %s18, 1
    %p36 = por %p34, %p35
    %p37 = scmp.ne.s32.totalorder %s26, %s27
    %p38 = scmp.eq.s32.totalorder %s18, 0
    %p39 = por %p37, %p38
    %p40 = scmp.ne.s32.totalorder %s26, %s27
    %p41 = scmp.eq.s32.totalorder %s19, 1
    %p42 = por %p40, %p41
    %p44 = scmp.ne.s32.totalorder %s27, %s43
    %p45 = scmp.eq.s32.totalorder %s19, 0
    %p46 = por %p44, %p45
    %s48 = sadd.s32 %s47, 1
    %p51 = scmp.eq.s32.totalorder %s13, 1
    %p52 = scmp.ne.s32.totalorder %s47, %s49
    %p53 = scmp.eq.s32.totalorder %s13, 0
    %p54 = por %p52, %p53
    %p55 = scmp.ne.s32.totalorder %s47, %s49
    %p56 = scmp.eq.s32.totalorder %s18, 1
    %p57 = por %p55, %p56
    %p58 = scmp.ne.s32.totalorder %s49, %s50
    %p59 = scmp.eq.s32.totalorder %s18, 0
    %p60 = por %p58, %p59
    %p61 = scmp.ne.s32.totalorder %s49, %s50
    %p62 = scmp.eq.s32.totalorder %s19, 1
    %p63 = por %p61, %p62
    %p65 = scmp.ne.s32.totalorder %s50, %s64
    %p66 = scmp.eq.s32.totalorder %s19, 0
    %p67 = por %p65, %p66
    %s69 = sadd.s32 %s68, 1
    %p72 = scmp.eq.s32.totalorder %s13, 1
    %p73 = scmp.ne.s32.totalorder %s68, %s70
    %p74 = scmp.eq.s32.totalorder %s13, 0
    %p75 = por %p73, %p74
    %p76 = scmp.ne.s32.totalorder %s68, %s70
    %p77 = scmp.eq.s32.totalorder %s18, 1
    %p78 = por %p76, %p77
    %p79 = scmp.ne.s32.totalorder %s70, %s71
    %p80 = scmp.eq.s32.totalorder %s18, 0
    %p81 = por %p79, %p80
    %p82 = scmp.ne.s32.totalorder %s70, %s71
    %p83 = scmp.eq.s32.totalorder %s19, 1
    %p84 = por %p82, %p83
    %p86 = scmp.ne.s32.totalorder %s71, %s85
    %p87 = scmp.eq.s32.totalorder %s19, 0
    %p88 = por %p86, %p87
    %s90 = sadd.s32 %s89, 1
    %p93 = scmp.eq.s32.totalorder %s13, 1
    %p94 = scmp.ne.s32.totalorder %s89, %s91
    %p95 = scmp.eq.s32.totalorder %s13, 0
    %p96 = por %p94, %p95
    %p97 = scmp.ne.s32.totalorder %s89, %s91
    %p98 = scmp.eq.s32.totalorder %s18, 1
    %p99 = por %p97, %p98
    %p100 = scmp.ne.s32.totalorder %s91, %s92
    %p101 = scmp.eq.s32.totalorder %s18, 0
    %p102 = por %p100, %p101
    %p103 = scmp.ne.s32.totalorder %s91, %s92
    %p104 = scmp.eq.s32.totalorder %s19, 1
    %p105 = por %p103, %p104
    %p107 = scmp.ne.s32.totalorder %s92, %s106
    %p108 = scmp.eq.s32.totalorder %s19, 0
    %p109 = por %p107, %p108
    %s110 = ssub.s32 %s13, %s20
    %p111 = scmp.eq.s32.totalorder %s110, 0
    %s113 = sadd.s32 %s112, 1
    %s114 = scalar_select %p111, %s112, %s113
    %p117 = pneg %p111
    %p118 = scmp.eq.s32.totalorder %s13, 1
    %p119 = por %p117, %p118
    %p120 = scmp.ne.s32.totalorder %s112, %s115
    %p121 = scmp.eq.s32.totalorder %s13, 0
    %p122 = por %p120, %p121
    %p123 = scmp.ne.s32.totalorder %s112, %s115
    %p124 = scmp.eq.s32.totalorder %s18, 1
    %p125 = por %p123, %p124
    %p126 = scmp.ne.s32.totalorder %s115, %s116
    %p127 = scmp.eq.s32.totalorder %s18, 0
    %p128 = por %p126, %p127
    %p129 = scmp.ne.s32.totalorder %s115, %s116
    %p130 = scmp.eq.s32.totalorder %s19, 1
    %p131 = por %p129, %p130
    %p133 = scmp.ne.s32.totalorder %s116, %s132
    %p134 = scmp.eq.s32.totalorder %s19, 0
    %p135 = por %p133, %p134
    %s136 = ssub.s32 %s13, %s20
    %p137 = scmp.eq.s32.totalorder %s136, 0
    %s139 = sadd.s32 %s138, 1
    %s140 = scalar_select %p137, %s138, %s139
    %p143 = pneg %p137
    %p144 = scmp.eq.s32.totalorder %s13, 1
    %p145 = por %p143, %p144
    %p146 = scmp.ne.s32.totalorder %s138, %s141
    %p147 = scmp.eq.s32.totalorder %s13, 0
    %p148 = por %p146, %p147
    %p149 = scmp.ne.s32.totalorder %s138, %s141
    %p150 = scmp.eq.s32.totalorder %s18, 1
    %p151 = por %p149, %p150
    %p152 = scmp.ne.s32.totalorder %s141, %s142
    %p153 = scmp.eq.s32.totalorder %s18, 0
    %p154 = por %p152, %p153
    %p155 = scmp.ne.s32.totalorder %s141, %s142
    %p156 = scmp.eq.s32.totalorder %s19, 1
    %p157 = por %p155, %p156
    %p159 = scmp.ne.s32.totalorder %s142, %s158
    %p160 = scmp.eq.s32.totalorder %s19, 0
    %p161 = por %p159, %p160
    %s162 = ssub.s32 %s13, %s20
    %p163 = scmp.eq.s32.totalorder %s162, 0
    %s165 = sadd.s32 %s164, 1
    %s166 = scalar_select %p163, %s164, %s165
    %p169 = pneg %p163
    %p170 = scmp.eq.s32.totalorder %s13, 1
    %p171 = por %p169, %p170
    %p172 = scmp.ne.s32.totalorder %s164, %s167
    %p173 = scmp.eq.s32.totalorder %s13, 0
    %p174 = por %p172, %p173
    %p175 = scmp.ne.s32.totalorder %s164, %s167
    %p176 = scmp.eq.s32.totalorder %s18, 1
    %p177 = por %p175, %p176
    %p178 = scmp.ne.s32.totalorder %s167, %s168
    %p179 = scmp.eq.s32.totalorder %s18, 0
    %p180 = por %p178, %p179
    %p181 = scmp.ne.s32.totalorder %s167, %s168
    %p182 = scmp.eq.s32.totalorder %s19, 1
    %p183 = por %p181, %p182
    %p185 = scmp.ne.s32.totalorder %s168, %s184
    %p186 = scmp.eq.s32.totalorder %s19, 0
    %p187 = por %p185, %p186
    %p188 = scmp.le.s32.totalorder 1, %s13
    %p189 = scmp.lt.s32.totalorder %s13, 3
    %p190 = pnand %p188, %p189
    %p191 = pneg %p190
    // Predicated region
    $region9: #{basic_block_forward.4} parent=5 // pred_check
      _
    $region10: #{basic_block_forward.4} parent=5 // pred_check_branch
      %193 = sbr.rel (%p190) target = $region12
    $region11: #{basic_block_forward.4} parent=5 // pred_region
      %s194 = ssub.s32 %s13, 1
      // Predicated region
      $region13: #{basic_block_forward.4} parent=11 // pred_check
        %p195 = pneg %p60
      $region14: #{basic_block_forward.4} parent=11 // pred_check_branch
        %197 = sbr.rel (%p195) target = $region16
      $region15: #{basic_block_forward.4} parent=11 // pred_region
        _
      $region16: #{basic_block_forward.4} parent=11 // pred_fallthru
        _
      // Predicated region
      $region17: #{basic_block_forward.4} parent=11 // pred_check
        %p198 = pneg %p81
      $region18: #{basic_block_forward.4} parent=11 // pred_check_branch
        %200 = sbr.rel (%p198) target = $region20
      $region19: #{basic_block_forward.4} parent=11 // pred_region
        _
      $region20: #{basic_block_forward.4} parent=11 // pred_fallthru
        _
      // Predicated region
      $region21: #{basic_block_forward.4} parent=11 // pred_check
        %p201 = pneg %p102
      $region22: #{basic_block_forward.4} parent=11 // pred_check_branch
        %203 = sbr.rel (%p201) target = $region24
      $region23: #{basic_block_forward.4} parent=11 // pred_region
        _
      $region24: #{basic_block_forward.4} parent=11 // pred_fallthru
        _
    $region12: #{basic_block_forward.4} parent=5 // pred_fallthru
      _
    %p204 = scmp.lt.s32.totalorder %s13, 2
    // Predicated region
    $region25: #{basic_block_forward.4} parent=5 // pred_check
      %p205 = pneg %p204
    $region26: #{basic_block_forward.4} parent=5 // pred_check_branch
      %207 = sbr.rel (%p205) target = $region28
    $region27: #{basic_block_forward.4} parent=5 // pred_region
      // Predicated region
      $region29: #{basic_block_forward.4} parent=27 // pred_check
        %p208 = pneg %p33
      $region30: #{basic_block_forward.4} parent=27 // pred_check_branch
        %210 = sbr.rel (%p208) target = $region32
      $region31: #{basic_block_forward.4} parent=27 // pred_region
        %p211 = scmp.lt.s32.totalorder %s13, 1
        %s212 = scalar_select %p211, %s13, 1
        %s213 = smul.addr %s212, 8
        %s214 = smul.addr %s213, 4
        %s215 = scalar_lea.vmem %s0, %s214
      $region32: #{basic_block_forward.4} parent=27 // pred_fallthru
        _
    $region28: #{basic_block_forward.4} parent=5 // pred_fallthru
      _
    %p216 = scmp.le.s32.totalorder 1, %s13
    %p217 = scmp.lt.s32.totalorder %s13, 3
    %p218 = pnand %p216, %p217
    %p219 = pneg %p218
    // Predicated region
    $region33: #{basic_block_forward.4} parent=5 // pred_check
      _
    $region34: #{basic_block_forward.4} parent=5 // pred_check_branch
      %221 = sbr.rel (%p218) target = $region36
    $region35: #{basic_block_forward.4} parent=5 // pred_region
      %s222 = ssub.s32 %s13, 1
      %p223 = scmp.lt.s32.totalorder %s18, 1
      %s224 = scalar_select %p223, %s18, 1
      %s225 = smul.addr %s224, 8
      %s226 = smul.addr %s225, 4
      %s227 = scalar_lea.vmem %s0, %s226
      %p228 = pneg %p39
      %p229 = pneg %p36
      %p230 = pneg %p60
      %p231 = pneg %p57
      %p232 = pneg %p81
      %p233 = pneg %p78
      %p234 = pneg %p102
      %p235 = pneg %p99
      %p236 = pneg %p128
      %p237 = pneg %p125
      %p238 = scmp.lt.s32.totalorder %s18, 1
      %s239 = scalar_select %p238, %s18, 1
      %s240 = smul.addr %s239, 8
      %s241 = smul.addr %s240, 4
      %s242 = scalar_lea.vmem %s4, %s241
      %p243 = pneg %p154
      %p244 = pneg %p151
      %p245 = scmp.lt.s32.totalorder %s18, 1
      %s246 = scalar_select %p245, %s18, 1
      %s247 = scalar_lea.vmem %s5, %s246
      %p248 = pneg %p180
      %p249 = pneg %p177
      %p250 = scmp.lt.s32.totalorder %s18, 1
      %s251 = scalar_select %p250, %s18, 1
      %s252 = scalar_lea.vmem %s6, %s251
      %p253 = scmp.lt.s32.totalorder %s18, 1
      %s254 = scalar_select %p253, %s18, 1
      %s255 = smul.addr %s254, 8
      %s256 = smul.addr %s255, 4
      %s257 = scalar_lea.vmem %s0, %s256
      %p258 = scmp.lt.s32.totalorder %s18, 1
      %s259 = scalar_select %p258, %s18, 1
      %s260 = smul.addr %s259, 8
      %s261 = smul.addr %s260, 4
      %s262 = scalar_lea.vmem %s4, %s261
      %p263 = scmp.lt.s32.totalorder %s18, 1
      %s264 = scalar_select %p263, %s18, 1
      %s265 = scalar_lea.vmem %s5, %s264
      %p266 = scmp.lt.s32.totalorder %s18, 1
      %s267 = scalar_select %p266, %s18, 1
      %s268 = scalar_lea.vmem %s6, %s267
      %v270 = vld [vmem:[%s257] sm:$0xf]
      %v271 = vld [vmem:[%s257 + $0x4] sm:$0xf]
      %v272 = vld [vmem:[%s257 + $0x8] sm:$0xf]
      %v273 = vld [vmem:[%s257 + $0xc] sm:$0xf]
      %v274 = vld [vmem:[%s257 + $0x10] sm:$0xf]
      %v275 = vld [vmem:[%s257 + $0x14] sm:$0xf]
      %v276 = vld [vmem:[%s257 + $0x18] sm:$0xf]
      %v277 = vld [vmem:[%s257 + $0x1c] sm:$0xf]
      %v278 = vunpack.c.l.bf16 %v270
      %v279 = vunpack.c.l.bf16 %v271
      %v280 = vunpack.c.l.bf16 %v272
      %v281 = vunpack.c.l.bf16 %v273
      %v282 = vunpack.c.l.bf16 %v274
      %v283 = vunpack.c.l.bf16 %v275
      %v284 = vunpack.c.l.bf16 %v276
      %v285 = vunpack.c.l.bf16 %v277
      %v286 = vld [vmem:[%s2] sm:$0x1]
      %v288 = vlaneseq
      %v289 = vshrl.u32 %v288, 7
      %v290 = vsub.s32 0, %v289
      %v291 = vrot.slane %v286, %v290
      %v293 = vmul.f32 %v278, %v291
      %v294 = vmul.f32 %v279, %v291
      %v295 = vmul.f32 %v280, %v291
      %v296 = vmul.f32 %v281, %v291
      %v297 = vmul.f32 %v282, %v291
      %v298 = vmul.f32 %v283, %v291
      %v299 = vmul.f32 %v284, %v291
      %v300 = vmul.f32 %v285, %v291
      %v301 = vld [vmem:[%s3] sm:$0x1]
      %v303 = vlaneseq
      %v304 = vshrl.u32 %v303, 7
      %v305 = vsub.s32 0, %v304
      %v306 = vrot.slane %v301, %v305
      %v308 = vadd.f32 %v293, %v306
      %v309 = vadd.f32 %v294, %v306
      %v310 = vadd.f32 %v295, %v306
      %v311 = vadd.f32 %v296, %v306
      %v312 = vadd.f32 %v297, %v306
      %v313 = vadd.f32 %v298, %v306
      %v314 = vadd.f32 %v299, %v306
      %v315 = vadd.f32 %v300, %v306
      %v316 = vmax.f32 %v308, 0.0
      %v317 = vmax.f32 %v309, 0.0
      %v318 = vmax.f32 %v310, 0.0
      %v319 = vmax.f32 %v311, 0.0
      %v320 = vmax.f32 %v312, 0.0
      %v321 = vmax.f32 %v313, 0.0
      %v322 = vmax.f32 %v314, 0.0
      %v323 = vmax.f32 %v315, 0.0
      %324 = vst [vmem:[#allocation2] sm:$0xf] 0
      %325 = vst [vmem:[#allocation2 + $0x4] sm:$0x1] 0
      %326 = vst [vmem:[#allocation2 + $0x8] sm:$0xf] 0
      %327 = vst [vmem:[#allocation2 + $0xc] sm:$0x1] 0
      %328 = vst [vmem:[#allocation2 + $0x10] sm:$0xf] 0
      %329 = vst [vmem:[#allocation2 + $0x14] sm:$0x1] 0
      %330 = vst [vmem:[#allocation2 + $0x18] sm:$0xf] 0
      %331 = vst [vmem:[#allocation2 + $0x1c] sm:$0x1] 0
      %332 = vst [vmem:[#allocation2 + $0x20] sm:$0xf] 0
      %333 = vst [vmem:[#allocation2 + $0x24] sm:$0x1] 0
      %334 = vst [vmem:[#allocation2 + $0x28] sm:$0xf] 0
      %335 = vst [vmem:[#allocation2 + $0x2c] sm:$0x1] 0
      %336 = vst [vmem:[#allocation2 + $0x30] sm:$0xf] 0
      %337 = vst [vmem:[#allocation2 + $0x34] sm:$0x1] 0
      %338 = vst [vmem:[#allocation2 + $0x38] sm:$0xf] 0
      %339 = vst [vmem:[#allocation2 + $0x3c] sm:$0x1] 0
      %340 = vst [vmem:[#allocation2 + $0x40] sm:$0xf] 0
      %341 = vst [vmem:[#allocation2 + $0x44] sm:$0x1] 0
      %342 = vst [vmem:[#allocation2 + $0x48] sm:$0xf] 0
      %343 = vst [vmem:[#allocation2 + $0x4c] sm:$0x1] 0
      %v344 = vpack.c.bf16 %v316, %v316
      %v345 = vpack.c.bf16 %v317, %v317
      %v346 = vpack.c.bf16 %v318, %v318
      %v347 = vpack.c.bf16 %v319, %v319
      %v348 = vpack.c.bf16 %v320, %v320
      %v349 = vpack.c.bf16 %v321, %v321
      %v350 = vpack.c.bf16 %v322, %v322
      %v351 = vpack.c.bf16 %v323, %v323
      %v360 = vunpack.c.l.b16 %v344
      %v361 = vunpack.c.l.b16 %v345
      %v362 = vunpack.c.l.b16 %v346
      %v363 = vunpack.c.l.b16 %v347
      %v364 = vunpack.c.l.b16 %v348
      %v365 = vunpack.c.l.b16 %v349
      %v366 = vunpack.c.l.b16 %v350
      %v367 = vunpack.c.l.b16 %v351
      %v368 = vpack.c.b16 %v360, %v360
      %v369 = vpack.c.b16 %v361, %v361
      %v370 = vpack.c.b16 %v362, %v362
      %v371 = vpack.c.b16 %v363, %v363
      %v372 = vpack.c.b16 %v364, %v364
      %v373 = vpack.c.b16 %v365, %v365
      %v374 = vpack.c.b16 %v366, %v366
      %v375 = vpack.c.b16 %v367, %v367
      %v377 = vshrl.u32 %v368, 16
      %v379 = vrot.slane %v377, 7
      %v380 = vshll.u32 %v368, 16
      %v382 = vor.u32 %v379, %v380
      %v383 = vrot.slane %v379, 4
      %v385 = vshrl.u32 %v369, 16
      %v387 = vrot.slane %v385, 7
      %v388 = vshll.u32 %v369, 16
      %v390 = vor.u32 %v387, %v388
      %v391 = vrot.slane %v387, 4
      %v393 = vshrl.u32 %v370, 16
      %v395 = vrot.slane %v393, 7
      %v396 = vshll.u32 %v370, 16
      %v398 = vor.u32 %v395, %v396
      %v399 = vrot.slane %v395, 4
      %v401 = vshrl.u32 %v371, 16
      %v403 = vrot.slane %v401, 7
      %v404 = vshll.u32 %v371, 16
      %v406 = vor.u32 %v403, %v404
      %v407 = vrot.slane %v403, 4
      %v409 = vshrl.u32 %v372, 16
      %v411 = vrot.slane %v409, 7
      %v412 = vshll.u32 %v372, 16
      %v414 = vor.u32 %v411, %v412
      %v415 = vrot.slane %v411, 4
      %v417 = vshrl.u32 %v373, 16
      %v419 = vrot.slane %v417, 7
      %v420 = vshll.u32 %v373, 16
      %v422 = vor.u32 %v419, %v420
      %v423 = vrot.slane %v419, 4
      %v425 = vshrl.u32 %v374, 16
      %v427 = vrot.slane %v425, 7
      %v428 = vshll.u32 %v374, 16
      %v430 = vor.u32 %v427, %v428
      %v431 = vrot.slane %v427, 4
      %v433 = vshrl.u32 %v375, 16
      %v435 = vrot.slane %v433, 7
      %v436 = vshll.u32 %v375, 16
      %v438 = vor.u32 %v435, %v436
      %v439 = vrot.slane %v435, 4
      %s456 = scalar_lea.vmem [#allocation2], 8
      %vm457 = vcmask 1043456
      %vm458 = vsmask.f32 7938
      %vm459 = vmand %vm457, %vm458
      %v460 = vld [vmem:[%s456] sm:$0xf]
      %v461 = vsel %vm459, %v382, %v460
      %462 = vst [vmem:[%s456] sm:$0xf] %v461
      %vm463 = vcmask 1040384
      %vm464 = vsmask.f32 256
      %vm465 = vmand %vm463, %vm464
      %v466 = vld [vmem:[%s456 + $0x4] sm:$0x1]
      %v467 = vsel %vm465, %v383, %v466
      %468 = vst [vmem:[%s456 + $0x4] sm:$0x1] %v467
      %v469 = vld [vmem:[%s456 + $0x8] sm:$0xf]
      %v470 = vsel %vm459, %v390, %v469
      %471 = vst [vmem:[%s456 + $0x8] sm:$0xf] %v470
      %v472 = vld [vmem:[%s456 + $0xc] sm:$0x1]
      %v473 = vsel %vm465, %v391, %v472
      %474 = vst [vmem:[%s456 + $0xc] sm:$0x1] %v473
      %v475 = vld [vmem:[%s456 + $0x10] sm:$0xf]
      %v476 = vsel %vm459, %v398, %v475
      %477 = vst [vmem:[%s456 + $0x10] sm:$0xf] %v476
      %v478 = vld [vmem:[%s456 + $0x14] sm:$0x1]
      %v479 = vsel %vm465, %v399, %v478
      %480 = vst [vmem:[%s456 + $0x14] sm:$0x1] %v479
      %v481 = vld [vmem:[%s456 + $0x18] sm:$0xf]
      %v482 = vsel %vm459, %v406, %v481
      %483 = vst [vmem:[%s456 + $0x18] sm:$0xf] %v482
      %v484 = vld [vmem:[%s456 + $0x1c] sm:$0x1]
      %v485 = vsel %vm465, %v407, %v484
      %486 = vst [vmem:[%s456 + $0x1c] sm:$0x1] %v485
      %v487 = vld [vmem:[%s456 + $0x20] sm:$0xf]
      %v488 = vsel %vm459, %v414, %v487
      %489 = vst [vmem:[%s456 + $0x20] sm:$0xf] %v488
      %v490 = vld [vmem:[%s456 + $0x24] sm:$0x1]
      %v491 = vsel %vm465, %v415, %v490
      %492 = vst [vmem:[%s456 + $0x24] sm:$0x1] %v491
      %v493 = vld [vmem:[%s456 + $0x28] sm:$0xf]
      %v494 = vsel %vm459, %v422, %v493
      %495 = vst [vmem:[%s456 + $0x28] sm:$0xf] %v494
      %v496 = vld [vmem:[%s456 + $0x2c] sm:$0x1]
      %v497 = vsel %vm465, %v423, %v496
      %498 = vst [vmem:[%s456 + $0x2c] sm:$0x1] %v497
      %v499 = vld [vmem:[%s456 + $0x30] sm:$0xf]
      %v500 = vsel %vm459, %v430, %v499
      %501 = vst [vmem:[%s456 + $0x30] sm:$0xf] %v500
      %v502 = vld [vmem:[%s456 + $0x34] sm:$0x1]
      %v503 = vsel %vm465, %v431, %v502
      %504 = vst [vmem:[%s456 + $0x34] sm:$0x1] %v503
      %v505 = vld [vmem:[%s456 + $0x38] sm:$0xf]
      %v506 = vsel %vm459, %v438, %v505
      %507 = vst [vmem:[%s456 + $0x38] sm:$0xf] %v506
      %v508 = vld [vmem:[%s456 + $0x3c] sm:$0x1]
      %v509 = vsel %vm465, %v439, %v508
      %510 = vst [vmem:[%s456 + $0x3c] sm:$0x1] %v509
      %v511 = vld [vmem:[#allocation2] sm:$0xf]
      %v512 = vld [vmem:[#allocation2 + $0x8] sm:$0xf]
      %v513 = vld [vmem:[#allocation2 + $0x10] sm:$0xf]
      %v514 = vld [vmem:[#allocation2 + $0x18] sm:$0xf]
      %v515 = vld [vmem:[#allocation2 + $0x20] sm:$0xf]
      %v516 = vld [vmem:[#allocation2 + $0x28] sm:$0xf]
      %v517 = vld [vmem:[#allocation2 + $0x30] sm:$0xf]
      %v518 = vld [vmem:[#allocation2 + $0x38] sm:$0xf]
      %v519 = vld [vmem:[%s1] sm:$0xf]
      %v520 = vld [vmem:[%s1 + $0x4] sm:$0xf]
      %v521 = vld [vmem:[%s1 + $0x8] sm:$0xf]
      %v522 = vld [vmem:[%s1 + $0xc] sm:$0xf]
      %v523 = vld [vmem:[%s1 + $0x10] sm:$0xf]
      %v524 = vld [vmem:[%s1 + $0x14] sm:$0xf]
      %v525 = vld [vmem:[%s1 + $0x18] sm:$0xf]
      %v526 = vld [vmem:[%s1 + $0x1c] sm:$0xf]
      %v527 = vld [vmem:[%s1 + $0x20] sm:$0xf]
      %v528 = vld [vmem:[%s1 + $0x24] sm:$0xf]
      %v529 = vld [vmem:[%s1 + $0x28] sm:$0xf]
      %v530 = vld [vmem:[%s1 + $0x2c] sm:$0xf]
      %v531 = vld [vmem:[%s1 + $0x30] sm:$0xf]
      %v532 = vld [vmem:[%s1 + $0x34] sm:$0xf]
      %v533 = vld [vmem:[%s1 + $0x38] sm:$0xf]
      %v534 = vld [vmem:[%s1 + $0x3c] sm:$0xf]
      %v535 = vld [vmem:[#allocation2 + $0x4] sm:$0x1]
      %v536 = vld [vmem:[#allocation2 + $0xc] sm:$0x1]
      %v537 = vld [vmem:[#allocation2 + $0x14] sm:$0x1]
      %v538 = vld [vmem:[#allocation2 + $0x1c] sm:$0x1]
      %v539 = vld [vmem:[#allocation2 + $0x24] sm:$0x1]
      %v540 = vld [vmem:[#allocation2 + $0x2c] sm:$0x1]
      %v541 = vld [vmem:[#allocation2 + $0x34] sm:$0x1]
      %v542 = vld [vmem:[#allocation2 + $0x3c] sm:$0x1]
      %vm543 = vsmask.f32 3328
      %vm544 = vsmask.f32 7440
      %vm545 = vmor %vm543, %vm544
      %v547 = vshrl.u32 %v511, 16
      %v549 = vrot.slane %v547, 4
      %v550 = vshll.u32 %v511, 16
      %v552 = vrot.slane %v550, 5
      %v553 = vor.u32 %v549, %v552
      %v554 = vrot.slane %v553, 4
      %v556 = vshll.u32 %v535, 16
      %v558 = vrot.slane %v556, 5
      %v559 = vsel %vm545, %v554, %v558
      %v561 = vshrl.u32 %v512, 16
      %v563 = vrot.slane %v561, 4
      %v564 = vshll.u32 %v512, 16
      %v566 = vrot.slane %v564, 5
      %v567 = vor.u32 %v563, %v566
      %v568 = vrot.slane %v567, 4
      %v570 = vshll.u32 %v536, 16
      %v572 = vrot.slane %v570, 5
      %v573 = vsel %vm545, %v568, %v572
      %v575 = vshrl.u32 %v513, 16
      %v577 = vrot.slane %v575, 4
      %v578 = vshll.u32 %v513, 16
      %v580 = vrot.slane %v578, 5
      %v581 = vor.u32 %v577, %v580
      %v582 = vrot.slane %v581, 4
      %v584 = vshll.u32 %v537, 16
      %v586 = vrot.slane %v584, 5
      %v587 = vsel %vm545, %v582, %v586
      %v589 = vshrl.u32 %v514, 16
      %v591 = vrot.slane %v589, 4
      %v592 = vshll.u32 %v514, 16
      %v594 = vrot.slane %v592, 5
      %v595 = vor.u32 %v591, %v594
      %v596 = vrot.slane %v595, 4
      %v598 = vshll.u32 %v538, 16
      %v600 = vrot.slane %v598, 5
      %v601 = vsel %vm545, %v596, %v600
      %v603 = vshrl.u32 %v515, 16
      %v605 = vrot.slane %v603, 4
      %v606 = vshll.u32 %v515, 16
      %v608 = vrot.slane %v606, 5
      %v609 = vor.u32 %v605, %v608
      %v610 = vrot.slane %v609, 4
      %v612 = vshll.u32 %v539, 16
      %v614 = vrot.slane %v612, 5
      %v615 = vsel %vm545, %v610, %v614
      %v617 = vshrl.u32 %v516, 16
      %v619 = vrot.slane %v617, 4
      %v620 = vshll.u32 %v516, 16
      %v622 = vrot.slane %v620, 5
      %v623 = vor.u32 %v619, %v622
      %v624 = vrot.slane %v623, 4
      %v626 = vshll.u32 %v540, 16
      %v628 = vrot.slane %v626, 5
      %v629 = vsel %vm545, %v624, %v628
      %v631 = vshrl.u32 %v517, 16
      %v633 = vrot.slane %v631, 4
      %v634 = vshll.u32 %v517, 16
      %v636 = vrot.slane %v634, 5
      %v637 = vor.u32 %v633, %v636
      %v638 = vrot.slane %v637, 4
      %v640 = vshll.u32 %v541, 16
      %v642 = vrot.slane %v640, 5
      %v643 = vsel %vm545, %v638, %v642
      %v645 = vshrl.u32 %v518, 16
      %v647 = vrot.slane %v645, 4
      %v648 = vshll.u32 %v518, 16
      %v650 = vrot.slane %v648, 5
      %v651 = vor.u32 %v647, %v650
      %v652 = vrot.slane %v651, 4
      %v654 = vshll.u32 %v542, 16
      %v656 = vrot.slane %v654, 5
      %v657 = vsel %vm545, %v652, %v656
      %s658 = scalar_lea.vmem %s1, 64
      %v659 = vld [vmem:[%s658] sm:$0xf]
      %v660 = vld [vmem:[%s658 + $0x4] sm:$0xf]
      %v661 = vld [vmem:[%s658 + $0x8] sm:$0xf]
      %v662 = vld [vmem:[%s658 + $0xc] sm:$0xf]
      %v663 = vld [vmem:[%s658 + $0x10] sm:$0xf]
      %v664 = vld [vmem:[%s658 + $0x14] sm:$0xf]
      %v665 = vld [vmem:[%s658 + $0x18] sm:$0xf]
      %v666 = vld [vmem:[%s658 + $0x1c] sm:$0xf]
      %v667 = vld [vmem:[%s658 + $0x20] sm:$0xf]
      %v668 = vld [vmem:[%s658 + $0x24] sm:$0xf]
      %v669 = vld [vmem:[%s658 + $0x28] sm:$0xf]
      %v670 = vld [vmem:[%s658 + $0x2c] sm:$0xf]
      %v671 = vld [vmem:[%s658 + $0x30] sm:$0xf]
      %v672 = vld [vmem:[%s658 + $0x34] sm:$0xf]
      %v673 = vld [vmem:[%s658 + $0x38] sm:$0xf]
      %v674 = vld [vmem:[%s658 + $0x3c] sm:$0xf]
      %v675 = vunpack.c.l.b16 %v559
      %v676 = vunpack.c.l.b16 %v573
      %v677 = vunpack.c.l.b16 %v587
      %v678 = vunpack.c.l.b16 %v601
      %v679 = vunpack.c.l.b16 %v615
      %v680 = vunpack.c.l.b16 %v629
      %v681 = vunpack.c.l.b16 %v643
      %v682 = vunpack.c.l.b16 %v657
      %v683 = vpack.c.b16 %v676, %v675
      %v684 = vpack.c.b16 %v678, %v677
      %v685 = vpack.c.b16 %v680, %v679
      %v686 = vpack.c.b16 %v682, %v681
      %v707 = vunpack.c.l.b16 %v659
      %v708 = vunpack.c.l.b16 %v660
      %v709 = vunpack.c.l.b16 %v661
      %v710 = vunpack.c.l.b16 %v662
      %v711 = vunpack.c.l.b16 %v663
      %v712 = vunpack.c.l.b16 %v664
      %v713 = vunpack.c.l.b16 %v665
      %v714 = vunpack.c.l.b16 %v666
      %v715 = vunpack.c.l.b16 %v667
      %v716 = vunpack.c.l.b16 %v668
      %v717 = vunpack.c.l.b16 %v669
      %v718 = vunpack.c.l.b16 %v670
      %v719 = vunpack.c.l.b16 %v671
      %v720 = vunpack.c.l.b16 %v672
      %v721 = vunpack.c.l.b16 %v673
      %v722 = vunpack.c.l.b16 %v674
      %v723 = vpack.c.b16 %v708, %v707
      %v724 = vpack.c.b16 %v710, %v709
      %v725 = vpack.c.b16 %v712, %v711
      %v726 = vpack.c.b16 %v714, %v713
      %v727 = vpack.c.b16 %v716, %v715
      %v728 = vpack.c.b16 %v718, %v717
      %v729 = vpack.c.b16 %v720, %v719
      %v730 = vpack.c.b16 %v722, %v721
      %739 = vmatprep.subr.bf16.mxu0 0
      %740 = vmatpush1.bf16.msra.mxu0 %v730
      %741 = vmatprep.subr.bf16.mxu0 0
      %742 = vmatpush1.bf16.msra.mxu0 %v729
      %743 = vmatprep.subr.bf16.mxu0 0
      %744 = vmatpush1.bf16.msra.mxu0 %v728
      %745 = vmatprep.subr.bf16.mxu0 0
      %746 = vmatpush1.bf16.msra.mxu0 %v727
      %747 = vmatprep.subr.bf16.mxu0 0
      %748 = vmatpush1.bf16.msra.mxu0 %v726
      %749 = vmatprep.subr.bf16.mxu0 0
      %750 = vmatpush1.bf16.msra.mxu0 %v725
      %751 = vmatprep.subr.bf16.mxu0 0
      %752 = vmatpush1.bf16.msra.mxu0 %v724
      %753 = vmatprep.subr.bf16.mxu0 0
      %754 = vmatpush1.bf16.msra.mxu0 %v723
      %755 = vmatprep.subr.bf16.mxu0 0
      %756 = vmatpush2.bf16.msra.mxu0 0
      %757 = vmatprep.subr.bf16.mxu0 0
      %758 = vmatpush2.bf16.msra.mxu0 0
      %759 = vmatprep.subr.bf16.mxu0 0
      %760 = vmatpush2.bf16.msra.mxu0 0
      %761 = vmatprep.subr.bf16.mxu0 0
      %762 = vmatpush2.bf16.msra.mxu0 0
      %763 = vmatprep.subr.bf16.mxu0 0
      %764 = vmatpush2.bf16.msra.mxu0 0
      %765 = vmatprep.subr.bf16.mxu0 0
      %766 = vmatpush2.bf16.msra.mxu0 0
      %767 = vmatprep.subr.bf16.mxu0 0
      %768 = vmatpush2.bf16.msra.mxu0 0
      %769 = vmatprep.subr.bf16.mxu0 0
      %770 = vmatpush2.bf16.msra.mxu0 0
      %771 = vmatprep.mubr.bf16.mxu0 0
      %772 = vmatmul.mubr.bf16.gmra.mxu0 %v683
      %v773 = vpop.f32.mrf.mxu0
      %v774 = vadd.f32 0.0, %v773
      %v775 = vpop.f32.mrf.mxu0
      %v776 = vpop.f32.mrf.mxu0
      %v777 = vadd.f32 0.0, %v776
      %v778 = vpop.f32.mrf.mxu0
      %779 = vmatprep.mubr.bf16.mxu0 0
      %780 = vmatmul.mubr.bf16.gmra.mxu0 %v684
      %v781 = vpop.f32.mrf.mxu0
      %v782 = vadd.f32 0.0, %v781
      %v783 = vpop.f32.mrf.mxu0
      %v784 = vpop.f32.mrf.mxu0
      %v785 = vadd.f32 0.0, %v784
      %v786 = vpop.f32.mrf.mxu0
      %787 = vmatprep.mubr.bf16.mxu0 0
      %788 = vmatmul.mubr.bf16.gmra.mxu0 %v685
      %v789 = vpop.f32.mrf.mxu0
      %v790 = vadd.f32 0.0, %v789
      %v791 = vpop.f32.mrf.mxu0
      %v792 = vpop.f32.mrf.mxu0
      %v793 = vadd.f32 0.0, %v792
      %v794 = vpop.f32.mrf.mxu0
      %795 = vmatprep.mubr.bf16.mxu0 0
      %796 = vmatmul.mubr.bf16.gmra.mxu0 %v686
      %v797 = vpop.f32.mrf.mxu0
      %v798 = vadd.f32 0.0, %v797
      %v799 = vpop.f32.mrf.mxu0
      %v800 = vpop.f32.mrf.mxu0
      %v801 = vadd.f32 0.0, %v800
      %v802 = vpop.f32.mrf.mxu0
      %803 = vdwg.mxu0
      %v812 = vunpack.c.l.b16 %v511
      %v813 = vunpack.c.l.b16 %v512
      %v814 = vunpack.c.l.b16 %v513
      %v815 = vunpack.c.l.b16 %v514
      %v816 = vunpack.c.l.b16 %v515
      %v817 = vunpack.c.l.b16 %v516
      %v818 = vunpack.c.l.b16 %v517
      %v819 = vunpack.c.l.b16 %v518
      %v820 = vpack.c.b16 %v813, %v812
      %v821 = vpack.c.b16 %v815, %v814
      %v822 = vpack.c.b16 %v817, %v816
      %v823 = vpack.c.b16 %v819, %v818
      %v844 = vunpack.c.l.b16 %v519
      %v845 = vunpack.c.l.b16 %v520
      %v846 = vunpack.c.l.b16 %v521
      %v847 = vunpack.c.l.b16 %v522
      %v848 = vunpack.c.l.b16 %v523
      %v849 = vunpack.c.l.b16 %v524
      %v850 = vunpack.c.l.b16 %v525
      %v851 = vunpack.c.l.b16 %v526
      %v852 = vunpack.c.l.b16 %v527
      %v853 = vunpack.c.l.b16 %v528
      %v854 = vunpack.c.l.b16 %v529
      %v855 = vunpack.c.l.b16 %v530
      %v856 = vunpack.c.l.b16 %v531
      %v857 = vunpack.c.l.b16 %v532
      %v858 = vunpack.c.l.b16 %v533
      %v859 = vunpack.c.l.b16 %v534
      %v860 = vpack.c.b16 %v845, %v844
      %v861 = vpack.c.b16 %v847, %v846
      %v862 = vpack.c.b16 %v849, %v848
      %v863 = vpack.c.b16 %v851, %v850
      %v864 = vpack.c.b16 %v853, %v852
      %v865 = vpack.c.b16 %v855, %v854
      %v866 = vpack.c.b16 %v857, %v856
      %v867 = vpack.c.b16 %v859, %v858
      %876 = vmatprep.subr.bf16.mxu0 0
      %877 = vmatpush1.bf16.msra.mxu0 %v867
      %878 = vmatprep.subr.bf16.mxu0 0
      %879 = vmatpush1.bf16.msra.mxu0 %v866
      %880 = vmatprep.subr.bf16.mxu0 0
      %881 = vmatpush1.bf16.msra.mxu0 %v865
      %882 = vmatprep.subr.bf16.mxu0 0
      %883 = vmatpush1.bf16.msra.mxu0 %v864
      %884 = vmatprep.subr.bf16.mxu0 0
      %885 = vmatpush1.bf16.msra.mxu0 %v863
      %886 = vmatprep.subr.bf16.mxu0 0
      %887 = vmatpush1.bf16.msra.mxu0 %v862
      %888 = vmatprep.subr.bf16.mxu0 0
      %889 = vmatpush1.bf16.msra.mxu0 %v861
      %890 = vmatprep.subr.bf16.mxu0 0
      %891 = vmatpush1.bf16.msra.mxu0 %v860
      %892 = vmatprep.subr.bf16.mxu0 0
      %893 = vmatpush2.bf16.msra.mxu0 0
      %894 = vmatprep.subr.bf16.mxu0 0
      %895 = vmatpush2.bf16.msra.mxu0 0
      %896 = vmatprep.subr.bf16.mxu0 0
      %897 = vmatpush2.bf16.msra.mxu0 0
      %898 = vmatprep.subr.bf16.mxu0 0
      %899 = vmatpush2.bf16.msra.mxu0 0
      %900 = vmatprep.subr.bf16.mxu0 0
      %901 = vmatpush2.bf16.msra.mxu0 0
      %902 = vmatprep.subr.bf16.mxu0 0
      %903 = vmatpush2.bf16.msra.mxu0 0
      %904 = vmatprep.subr.bf16.mxu0 0
      %905 = vmatpush2.bf16.msra.mxu0 0
      %906 = vmatprep.subr.bf16.mxu0 0
      %907 = vmatpush2.bf16.msra.mxu0 0
      %908 = vmatprep.mubr.bf16.mxu0 0
      %909 = vmatmul.mubr.bf16.gmra.mxu0 %v820
      %v910 = vpop.f32.mrf.mxu0
      %v911 = vadd.f32 %v774, %v910
      %v912 = vpop.f32.mrf.mxu0
      %v913 = vpop.f32.mrf.mxu0
      %v914 = vadd.f32 %v777, %v913
      %v915 = vpop.f32.mrf.mxu0
      %916 = vmatprep.mubr.bf16.mxu0 0
      %917 = vmatmul.mubr.bf16.gmra.mxu0 %v821
      %v918 = vpop.f32.mrf.mxu0
      %v919 = vadd.f32 %v782, %v918
      %v920 = vpop.f32.mrf.mxu0
      %v921 = vpop.f32.mrf.mxu0
      %v922 = vadd.f32 %v785, %v921
      %v923 = vpop.f32.mrf.mxu0
      %924 = vmatprep.mubr.bf16.mxu0 0
      %925 = vmatmul.mubr.bf16.gmra.mxu0 %v822
      %v926 = vpop.f32.mrf.mxu0
      %v927 = vadd.f32 %v790, %v926
      %v928 = vpop.f32.mrf.mxu0
      %v929 = vpop.f32.mrf.mxu0
      %v930 = vadd.f32 %v793, %v929
      %v931 = vpop.f32.mrf.mxu0
      %932 = vmatprep.mubr.bf16.mxu0 0
      %933 = vmatmul.mubr.bf16.gmra.mxu0 %v823
      %v934 = vpop.f32.mrf.mxu0
      %v935 = vadd.f32 %v798, %v934
      %v936 = vpop.f32.mrf.mxu0
      %v937 = vpop.f32.mrf.mxu0
      %v938 = vadd.f32 %v801, %v937
      %v939 = vpop.f32.mrf.mxu0
      %940 = vdwg.mxu0
      %v941 = vld [vmem:[#allocation2] sm:$0xe]
      %v942 = vld [vmem:[#allocation2 + $0x8] sm:$0xe]
      %v943 = vld [vmem:[#allocation2 + $0x10] sm:$0xe]
      %v944 = vld [vmem:[#allocation2 + $0x18] sm:$0xe]
      %v945 = vld [vmem:[#allocation2 + $0x20] sm:$0xe]
      %v946 = vld [vmem:[#allocation2 + $0x28] sm:$0xe]
      %v947 = vld [vmem:[#allocation2 + $0x30] sm:$0xe]
      %v948 = vld [vmem:[#allocation2 + $0x38] sm:$0xe]
      %vm965 = vcmask 1042432
      %vm966 = vcmask 1046532
      %vm967 = vmor %vm965, %vm966
      %v968 = vrot.slane %v941, 5
      %v969 = vrot.slane %v968, 4
      %v970 = vrot.slane %v535, 5
      %v971 = vsel %vm967, %v969, %v970
      %v972 = vrot.slane %v942, 5
      %v973 = vrot.slane %v972, 4
      %v974 = vrot.slane %v536, 5
      %v975 = vsel %vm967, %v973, %v974
      %v976 = vrot.slane %v943, 5
      %v977 = vrot.slane %v976, 4
      %v978 = vrot.slane %v537, 5
      %v979 = vsel %vm967, %v977, %v978
      %v980 = vrot.slane %v944, 5
      %v981 = vrot.slane %v980, 4
      %v982 = vrot.slane %v538, 5
      %v983 = vsel %vm967, %v981, %v982
      %v984 = vrot.slane %v945, 5
      %v985 = vrot.slane %v984, 4
      %v986 = vrot.slane %v539, 5
      %v987 = vsel %vm967, %v985, %v986
      %v988 = vrot.slane %v946, 5
      %v989 = vrot.slane %v988, 4
      %v990 = vrot.slane %v540, 5
      %v991 = vsel %vm967, %v989, %v990
      %v992 = vrot.slane %v947, 5
      %v993 = vrot.slane %v992, 4
      %v994 = vrot.slane %v541, 5
      %v995 = vsel %vm967, %v993, %v994
      %v996 = vrot.slane %v948, 5
      %v997 = vrot.slane %v996, 4
      %v998 = vrot.slane %v542, 5
      %v999 = vsel %vm967, %v997, %v998
      %s1000 = scalar_lea.vmem %s1, 128
      %v1001 = vld [vmem:[%s1000] sm:$0xf]
      %v1002 = vld [vmem:[%s1000 + $0x4] sm:$0xf]
      %v1003 = vld [vmem:[%s1000 + $0x8] sm:$0xf]
      %v1004 = vld [vmem:[%s1000 + $0xc] sm:$0xf]
      %v1005 = vld [vmem:[%s1000 + $0x10] sm:$0xf]
      %v1006 = vld [vmem:[%s1000 + $0x14] sm:$0xf]
      %v1007 = vld [vmem:[%s1000 + $0x18] sm:$0xf]
      %v1008 = vld [vmem:[%s1000 + $0x1c] sm:$0xf]
      %v1009 = vld [vmem:[%s1000 + $0x20] sm:$0xf]
      %v1010 = vld [vmem:[%s1000 + $0x24] sm:$0xf]
      %v1011 = vld [vmem:[%s1000 + $0x28] sm:$0xf]
      %v1012 = vld [vmem:[%s1000 + $0x2c] sm:$0xf]
      %v1013 = vld [vmem:[%s1000 + $0x30] sm:$0xf]
      %v1014 = vld [vmem:[%s1000 + $0x34] sm:$0xf]
      %v1015 = vld [vmem:[%s1000 + $0x38] sm:$0xf]
      %v1016 = vld [vmem:[%s1000 + $0x3c] sm:$0xf]
      %v1017 = vunpack.c.l.b16 %v971
      %v1018 = vunpack.c.l.b16 %v975
      %v1019 = vunpack.c.l.b16 %v979
      %v1020 = vunpack.c.l.b16 %v983
      %v1021 = vunpack.c.l.b16 %v987
      %v1022 = vunpack.c.l.b16 %v991
      %v1023 = vunpack.c.l.b16 %v995
      %v1024 = vunpack.c.l.b16 %v999
      %v1025 = vpack.c.b16 %v1018, %v1017
      %v1026 = vpack.c.b16 %v1020, %v1019
      %v1027 = vpack.c.b16 %v1022, %v1021
      %v1028 = vpack.c.b16 %v1024, %v1023
      %v1049 = vunpack.c.l.b16 %v1001
      %v1050 = vunpack.c.l.b16 %v1002
      %v1051 = vunpack.c.l.b16 %v1003
      %v1052 = vunpack.c.l.b16 %v1004
      %v1053 = vunpack.c.l.b16 %v1005
      %v1054 = vunpack.c.l.b16 %v1006
      %v1055 = vunpack.c.l.b16 %v1007
      %v1056 = vunpack.c.l.b16 %v1008
      %v1057 = vunpack.c.l.b16 %v1009
      %v1058 = vunpack.c.l.b16 %v1010
      %v1059 = vunpack.c.l.b16 %v1011
      %v1060 = vunpack.c.l.b16 %v1012
      %v1061 = vunpack.c.l.b16 %v1013
      %v1062 = vunpack.c.l.b16 %v1014
      %v1063 = vunpack.c.l.b16 %v1015
      %v1064 = vunpack.c.l.b16 %v1016
      %v1065 = vpack.c.b16 %v1050, %v1049
      %v1066 = vpack.c.b16 %v1052, %v1051
      %v1067 = vpack.c.b16 %v1054, %v1053
      %v1068 = vpack.c.b16 %v1056, %v1055
      %v1069 = vpack.c.b16 %v1058, %v1057
      %v1070 = vpack.c.b16 %v1060, %v1059
      %v1071 = vpack.c.b16 %v1062, %v1061
      %v1072 = vpack.c.b16 %v1064, %v1063
      %1081 = vmatprep.subr.bf16.mxu0 0
      %1082 = vmatpush1.bf16.msra.mxu0 %v1072
      %1083 = vmatprep.subr.bf16.mxu0 0
      %1084 = vmatpush1.bf16.msra.mxu0 %v1071
      %1085 = vmatprep.subr.bf16.mxu0 0
      %1086 = vmatpush1.bf16.msra.mxu0 %v1070
      %1087 = vmatprep.subr.bf16.mxu0 0
      %1088 = vmatpush1.bf16.msra.mxu0 %v1069
      %1089 = vmatprep.subr.bf16.mxu0 0
      %1090 = vmatpush1.bf16.msra.mxu0 %v1068
      %1091 = vmatprep.subr.bf16.mxu0 0
      %1092 = vmatpush1.bf16.msra.mxu0 %v1067
      %1093 = vmatprep.subr.bf16.mxu0 0
      %1094 = vmatpush1.bf16.msra.mxu0 %v1066
      %1095 = vmatprep.subr.bf16.mxu0 0
      %1096 = vmatpush1.bf16.msra.mxu0 %v1065
      %1097 = vmatprep.subr.bf16.mxu0 0
      %1098 = vmatpush2.bf16.msra.mxu0 0
      %1099 = vmatprep.subr.bf16.mxu0 0
      %1100 = vmatpush2.bf16.msra.mxu0 0
      %1101 = vmatprep.subr.bf16.mxu0 0
      %1102 = vmatpush2.bf16.msra.mxu0 0
      %1103 = vmatprep.subr.bf16.mxu0 0
      %1104 = vmatpush2.bf16.msra.mxu0 0
      %1105 = vmatprep.subr.bf16.mxu0 0
      %1106 = vmatpush2.bf16.msra.mxu0 0
      %1107 = vmatprep.subr.bf16.mxu0 0
      %1108 = vmatpush2.bf16.msra.mxu0 0
      %1109 = vmatprep.subr.bf16.mxu0 0
      %1110 = vmatpush2.bf16.msra.mxu0 0
      %1111 = vmatprep.subr.bf16.mxu0 0
      %1112 = vmatpush2.bf16.msra.mxu0 0
      %1113 = vmatprep.mubr.bf16.mxu0 0
      %1114 = vmatmul.mubr.bf16.gmra.mxu0 %v1025
      %v1115 = vpop.f32.mrf.mxu0
      %v1116 = vadd.f32 0.0, %v1115
      %v1117 = vpop.f32.mrf.mxu0
      %v1118 = vpop.f32.mrf.mxu0
      %v1119 = vadd.f32 0.0, %v1118
      %v1120 = vpop.f32.mrf.mxu0
      %1121 = vmatprep.mubr.bf16.mxu0 0
      %1122 = vmatmul.mubr.bf16.gmra.mxu0 %v1026
      %v1123 = vpop.f32.mrf.mxu0
      %v1124 = vadd.f32 0.0, %v1123
      %v1125 = vpop.f32.mrf.mxu0
      %v1126 = vpop.f32.mrf.mxu0
      %v1127 = vadd.f32 0.0, %v1126
      %v1128 = vpop.f32.mrf.mxu0
      %1129 = vmatprep.mubr.bf16.mxu0 0
      %1130 = vmatmul.mubr.bf16.gmra.mxu0 %v1027
      %v1131 = vpop.f32.mrf.mxu0
      %v1132 = vadd.f32 0.0, %v1131
      %v1133 = vpop.f32.mrf.mxu0
      %v1134 = vpop.f32.mrf.mxu0
      %v1135 = vadd.f32 0.0, %v1134
      %v1136 = vpop.f32.mrf.mxu0
      %1137 = vmatprep.mubr.bf16.mxu0 0
      %1138 = vmatmul.mubr.bf16.gmra.mxu0 %v1028
      %v1139 = vpop.f32.mrf.mxu0
      %v1140 = vadd.f32 0.0, %v1139
      %v1141 = vpop.f32.mrf.mxu0
      %v1142 = vpop.f32.mrf.mxu0
      %v1143 = vadd.f32 0.0, %v1142
      %v1144 = vpop.f32.mrf.mxu0
      %1145 = vdwg.mxu0
      %v1146 = vadd.f32 %v911, %v1116
      %v1147 = vadd.f32 %v914, %v1119
      %v1148 = vadd.f32 %v919, %v1124
      %v1149 = vadd.f32 %v922, %v1127
      %v1150 = vadd.f32 %v927, %v1132
      %v1151 = vadd.f32 %v930, %v1135
      %v1152 = vadd.f32 %v935, %v1140
      %v1153 = vadd.f32 %v938, %v1143
      %v1154 = vld [vmem:[%s456] sm:$0xf]
      %v1155 = vld [vmem:[%s456 + $0x8] sm:$0xf]
      %v1156 = vld [vmem:[%s456 + $0x10] sm:$0xf]
      %v1157 = vld [vmem:[%s456 + $0x18] sm:$0xf]
      %v1158 = vld [vmem:[%s456 + $0x20] sm:$0xf]
      %v1159 = vld [vmem:[%s456 + $0x28] sm:$0xf]
      %v1160 = vld [vmem:[%s456 + $0x30] sm:$0xf]
      %v1161 = vld [vmem:[%s456 + $0x38] sm:$0xf]
      %s1162 = scalar_lea.vmem %s1, 192
      %v1163 = vld [vmem:[%s1162] sm:$0xf]
      %v1164 = vld [vmem:[%s1162 + $0x4] sm:$0xf]
      %v1165 = vld [vmem:[%s1162 + $0x8] sm:$0xf]
      %v1166 = vld [vmem:[%s1162 + $0xc] sm:$0xf]
      %v1167 = vld [vmem:[%s1162 + $0x10] sm:$0xf]
      %v1168 = vld [vmem:[%s1162 + $0x14] sm:$0xf]
      %v1169 = vld [vmem:[%s1162 + $0x18] sm:$0xf]
      %v1170 = vld [vmem:[%s1162 + $0x1c] sm:$0xf]
      %v1171 = vld [vmem:[%s1162 + $0x20] sm:$0xf]
      %v1172 = vld [vmem:[%s1162 + $0x24] sm:$0xf]
      %v1173 = vld [vmem:[%s1162 + $0x28] sm:$0xf]
      %v1174 = vld [vmem:[%s1162 + $0x2c] sm:$0xf]
      %v1175 = vld [vmem:[%s1162 + $0x30] sm:$0xf]
      %v1176 = vld [vmem:[%s1162 + $0x34] sm:$0xf]
      %v1177 = vld [vmem:[%s1162 + $0x38] sm:$0xf]
      %v1178 = vld [vmem:[%s1162 + $0x3c] sm:$0xf]
      %v1187 = vunpack.c.l.b16 %v1154
      %v1188 = vunpack.c.l.b16 %v1155
      %v1189 = vunpack.c.l.b16 %v1156
      %v1190 = vunpack.c.l.b16 %v1157
      %v1191 = vunpack.c.l.b16 %v1158
      %v1192 = vunpack.c.l.b16 %v1159
      %v1193 = vunpack.c.l.b16 %v1160
      %v1194 = vunpack.c.l.b16 %v1161
      %v1195 = vpack.c.b16 %v1188, %v1187
      %v1196 = vpack.c.b16 %v1190, %v1189
      %v1197 = vpack.c.b16 %v1192, %v1191
      %v1198 = vpack.c.b16 %v1194, %v1193
      %v1219 = vunpack.c.l.b16 %v1163
      %v1220 = vunpack.c.l.b16 %v1164
      %v1221 = vunpack.c.l.b16 %v1165
      %v1222 = vunpack.c.l.b16 %v1166
      %v1223 = vunpack.c.l.b16 %v1167
      %v1224 = vunpack.c.l.b16 %v1168
      %v1225 = vunpack.c.l.b16 %v1169
      %v1226 = vunpack.c.l.b16 %v1170
      %v1227 = vunpack.c.l.b16 %v1171
      %v1228 = vunpack.c.l.b16 %v1172
      %v1229 = vunpack.c.l.b16 %v1173
      %v1230 = vunpack.c.l.b16 %v1174
      %v1231 = vunpack.c.l.b16 %v1175
      %v1232 = vunpack.c.l.b16 %v1176
      %v1233 = vunpack.c.l.b16 %v1177
      %v1234 = vunpack.c.l.b16 %v1178
      %v1235 = vpack.c.b16 %v1220, %v1219
      %v1236 = vpack.c.b16 %v1222, %v1221
      %v1237 = vpack.c.b16 %v1224, %v1223
      %v1238 = vpack.c.b16 %v1226, %v1225
      %v1239 = vpack.c.b16 %v1228, %v1227
      %v1240 = vpack.c.b16 %v1230, %v1229
      %v1241 = vpack.c.b16 %v1232, %v1231
      %v1242 = vpack.c.b16 %v1234, %v1233
      %1251 = vmatprep.subr.bf16.mxu0 0
      %1252 = vmatpush1.bf16.msra.mxu0 %v1242
      %1253 = vmatprep.subr.bf16.mxu0 0
      %1254 = vmatpush1.bf16.msra.mxu0 %v1241
      %1255 = vmatprep.subr.bf16.mxu0 0
      %1256 = vmatpush1.bf16.msra.mxu0 %v1240
      %1257 = vmatprep.subr.bf16.mxu0 0
      %1258 = vmatpush1.bf16.msra.mxu0 %v1239
      %1259 = vmatprep.subr.bf16.mxu0 0
      %1260 = vmatpush1.bf16.msra.mxu0 %v1238
      %1261 = vmatprep.subr.bf16.mxu0 0
      %1262 = vmatpush1.bf16.msra.mxu0 %v1237
      %1263 = vmatprep.subr.bf16.mxu0 0
      %1264 = vmatpush1.bf16.msra.mxu0 %v1236
      %1265 = vmatprep.subr.bf16.mxu0 0
      %1266 = vmatpush1.bf16.msra.mxu0 %v1235
      %1267 = vmatprep.subr.bf16.mxu0 0
      %1268 = vmatpush2.bf16.msra.mxu0 0
      %1269 = vmatprep.subr.bf16.mxu0 0
      %1270 = vmatpush2.bf16.msra.mxu0 0
      %1271 = vmatprep.subr.bf16.mxu0 0
      %1272 = vmatpush2.bf16.msra.mxu0 0
      %1273 = vmatprep.subr.bf16.mxu0 0
      %1274 = vmatpush2.bf16.msra.mxu0 0
      %1275 = vmatprep.subr.bf16.mxu0 0
      %1276 = vmatpush2.bf16.msra.mxu0 0
      %1277 = vmatprep.subr.bf16.mxu0 0
      %1278 = vmatpush2.bf16.msra.mxu0 0
      %1279 = vmatprep.subr.bf16.mxu0 0
      %1280 = vmatpush2.bf16.msra.mxu0 0
      %1281 = vmatprep.subr.bf16.mxu0 0
      %1282 = vmatpush2.bf16.msra.mxu0 0
      %1283 = vmatprep.mubr.bf16.mxu0 0
      %1284 = vmatmul.mubr.bf16.gmra.mxu0 %v1195
      %v1285 = vpop.f32.mrf.mxu0
      %v1286 = vadd.f32 0.0, %v1285
      %v1287 = vpop.f32.mrf.mxu0
      %v1288 = vpop.f32.mrf.mxu0
      %v1289 = vadd.f32 0.0, %v1288
      %v1290 = vpop.f32.mrf.mxu0
      %1291 = vmatprep.mubr.bf16.mxu0 0
      %1292 = vmatmul.mubr.bf16.gmra.mxu0 %v1196
      %v1293 = vpop.f32.mrf.mxu0
      %v1294 = vadd.f32 0.0, %v1293
      %v1295 = vpop.f32.mrf.mxu0
      %v1296 = vpop.f32.mrf.mxu0
      %v1297 = vadd.f32 0.0, %v1296
      %v1298 = vpop.f32.mrf.mxu0
      %1299 = vmatprep.mubr.bf16.mxu0 0
      %1300 = vmatmul.mubr.bf16.gmra.mxu0 %v1197
      %v1301 = vpop.f32.mrf.mxu0
      %v1302 = vadd.f32 0.0, %v1301
      %v1303 = vpop.f32.mrf.mxu0
      %v1304 = vpop.f32.mrf.mxu0
      %v1305 = vadd.f32 0.0, %v1304
      %v1306 = vpop.f32.mrf.mxu0
      %1307 = vmatprep.mubr.bf16.mxu0 0
      %1308 = vmatmul.mubr.bf16.gmra.mxu0 %v1198
      %v1309 = vpop.f32.mrf.mxu0
      %v1310 = vadd.f32 0.0, %v1309
      %v1311 = vpop.f32.mrf.mxu0
      %v1312 = vpop.f32.mrf.mxu0
      %v1313 = vadd.f32 0.0, %v1312
      %v1314 = vpop.f32.mrf.mxu0
      %1315 = vdwg.mxu0
      %v1316 = vadd.f32 %v1146, %v1286
      %v1317 = vadd.f32 %v1147, %v1289
      %v1318 = vadd.f32 %v1148, %v1294
      %v1319 = vadd.f32 %v1149, %v1297
      %v1320 = vadd.f32 %v1150, %v1302
      %v1321 = vadd.f32 %v1151, %v1305
      %v1322 = vadd.f32 %v1152, %v1310
      %v1323 = vadd.f32 %v1153, %v1313
      %v1324 = vld [vmem:[%s456] sm:$0xf]
      %v1325 = vld [vmem:[%s456 + $0x4] sm:$0x1]
      %v1326 = vld [vmem:[%s456 + $0x8] sm:$0xf]
      %v1327 = vld [vmem:[%s456 + $0xc] sm:$0x1]
      %v1328 = vld [vmem:[%s456 + $0x10] sm:$0xf]
      %v1329 = vld [vmem:[%s456 + $0x14] sm:$0x1]
      %v1330 = vld [vmem:[%s456 + $0x18] sm:$0xf]
      %v1331 = vld [vmem:[%s456 + $0x1c] sm:$0x1]
      %v1332 = vld [vmem:[%s456 + $0x20] sm:$0xf]
      %v1333 = vld [vmem:[%s456 + $0x24] sm:$0x1]
      %v1334 = vld [vmem:[%s456 + $0x28] sm:$0xf]
      %v1335 = vld [vmem:[%s456 + $0x2c] sm:$0x1]
      %v1336 = vld [vmem:[%s456 + $0x30] sm:$0xf]
      %v1337 = vld [vmem:[%s456 + $0x34] sm:$0x1]
      %v1338 = vld [vmem:[%s456 + $0x38] sm:$0xf]
      %v1339 = vld [vmem:[%s456 + $0x3c] sm:$0x1]
      %v1341 = vshrl.u32 %v1324, 16
      %v1343 = vrot.slane %v1341, 4
      %v1344 = vshll.u32 %v1324, 16
      %v1346 = vrot.slane %v1344, 5
      %v1347 = vor.u32 %v1343, %v1346
      %v1348 = vrot.slane %v1347, 4
      %v1350 = vshll.u32 %v1325, 16
      %v1352 = vrot.slane %v1350, 5
      %v1353 = vsel %vm545, %v1348, %v1352
      %v1355 = vshrl.u32 %v1326, 16
      %v1357 = vrot.slane %v1355, 4
      %v1358 = vshll.u32 %v1326, 16
      %v1360 = vrot.slane %v1358, 5
      %v1361 = vor.u32 %v1357, %v1360
      %v1362 = vrot.slane %v1361, 4
      %v1364 = vshll.u32 %v1327, 16
      %v1366 = vrot.slane %v1364, 5
      %v1367 = vsel %vm545, %v1362, %v1366
      %v1369 = vshrl.u32 %v1328, 16
      %v1371 = vrot.slane %v1369, 4
      %v1372 = vshll.u32 %v1328, 16
      %v1374 = vrot.slane %v1372, 5
      %v1375 = vor.u32 %v1371, %v1374
      %v1376 = vrot.slane %v1375, 4
      %v1378 = vshll.u32 %v1329, 16
      %v1380 = vrot.slane %v1378, 5
      %v1381 = vsel %vm545, %v1376, %v1380
      %v1383 = vshrl.u32 %v1330, 16
      %v1385 = vrot.slane %v1383, 4
      %v1386 = vshll.u32 %v1330, 16
      %v1388 = vrot.slane %v1386, 5
      %v1389 = vor.u32 %v1385, %v1388
      %v1390 = vrot.slane %v1389, 4
      %v1392 = vshll.u32 %v1331, 16
      %v1394 = vrot.slane %v1392, 5
      %v1395 = vsel %vm545, %v1390, %v1394
      %v1397 = vshrl.u32 %v1332, 16
      %v1399 = vrot.slane %v1397, 4
      %v1400 = vshll.u32 %v1332, 16
      %v1402 = vrot.slane %v1400, 5
      %v1403 = vor.u32 %v1399, %v1402
      %v1404 = vrot.slane %v1403, 4
      %v1406 = vshll.u32 %v1333, 16
      %v1408 = vrot.slane %v1406, 5
      %v1409 = vsel %vm545, %v1404, %v1408
      %v1411 = vshrl.u32 %v1334, 16
      %v1413 = vrot.slane %v1411, 4
      %v1414 = vshll.u32 %v1334, 16
      %v1416 = vrot.slane %v1414, 5
      %v1417 = vor.u32 %v1413, %v1416
      %v1418 = vrot.slane %v1417, 4
      %v1420 = vshll.u32 %v1335, 16
      %v1422 = vrot.slane %v1420, 5
      %v1423 = vsel %vm545, %v1418, %v1422
      %v1425 = vshrl.u32 %v1336, 16
      %v1427 = vrot.slane %v1425, 4
      %v1428 = vshll.u32 %v1336, 16
      %v1430 = vrot.slane %v1428, 5
      %v1431 = vor.u32 %v1427, %v1430
      %v1432 = vrot.slane %v1431, 4
      %v1434 = vshll.u32 %v1337, 16
      %v1436 = vrot.slane %v1434, 5
      %v1437 = vsel %vm545, %v1432, %v1436
      %v1439 = vshrl.u32 %v1338, 16
      %v1441 = vrot.slane %v1439, 4
      %v1442 = vshll.u32 %v1338, 16
      %v1444 = vrot.slane %v1442, 5
      %v1445 = vor.u32 %v1441, %v1444
      %v1446 = vrot.slane %v1445, 4
      %v1448 = vshll.u32 %v1339, 16
      %v1450 = vrot.slane %v1448, 5
      %v1451 = vsel %vm545, %v1446, %v1450
      %s1452 = scalar_lea.vmem %s1, 256
      %v1453 = vld [vmem:[%s1452] sm:$0xf]
      %v1454 = vld [vmem:[%s1452 + $0x4] sm:$0xf]
      %v1455 = vld [vmem:[%s1452 + $0x8] sm:$0xf]
      %v1456 = vld [vmem:[%s1452 + $0xc] sm:$0xf]
      %v1457 = vld [vmem:[%s1452 + $0x10] sm:$0xf]
      %v1458 = vld [vmem:[%s1452 + $0x14] sm:$0xf]
      %v1459 = vld [vmem:[%s1452 + $0x18] sm:$0xf]
      %v1460 = vld [vmem:[%s1452 + $0x1c] sm:$0xf]
      %v1461 = vld [vmem:[%s1452 + $0x20] sm:$0xf]
      %v1462 = vld [vmem:[%s1452 + $0x24] sm:$0xf]
      %v1463 = vld [vmem:[%s1452 + $0x28] sm:$0xf]
      %v1464 = vld [vmem:[%s1452 + $0x2c] sm:$0xf]
      %v1465 = vld [vmem:[%s1452 + $0x30] sm:$0xf]
      %v1466 = vld [vmem:[%s1452 + $0x34] sm:$0xf]
      %v1467 = vld [vmem:[%s1452 + $0x38] sm:$0xf]
      %v1468 = vld [vmem:[%s1452 + $0x3c] sm:$0xf]
      %v1469 = vunpack.c.l.b16 %v1353
      %v1470 = vunpack.c.l.b16 %v1367
      %v1471 = vunpack.c.l.b16 %v1381
      %v1472 = vunpack.c.l.b16 %v1395
      %v1473 = vunpack.c.l.b16 %v1409
      %v1474 = vunpack.c.l.b16 %v1423
      %v1475 = vunpack.c.l.b16 %v1437
      %v1476 = vunpack.c.l.b16 %v1451
      %v1477 = vpack.c.b16 %v1470, %v1469
      %v1478 = vpack.c.b16 %v1472, %v1471
      %v1479 = vpack.c.b16 %v1474, %v1473
      %v1480 = vpack.c.b16 %v1476, %v1475
      %v1501 = vunpack.c.l.b16 %v1453
      %v1502 = vunpack.c.l.b16 %v1454
      %v1503 = vunpack.c.l.b16 %v1455
      %v1504 = vunpack.c.l.b16 %v1456
      %v1505 = vunpack.c.l.b16 %v1457
      %v1506 = vunpack.c.l.b16 %v1458
      %v1507 = vunpack.c.l.b16 %v1459
      %v1508 = vunpack.c.l.b16 %v1460
      %v1509 = vunpack.c.l.b16 %v1461
      %v1510 = vunpack.c.l.b16 %v1462
      %v1511 = vunpack.c.l.b16 %v1463
      %v1512 = vunpack.c.l.b16 %v1464
      %v1513 = vunpack.c.l.b16 %v1465
      %v1514 = vunpack.c.l.b16 %v1466
      %v1515 = vunpack.c.l.b16 %v1467
      %v1516 = vunpack.c.l.b16 %v1468
      %v1517 = vpack.c.b16 %v1502, %v1501
      %v1518 = vpack.c.b16 %v1504, %v1503
      %v1519 = vpack.c.b16 %v1506, %v1505
      %v1520 = vpack.c.b16 %v1508, %v1507
      %v1521 = vpack.c.b16 %v1510, %v1509
      %v1522 = vpack.c.b16 %v1512, %v1511
      %v1523 = vpack.c.b16 %v1514, %v1513
      %v1524 = vpack.c.b16 %v1516, %v1515
      %1533 = vmatprep.subr.bf16.mxu0 0
      %1534 = vmatpush1.bf16.msra.mxu0 %v1524
      %1535 = vmatprep.subr.bf16.mxu0 0
      %1536 = vmatpush1.bf16.msra.mxu0 %v1523
      %1537 = vmatprep.subr.bf16.mxu0 0
      %1538 = vmatpush1.bf16.msra.mxu0 %v1522
      %1539 = vmatprep.subr.bf16.mxu0 0
      %1540 = vmatpush1.bf16.msra.mxu0 %v1521
      %1541 = vmatprep.subr.bf16.mxu0 0
      %1542 = vmatpush1.bf16.msra.mxu0 %v1520
      %1543 = vmatprep.subr.bf16.mxu0 0
      %1544 = vmatpush1.bf16.msra.mxu0 %v1519
      %1545 = vmatprep.subr.bf16.mxu0 0
      %1546 = vmatpush1.bf16.msra.mxu0 %v1518
      %1547 = vmatprep.subr.bf16.mxu0 0
      %1548 = vmatpush1.bf16.msra.mxu0 %v1517
      %1549 = vmatprep.subr.bf16.mxu0 0
      %1550 = vmatpush2.bf16.msra.mxu0 0
      %1551 = vmatprep.subr.bf16.mxu0 0
      %1552 = vmatpush2.bf16.msra.mxu0 0
      %1553 = vmatprep.subr.bf16.mxu0 0
      %1554 = vmatpush2.bf16.msra.mxu0 0
      %1555 = vmatprep.subr.bf16.mxu0 0
      %1556 = vmatpush2.bf16.msra.mxu0 0
      %1557 = vmatprep.subr.bf16.mxu0 0
      %1558 = vmatpush2.bf16.msra.mxu0 0
      %1559 = vmatprep.subr.bf16.mxu0 0
      %1560 = vmatpush2.bf16.msra.mxu0 0
      %1561 = vmatprep.subr.bf16.mxu0 0
      %1562 = vmatpush2.bf16.msra.mxu0 0
      %1563 = vmatprep.subr.bf16.mxu0 0
      %1564 = vmatpush2.bf16.msra.mxu0 0
      %1565 = vmatprep.mubr.bf16.mxu0 0
      %1566 = vmatmul.mubr.bf16.gmra.mxu0 %v1477
      %v1567 = vpop.f32.mrf.mxu0
      %v1568 = vadd.f32 0.0, %v1567
      %v1569 = vpop.f32.mrf.mxu0
      %v1570 = vpop.f32.mrf.mxu0
      %v1571 = vadd.f32 0.0, %v1570
      %v1572 = vpop.f32.mrf.mxu0
      %1573 = vmatprep.mubr.bf16.mxu0 0
      %1574 = vmatmul.mubr.bf16.gmra.mxu0 %v1478
      %v1575 = vpop.f32.mrf.mxu0
      %v1576 = vadd.f32 0.0, %v1575
      %v1577 = vpop.f32.mrf.mxu0
      %v1578 = vpop.f32.mrf.mxu0
      %v1579 = vadd.f32 0.0, %v1578
      %v1580 = vpop.f32.mrf.mxu0
      %1581 = vmatprep.mubr.bf16.mxu0 0
      %1582 = vmatmul.mubr.bf16.gmra.mxu0 %v1479
      %v1583 = vpop.f32.mrf.mxu0
      %v1584 = vadd.f32 0.0, %v1583
      %v1585 = vpop.f32.mrf.mxu0
      %v1586 = vpop.f32.mrf.mxu0
      %v1587 = vadd.f32 0.0, %v1586
      %v1588 = vpop.f32.mrf.mxu0
      %1589 = vmatprep.mubr.bf16.mxu0 0
      %1590 = vmatmul.mubr.bf16.gmra.mxu0 %v1480
      %v1591 = vpop.f32.mrf.mxu0
      %v1592 = vadd.f32 0.0, %v1591
      %v1593 = vpop.f32.mrf.mxu0
      %v1594 = vpop.f32.mrf.mxu0
      %v1595 = vadd.f32 0.0, %v1594
      %v1596 = vpop.f32.mrf.mxu0
      %1597 = vdwg.mxu0
      %v1598 = vadd.f32 %v1316, %v1568
      %v1599 = vadd.f32 %v1317, %v1571
      %v1600 = vadd.f32 %v1318, %v1576
      %v1601 = vadd.f32 %v1319, %v1579
      %v1602 = vadd.f32 %v1320, %v1584
      %v1603 = vadd.f32 %v1321, %v1587
      %v1604 = vadd.f32 %v1322, %v1592
      %v1605 = vadd.f32 %v1323, %v1595
      %v1606 = vld [vmem:[%s456] sm:$0xe]
      %v1607 = vld [vmem:[%s456 + $0x8] sm:$0xe]
      %v1608 = vld [vmem:[%s456 + $0x10] sm:$0xe]
      %v1609 = vld [vmem:[%s456 + $0x18] sm:$0xe]
      %v1610 = vld [vmem:[%s456 + $0x20] sm:$0xe]
      %v1611 = vld [vmem:[%s456 + $0x28] sm:$0xe]
      %v1612 = vld [vmem:[%s456 + $0x30] sm:$0xe]
      %v1613 = vld [vmem:[%s456 + $0x38] sm:$0xe]
      %v1630 = vrot.slane %v1606, 5
      %v1631 = vrot.slane %v1630, 4
      %v1632 = vrot.slane %v1325, 5
      %v1633 = vsel %vm967, %v1631, %v1632
      %v1634 = vrot.slane %v1607, 5
      %v1635 = vrot.slane %v1634, 4
      %v1636 = vrot.slane %v1327, 5
      %v1637 = vsel %vm967, %v1635, %v1636
      %v1638 = vrot.slane %v1608, 5
      %v1639 = vrot.slane %v1638, 4
      %v1640 = vrot.slane %v1329, 5
      %v1641 = vsel %vm967, %v1639, %v1640
      %v1642 = vrot.slane %v1609, 5
      %v1643 = vrot.slane %v1642, 4
      %v1644 = vrot.slane %v1331, 5
      %v1645 = vsel %vm967, %v1643, %v1644
      %v1646 = vrot.slane %v1610, 5
      %v1647 = vrot.slane %v1646, 4
      %v1648 = vrot.slane %v1333, 5
      %v1649 = vsel %vm967, %v1647, %v1648
      %v1650 = vrot.slane %v1611, 5
      %v1651 = vrot.slane %v1650, 4
      %v1652 = vrot.slane %v1335, 5
      %v1653 = vsel %vm967, %v1651, %v1652
      %v1654 = vrot.slane %v1612, 5
      %v1655 = vrot.slane %v1654, 4
      %v1656 = vrot.slane %v1337, 5
      %v1657 = vsel %vm967, %v1655, %v1656
      %v1658 = vrot.slane %v1613, 5
      %v1659 = vrot.slane %v1658, 4
      %v1660 = vrot.slane %v1339, 5
      %v1661 = vsel %vm967, %v1659, %v1660
      %s1662 = scalar_lea.vmem %s1, 320
      %v1663 = vld [vmem:[%s1662] sm:$0xf]
      %v1664 = vld [vmem:[%s1662 + $0x4] sm:$0xf]
      %v1665 = vld [vmem:[%s1662 + $0x8] sm:$0xf]
      %v1666 = vld [vmem:[%s1662 + $0xc] sm:$0xf]
      %v1667 = vld [vmem:[%s1662 + $0x10] sm:$0xf]
      %v1668 = vld [vmem:[%s1662 + $0x14] sm:$0xf]
      %v1669 = vld [vmem:[%s1662 + $0x18] sm:$0xf]
      %v1670 = vld [vmem:[%s1662 + $0x1c] sm:$0xf]
      %v1671 = vld [vmem:[%s1662 + $0x20] sm:$0xf]
      %v1672 = vld [vmem:[%s1662 + $0x24] sm:$0xf]
      %v1673 = vld [vmem:[%s1662 + $0x28] sm:$0xf]
      %v1674 = vld [vmem:[%s1662 + $0x2c] sm:$0xf]
      %v1675 = vld [vmem:[%s1662 + $0x30] sm:$0xf]
      %v1676 = vld [vmem:[%s1662 + $0x34] sm:$0xf]
      %v1677 = vld [vmem:[%s1662 + $0x38] sm:$0xf]
      %v1678 = vld [vmem:[%s1662 + $0x3c] sm:$0xf]
      %v1679 = vunpack.c.l.b16 %v1633
      %v1680 = vunpack.c.l.b16 %v1637
      %v1681 = vunpack.c.l.b16 %v1641
      %v1682 = vunpack.c.l.b16 %v1645
      %v1683 = vunpack.c.l.b16 %v1649
      %v1684 = vunpack.c.l.b16 %v1653
      %v1685 = vunpack.c.l.b16 %v1657
      %v1686 = vunpack.c.l.b16 %v1661
      %v1687 = vpack.c.b16 %v1680, %v1679
      %v1688 = vpack.c.b16 %v1682, %v1681
      %v1689 = vpack.c.b16 %v1684, %v1683
      %v1690 = vpack.c.b16 %v1686, %v1685
      %v1711 = vunpack.c.l.b16 %v1663
      %v1712 = vunpack.c.l.b16 %v1664
      %v1713 = vunpack.c.l.b16 %v1665
      %v1714 = vunpack.c.l.b16 %v1666
      %v1715 = vunpack.c.l.b16 %v1667
      %v1716 = vunpack.c.l.b16 %v1668
      %v1717 = vunpack.c.l.b16 %v1669
      %v1718 = vunpack.c.l.b16 %v1670
      %v1719 = vunpack.c.l.b16 %v1671
      %v1720 = vunpack.c.l.b16 %v1672
      %v1721 = vunpack.c.l.b16 %v1673
      %v1722 = vunpack.c.l.b16 %v1674
      %v1723 = vunpack.c.l.b16 %v1675
      %v1724 = vunpack.c.l.b16 %v1676
      %v1725 = vunpack.c.l.b16 %v1677
      %v1726 = vunpack.c.l.b16 %v1678
      %v1727 = vpack.c.b16 %v1712, %v1711
      %v1728 = vpack.c.b16 %v1714, %v1713
      %v1729 = vpack.c.b16 %v1716, %v1715
      %v1730 = vpack.c.b16 %v1718, %v1717
      %v1731 = vpack.c.b16 %v1720, %v1719
      %v1732 = vpack.c.b16 %v1722, %v1721
      %v1733 = vpack.c.b16 %v1724, %v1723
      %v1734 = vpack.c.b16 %v1726, %v1725
      %1743 = vmatprep.subr.bf16.mxu0 0
      %1744 = vmatpush1.bf16.msra.mxu0 %v1734
      %1745 = vmatprep.subr.bf16.mxu0 0
      %1746 = vmatpush1.bf16.msra.mxu0 %v1733
      %1747 = vmatprep.subr.bf16.mxu0 0
      %1748 = vmatpush1.bf16.msra.mxu0 %v1732
      %1749 = vmatprep.subr.bf16.mxu0 0
      %1750 = vmatpush1.bf16.msra.mxu0 %v1731
      %1751 = vmatprep.subr.bf16.mxu0 0
      %1752 = vmatpush1.bf16.msra.mxu0 %v1730
      %1753 = vmatprep.subr.bf16.mxu0 0
      %1754 = vmatpush1.bf16.msra.mxu0 %v1729
      %1755 = vmatprep.subr.bf16.mxu0 0
      %1756 = vmatpush1.bf16.msra.mxu0 %v1728
      %1757 = vmatprep.subr.bf16.mxu0 0
      %1758 = vmatpush1.bf16.msra.mxu0 %v1727
      %1759 = vmatprep.subr.bf16.mxu0 0
      %1760 = vmatpush2.bf16.msra.mxu0 0
      %1761 = vmatprep.subr.bf16.mxu0 0
      %1762 = vmatpush2.bf16.msra.mxu0 0
      %1763 = vmatprep.subr.bf16.mxu0 0
      %1764 = vmatpush2.bf16.msra.mxu0 0
      %1765 = vmatprep.subr.bf16.mxu0 0
      %1766 = vmatpush2.bf16.msra.mxu0 0
      %1767 = vmatprep.subr.bf16.mxu0 0
      %1768 = vmatpush2.bf16.msra.mxu0 0
      %1769 = vmatprep.subr.bf16.mxu0 0
      %1770 = vmatpush2.bf16.msra.mxu0 0
      %1771 = vmatprep.subr.bf16.mxu0 0
      %1772 = vmatpush2.bf16.msra.mxu0 0
      %1773 = vmatprep.subr.bf16.mxu0 0
      %1774 = vmatpush2.bf16.msra.mxu0 0
      %1775 = vmatprep.mubr.bf16.mxu0 0
      %1776 = vmatmul.mubr.bf16.gmra.mxu0 %v1687
      %v1777 = vpop.f32.mrf.mxu0
      %v1778 = vadd.f32 0.0, %v1777
      %v1779 = vpop.f32.mrf.mxu0
      %v1780 = vpop.f32.mrf.mxu0
      %v1781 = vadd.f32 0.0, %v1780
      %v1782 = vpop.f32.mrf.mxu0
      %1783 = vmatprep.mubr.bf16.mxu0 0
      %1784 = vmatmul.mubr.bf16.gmra.mxu0 %v1688
      %v1785 = vpop.f32.mrf.mxu0
      %v1786 = vadd.f32 0.0, %v1785
      %v1787 = vpop.f32.mrf.mxu0
      %v1788 = vpop.f32.mrf.mxu0
      %v1789 = vadd.f32 0.0, %v1788
      %v1790 = vpop.f32.mrf.mxu0
      %1791 = vmatprep.mubr.bf16.mxu0 0
      %1792 = vmatmul.mubr.bf16.gmra.mxu0 %v1689
      %v1793 = vpop.f32.mrf.mxu0
      %v1794 = vadd.f32 0.0, %v1793
      %v1795 = vpop.f32.mrf.mxu0
      %v1796 = vpop.f32.mrf.mxu0
      %v1797 = vadd.f32 0.0, %v1796
      %v1798 = vpop.f32.mrf.mxu0
      %1799 = vmatprep.mubr.bf16.mxu0 0
      %1800 = vmatmul.mubr.bf16.gmra.mxu0 %v1690
      %v1801 = vpop.f32.mrf.mxu0
      %v1802 = vadd.f32 0.0, %v1801
      %v1803 = vpop.f32.mrf.mxu0
      %v1804 = vpop.f32.mrf.mxu0
      %v1805 = vadd.f32 0.0, %v1804
      %v1806 = vpop.f32.mrf.mxu0
      %1807 = vdwg.mxu0
      %v1808 = vadd.f32 %v1598, %v1778
      %v1809 = vadd.f32 %v1599, %v1781
      %v1810 = vadd.f32 %v1600, %v1786
      %v1811 = vadd.f32 %v1601, %v1789
      %v1812 = vadd.f32 %v1602, %v1794
      %v1813 = vadd.f32 %v1603, %v1797
      %v1814 = vadd.f32 %v1604, %v1802
      %v1815 = vadd.f32 %v1605, %v1805
      %s1816 = scalar_lea.vmem [#allocation2], 16
      %v1817 = vld [vmem:[%s1816] sm:$0xf]
      %v1818 = vld [vmem:[%s1816 + $0x8] sm:$0xf]
      %v1819 = vld [vmem:[%s1816 + $0x10] sm:$0xf]
      %v1820 = vld [vmem:[%s1816 + $0x18] sm:$0xf]
      %v1821 = vld [vmem:[%s1816 + $0x20] sm:$0xf]
      %v1822 = vld [vmem:[%s1816 + $0x28] sm:$0xf]
      %v1823 = vld [vmem:[%s1816 + $0x30] sm:$0xf]
      %v1824 = vld [vmem:[%s1816 + $0x38] sm:$0xf]
      %s1825 = scalar_lea.vmem %s1, 384
      %v1826 = vld [vmem:[%s1825] sm:$0xf]
      %v1827 = vld [vmem:[%s1825 + $0x4] sm:$0xf]
      %v1828 = vld [vmem:[%s1825 + $0x8] sm:$0xf]
      %v1829 = vld [vmem:[%s1825 + $0xc] sm:$0xf]
      %v1830 = vld [vmem:[%s1825 + $0x10] sm:$0xf]
      %v1831 = vld [vmem:[%s1825 + $0x14] sm:$0xf]
      %v1832 = vld [vmem:[%s1825 + $0x18] sm:$0xf]
      %v1833 = vld [vmem:[%s1825 + $0x1c] sm:$0xf]
      %v1834 = vld [vmem:[%s1825 + $0x20] sm:$0xf]
      %v1835 = vld [vmem:[%s1825 + $0x24] sm:$0xf]
      %v1836 = vld [vmem:[%s1825 + $0x28] sm:$0xf]
      %v1837 = vld [vmem:[%s1825 + $0x2c] sm:$0xf]
      %v1838 = vld [vmem:[%s1825 + $0x30] sm:$0xf]
      %v1839 = vld [vmem:[%s1825 + $0x34] sm:$0xf]
      %v1840 = vld [vmem:[%s1825 + $0x38] sm:$0xf]
      %v1841 = vld [vmem:[%s1825 + $0x3c] sm:$0xf]
      %v1850 = vunpack.c.l.b16 %v1817
      %v1851 = vunpack.c.l.b16 %v1818
      %v1852 = vunpack.c.l.b16 %v1819
      %v1853 = vunpack.c.l.b16 %v1820
      %v1854 = vunpack.c.l.b16 %v1821
      %v1855 = vunpack.c.l.b16 %v1822
      %v1856 = vunpack.c.l.b16 %v1823
      %v1857 = vunpack.c.l.b16 %v1824
      %v1858 = vpack.c.b16 %v1851, %v1850
      %v1859 = vpack.c.b16 %v1853, %v1852
      %v1860 = vpack.c.b16 %v1855, %v1854
      %v1861 = vpack.c.b16 %v1857, %v1856
      %v1882 = vunpack.c.l.b16 %v1826
      %v1883 = vunpack.c.l.b16 %v1827
      %v1884 = vunpack.c.l.b16 %v1828
      %v1885 = vunpack.c.l.b16 %v1829
      %v1886 = vunpack.c.l.b16 %v1830
      %v1887 = vunpack.c.l.b16 %v1831
      %v1888 = vunpack.c.l.b16 %v1832
      %v1889 = vunpack.c.l.b16 %v1833
      %v1890 = vunpack.c.l.b16 %v1834
      %v1891 = vunpack.c.l.b16 %v1835
      %v1892 = vunpack.c.l.b16 %v1836
      %v1893 = vunpack.c.l.b16 %v1837
      %v1894 = vunpack.c.l.b16 %v1838
      %v1895 = vunpack.c.l.b16 %v1839
      %v1896 = vunpack.c.l.b16 %v1840
      %v1897 = vunpack.c.l.b16 %v1841
      %v1898 = vpack.c.b16 %v1883, %v1882
      %v1899 = vpack.c.b16 %v1885, %v1884
      %v1900 = vpack.c.b16 %v1887, %v1886
      %v1901 = vpack.c.b16 %v1889, %v1888
      %v1902 = vpack.c.b16 %v1891, %v1890
      %v1903 = vpack.c.b16 %v1893, %v1892
      %v1904 = vpack.c.b16 %v1895, %v1894
      %v1905 = vpack.c.b16 %v1897, %v1896
      %1914 = vmatprep.subr.bf16.mxu0 0
      %1915 = vmatpush1.bf16.msra.mxu0 %v1905
      %1916 = vmatprep.subr.bf16.mxu0 0
      %1917 = vmatpush1.bf16.msra.mxu0 %v1904
      %1918 = vmatprep.subr.bf16.mxu0 0
      %1919 = vmatpush1.bf16.msra.mxu0 %v1903
      %1920 = vmatprep.subr.bf16.mxu0 0
      %1921 = vmatpush1.bf16.msra.mxu0 %v1902
      %1922 = vmatprep.subr.bf16.mxu0 0
      %1923 = vmatpush1.bf16.msra.mxu0 %v1901
      %1924 = vmatprep.subr.bf16.mxu0 0
      %1925 = vmatpush1.bf16.msra.mxu0 %v1900
      %1926 = vmatprep.subr.bf16.mxu0 0
      %1927 = vmatpush1.bf16.msra.mxu0 %v1899
      %1928 = vmatprep.subr.bf16.mxu0 0
      %1929 = vmatpush1.bf16.msra.mxu0 %v1898
      %1930 = vmatprep.subr.bf16.mxu0 0
      %1931 = vmatpush2.bf16.msra.mxu0 0
      %1932 = vmatprep.subr.bf16.mxu0 0
      %1933 = vmatpush2.bf16.msra.mxu0 0
      %1934 = vmatprep.subr.bf16.mxu0 0
      %1935 = vmatpush2.bf16.msra.mxu0 0
      %1936 = vmatprep.subr.bf16.mxu0 0
      %1937 = vmatpush2.bf16.msra.mxu0 0
      %1938 = vmatprep.subr.bf16.mxu0 0
      %1939 = vmatpush2.bf16.msra.mxu0 0
      %1940 = vmatprep.subr.bf16.mxu0 0
      %1941 = vmatpush2.bf16.msra.mxu0 0
      %1942 = vmatprep.subr.bf16.mxu0 0
      %1943 = vmatpush2.bf16.msra.mxu0 0
      %1944 = vmatprep.subr.bf16.mxu0 0
      %1945 = vmatpush2.bf16.msra.mxu0 0
      %1946 = vmatprep.mubr.bf16.mxu0 0
      %1947 = vmatmul.mubr.bf16.gmra.mxu0 %v1858
      %v1948 = vpop.f32.mrf.mxu0
      %v1949 = vadd.f32 0.0, %v1948
      %v1950 = vpop.f32.mrf.mxu0
      %v1951 = vpop.f32.mrf.mxu0
      %v1952 = vadd.f32 0.0, %v1951
      %v1953 = vpop.f32.mrf.mxu0
      %1954 = vmatprep.mubr.bf16.mxu0 0
      %1955 = vmatmul.mubr.bf16.gmra.mxu0 %v1859
      %v1956 = vpop.f32.mrf.mxu0
      %v1957 = vadd.f32 0.0, %v1956
      %v1958 = vpop.f32.mrf.mxu0
      %v1959 = vpop.f32.mrf.mxu0
      %v1960 = vadd.f32 0.0, %v1959
      %v1961 = vpop.f32.mrf.mxu0
      %1962 = vmatprep.mubr.bf16.mxu0 0
      %1963 = vmatmul.mubr.bf16.gmra.mxu0 %v1860
      %v1964 = vpop.f32.mrf.mxu0
      %v1965 = vadd.f32 0.0, %v1964
      %v1966 = vpop.f32.mrf.mxu0
      %v1967 = vpop.f32.mrf.mxu0
      %v1968 = vadd.f32 0.0, %v1967
      %v1969 = vpop.f32.mrf.mxu0
      %1970 = vmatprep.mubr.bf16.mxu0 0
      %1971 = vmatmul.mubr.bf16.gmra.mxu0 %v1861
      %v1972 = vpop.f32.mrf.mxu0
      %v1973 = vadd.f32 0.0, %v1972
      %v1974 = vpop.f32.mrf.mxu0
      %v1975 = vpop.f32.mrf.mxu0
      %v1976 = vadd.f32 0.0, %v1975
      %v1977 = vpop.f32.mrf.mxu0
      %1978 = vdwg.mxu0
      %v1979 = vadd.f32 %v1808, %v1949
      %v1980 = vadd.f32 %v1809, %v1952
      %v1981 = vadd.f32 %v1810, %v1957
      %v1982 = vadd.f32 %v1811, %v1960
      %v1983 = vadd.f32 %v1812, %v1965
      %v1984 = vadd.f32 %v1813, %v1968
      %v1985 = vadd.f32 %v1814, %v1973
      %v1986 = vadd.f32 %v1815, %v1976
      %v1987 = vld [vmem:[%s1816] sm:$0xf]
      %v1988 = vld [vmem:[%s1816 + $0x4] sm:$0x1]
      %v1989 = vld [vmem:[%s1816 + $0x8] sm:$0xf]
      %v1990 = vld [vmem:[%s1816 + $0xc] sm:$0x1]
      %v1991 = vld [vmem:[%s1816 + $0x10] sm:$0xf]
      %v1992 = vld [vmem:[%s1816 + $0x14] sm:$0x1]
      %v1993 = vld [vmem:[%s1816 + $0x18] sm:$0xf]
      %v1994 = vld [vmem:[%s1816 + $0x1c] sm:$0x1]
      %v1995 = vld [vmem:[%s1816 + $0x20] sm:$0xf]
      %v1996 = vld [vmem:[%s1816 + $0x24] sm:$0x1]
      %v1997 = vld [vmem:[%s1816 + $0x28] sm:$0xf]
      %v1998 = vld [vmem:[%s1816 + $0x2c] sm:$0x1]
      %v1999 = vld [vmem:[%s1816 + $0x30] sm:$0xf]
      %v2000 = vld [vmem:[%s1816 + $0x34] sm:$0x1]
      %v2001 = vld [vmem:[%s1816 + $0x38] sm:$0xf]
      %v2002 = vld [vmem:[%s1816 + $0x3c] sm:$0x1]
      %v2004 = vshrl.u32 %v1987, 16
      %v2006 = vrot.slane %v2004, 4
      %v2007 = vshll.u32 %v1987, 16
      %v2009 = vrot.slane %v2007, 5
      %v2010 = vor.u32 %v2006, %v2009
      %v2011 = vrot.slane %v2010, 4
      %v2013 = vshll.u32 %v1988, 16
      %v2015 = vrot.slane %v2013, 5
      %v2016 = vsel %vm545, %v2011, %v2015
      %v2018 = vshrl.u32 %v1989, 16
      %v2020 = vrot.slane %v2018, 4
      %v2021 = vshll.u32 %v1989, 16
      %v2023 = vrot.slane %v2021, 5
      %v2024 = vor.u32 %v2020, %v2023
      %v2025 = vrot.slane %v2024, 4
      %v2027 = vshll.u32 %v1990, 16
      %v2029 = vrot.slane %v2027, 5
      %v2030 = vsel %vm545, %v2025, %v2029
      %v2032 = vshrl.u32 %v1991, 16
      %v2034 = vrot.slane %v2032, 4
      %v2035 = vshll.u32 %v1991, 16
      %v2037 = vrot.slane %v2035, 5
      %v2038 = vor.u32 %v2034, %v2037
      %v2039 = vrot.slane %v2038, 4
      %v2041 = vshll.u32 %v1992, 16
      %v2043 = vrot.slane %v2041, 5
      %v2044 = vsel %vm545, %v2039, %v2043
      %v2046 = vshrl.u32 %v1993, 16
      %v2048 = vrot.slane %v2046, 4
      %v2049 = vshll.u32 %v1993, 16
      %v2051 = vrot.slane %v2049, 5
      %v2052 = vor.u32 %v2048, %v2051
      %v2053 = vrot.slane %v2052, 4
      %v2055 = vshll.u32 %v1994, 16
      %v2057 = vrot.slane %v2055, 5
      %v2058 = vsel %vm545, %v2053, %v2057
      %v2060 = vshrl.u32 %v1995, 16
      %v2062 = vrot.slane %v2060, 4
      %v2063 = vshll.u32 %v1995, 16
      %v2065 = vrot.slane %v2063, 5
      %v2066 = vor.u32 %v2062, %v2065
      %v2067 = vrot.slane %v2066, 4
      %v2069 = vshll.u32 %v1996, 16
      %v2071 = vrot.slane %v2069, 5
      %v2072 = vsel %vm545, %v2067, %v2071
      %v2074 = vshrl.u32 %v1997, 16
      %v2076 = vrot.slane %v2074, 4
      %v2077 = vshll.u32 %v1997, 16
      %v2079 = vrot.slane %v2077, 5
      %v2080 = vor.u32 %v2076, %v2079
      %v2081 = vrot.slane %v2080, 4
      %v2083 = vshll.u32 %v1998, 16
      %v2085 = vrot.slane %v2083, 5
      %v2086 = vsel %vm545, %v2081, %v2085
      %v2088 = vshrl.u32 %v1999, 16
      %v2090 = vrot.slane %v2088, 4
      %v2091 = vshll.u32 %v1999, 16
      %v2093 = vrot.slane %v2091, 5
      %v2094 = vor.u32 %v2090, %v2093
      %v2095 = vrot.slane %v2094, 4
      %v2097 = vshll.u32 %v2000, 16
      %v2099 = vrot.slane %v2097, 5
      %v2100 = vsel %vm545, %v2095, %v2099
      %v2102 = vshrl.u32 %v2001, 16
      %v2104 = vrot.slane %v2102, 4
      %v2105 = vshll.u32 %v2001, 16
      %v2107 = vrot.slane %v2105, 5
      %v2108 = vor.u32 %v2104, %v2107
      %v2109 = vrot.slane %v2108, 4
      %v2111 = vshll.u32 %v2002, 16
      %v2113 = vrot.slane %v2111, 5
      %v2114 = vsel %vm545, %v2109, %v2113
      %s2115 = scalar_lea.vmem %s1, 448
      %v2116 = vld [vmem:[%s2115] sm:$0xf]
      %v2117 = vld [vmem:[%s2115 + $0x4] sm:$0xf]
      %v2118 = vld [vmem:[%s2115 + $0x8] sm:$0xf]
      %v2119 = vld [vmem:[%s2115 + $0xc] sm:$0xf]
      %v2120 = vld [vmem:[%s2115 + $0x10] sm:$0xf]
      %v2121 = vld [vmem:[%s2115 + $0x14] sm:$0xf]
      %v2122 = vld [vmem:[%s2115 + $0x18] sm:$0xf]
      %v2123 = vld [vmem:[%s2115 + $0x1c] sm:$0xf]
      %v2124 = vld [vmem:[%s2115 + $0x20] sm:$0xf]
      %v2125 = vld [vmem:[%s2115 + $0x24] sm:$0xf]
      %v2126 = vld [vmem:[%s2115 + $0x28] sm:$0xf]
      %v2127 = vld [vmem:[%s2115 + $0x2c] sm:$0xf]
      %v2128 = vld [vmem:[%s2115 + $0x30] sm:$0xf]
      %v2129 = vld [vmem:[%s2115 + $0x34] sm:$0xf]
      %v2130 = vld [vmem:[%s2115 + $0x38] sm:$0xf]
      %v2131 = vld [vmem:[%s2115 + $0x3c] sm:$0xf]
      %v2132 = vunpack.c.l.b16 %v2016
      %v2133 = vunpack.c.l.b16 %v2030
      %v2134 = vunpack.c.l.b16 %v2044
      %v2135 = vunpack.c.l.b16 %v2058
      %v2136 = vunpack.c.l.b16 %v2072
      %v2137 = vunpack.c.l.b16 %v2086
      %v2138 = vunpack.c.l.b16 %v2100
      %v2139 = vunpack.c.l.b16 %v2114
      %v2140 = vpack.c.b16 %v2133, %v2132
      %v2141 = vpack.c.b16 %v2135, %v2134
      %v2142 = vpack.c.b16 %v2137, %v2136
      %v2143 = vpack.c.b16 %v2139, %v2138
      %v2164 = vunpack.c.l.b16 %v2116
      %v2165 = vunpack.c.l.b16 %v2117
      %v2166 = vunpack.c.l.b16 %v2118
      %v2167 = vunpack.c.l.b16 %v2119
      %v2168 = vunpack.c.l.b16 %v2120
      %v2169 = vunpack.c.l.b16 %v2121
      %v2170 = vunpack.c.l.b16 %v2122
      %v2171 = vunpack.c.l.b16 %v2123
      %v2172 = vunpack.c.l.b16 %v2124
      %v2173 = vunpack.c.l.b16 %v2125
      %v2174 = vunpack.c.l.b16 %v2126
      %v2175 = vunpack.c.l.b16 %v2127
      %v2176 = vunpack.c.l.b16 %v2128
      %v2177 = vunpack.c.l.b16 %v2129
      %v2178 = vunpack.c.l.b16 %v2130
      %v2179 = vunpack.c.l.b16 %v2131
      %v2180 = vpack.c.b16 %v2165, %v2164
      %v2181 = vpack.c.b16 %v2167, %v2166
      %v2182 = vpack.c.b16 %v2169, %v2168
      %v2183 = vpack.c.b16 %v2171, %v2170
      %v2184 = vpack.c.b16 %v2173, %v2172
      %v2185 = vpack.c.b16 %v2175, %v2174
      %v2186 = vpack.c.b16 %v2177, %v2176
      %v2187 = vpack.c.b16 %v2179, %v2178
      %2196 = vmatprep.subr.bf16.mxu0 0
      %2197 = vmatpush1.bf16.msra.mxu0 %v2187
      %2198 = vmatprep.subr.bf16.mxu0 0
      %2199 = vmatpush1.bf16.msra.mxu0 %v2186
      %2200 = vmatprep.subr.bf16.mxu0 0
      %2201 = vmatpush1.bf16.msra.mxu0 %v2185
      %2202 = vmatprep.subr.bf16.mxu0 0
      %2203 = vmatpush1.bf16.msra.mxu0 %v2184
      %2204 = vmatprep.subr.bf16.mxu0 0
      %2205 = vmatpush1.bf16.msra.mxu0 %v2183
      %2206 = vmatprep.subr.bf16.mxu0 0
      %2207 = vmatpush1.bf16.msra.mxu0 %v2182
      %2208 = vmatprep.subr.bf16.mxu0 0
      %2209 = vmatpush1.bf16.msra.mxu0 %v2181
      %2210 = vmatprep.subr.bf16.mxu0 0
      %2211 = vmatpush1.bf16.msra.mxu0 %v2180
      %2212 = vmatprep.subr.bf16.mxu0 0
      %2213 = vmatpush2.bf16.msra.mxu0 0
      %2214 = vmatprep.subr.bf16.mxu0 0
      %2215 = vmatpush2.bf16.msra.mxu0 0
      %2216 = vmatprep.subr.bf16.mxu0 0
      %2217 = vmatpush2.bf16.msra.mxu0 0
      %2218 = vmatprep.subr.bf16.mxu0 0
      %2219 = vmatpush2.bf16.msra.mxu0 0
      %2220 = vmatprep.subr.bf16.mxu0 0
      %2221 = vmatpush2.bf16.msra.mxu0 0
      %2222 = vmatprep.subr.bf16.mxu0 0
      %2223 = vmatpush2.bf16.msra.mxu0 0
      %2224 = vmatprep.subr.bf16.mxu0 0
      %2225 = vmatpush2.bf16.msra.mxu0 0
      %2226 = vmatprep.subr.bf16.mxu0 0
      %2227 = vmatpush2.bf16.msra.mxu0 0
      %2228 = vmatprep.mubr.bf16.mxu0 0
      %2229 = vmatmul.mubr.bf16.gmra.mxu0 %v2140
      %v2230 = vpop.f32.mrf.mxu0
      %v2231 = vadd.f32 0.0, %v2230
      %v2232 = vpop.f32.mrf.mxu0
      %v2233 = vpop.f32.mrf.mxu0
      %v2234 = vadd.f32 0.0, %v2233
      %v2235 = vpop.f32.mrf.mxu0
      %2236 = vmatprep.mubr.bf16.mxu0 0
      %2237 = vmatmul.mubr.bf16.gmra.mxu0 %v2141
      %v2238 = vpop.f32.mrf.mxu0
      %v2239 = vadd.f32 0.0, %v2238
      %v2240 = vpop.f32.mrf.mxu0
      %v2241 = vpop.f32.mrf.mxu0
      %v2242 = vadd.f32 0.0, %v2241
      %v2243 = vpop.f32.mrf.mxu0
      %2244 = vmatprep.mubr.bf16.mxu0 0
      %2245 = vmatmul.mubr.bf16.gmra.mxu0 %v2142
      %v2246 = vpop.f32.mrf.mxu0
      %v2247 = vadd.f32 0.0, %v2246
      %v2248 = vpop.f32.mrf.mxu0
      %v2249 = vpop.f32.mrf.mxu0
      %v2250 = vadd.f32 0.0, %v2249
      %v2251 = vpop.f32.mrf.mxu0
      %2252 = vmatprep.mubr.bf16.mxu0 0
      %2253 = vmatmul.mubr.bf16.gmra.mxu0 %v2143
      %v2254 = vpop.f32.mrf.mxu0
      %v2255 = vadd.f32 0.0, %v2254
      %v2256 = vpop.f32.mrf.mxu0
      %v2257 = vpop.f32.mrf.mxu0
      %v2258 = vadd.f32 0.0, %v2257
      %v2259 = vpop.f32.mrf.mxu0
      %2260 = vdwg.mxu0
      %v2261 = vadd.f32 %v1979, %v2231
      %v2262 = vadd.f32 %v1980, %v2234
      %v2263 = vadd.f32 %v1981, %v2239
      %v2264 = vadd.f32 %v1982, %v2242
      %v2265 = vadd.f32 %v1983, %v2247
      %v2266 = vadd.f32 %v1984, %v2250
      %v2267 = vadd.f32 %v1985, %v2255
      %v2268 = vadd.f32 %v1986, %v2258
      %v2269 = vld [vmem:[%s1816] sm:$0xe]
      %v2270 = vld [vmem:[%s1816 + $0x8] sm:$0xe]
      %v2271 = vld [vmem:[%s1816 + $0x10] sm:$0xe]
      %v2272 = vld [vmem:[%s1816 + $0x18] sm:$0xe]
      %v2273 = vld [vmem:[%s1816 + $0x20] sm:$0xe]
      %v2274 = vld [vmem:[%s1816 + $0x28] sm:$0xe]
      %v2275 = vld [vmem:[%s1816 + $0x30] sm:$0xe]
      %v2276 = vld [vmem:[%s1816 + $0x38] sm:$0xe]
      %v2293 = vrot.slane %v2269, 5
      %v2294 = vrot.slane %v2293, 4
      %v2295 = vrot.slane %v1988, 5
      %v2296 = vsel %vm967, %v2294, %v2295
      %v2297 = vrot.slane %v2270, 5
      %v2298 = vrot.slane %v2297, 4
      %v2299 = vrot.slane %v1990, 5
      %v2300 = vsel %vm967, %v2298, %v2299
      %v2301 = vrot.slane %v2271, 5
      %v2302 = vrot.slane %v2301, 4
      %v2303 = vrot.slane %v1992, 5
      %v2304 = vsel %vm967, %v2302, %v2303
      %v2305 = vrot.slane %v2272, 5
      %v2306 = vrot.slane %v2305, 4
      %v2307 = vrot.slane %v1994, 5
      %v2308 = vsel %vm967, %v2306, %v2307
      %v2309 = vrot.slane %v2273, 5
      %v2310 = vrot.slane %v2309, 4
      %v2311 = vrot.slane %v1996, 5
      %v2312 = vsel %vm967, %v2310, %v2311
      %v2313 = vrot.slane %v2274, 5
      %v2314 = vrot.slane %v2313, 4
      %v2315 = vrot.slane %v1998, 5
      %v2316 = vsel %vm967, %v2314, %v2315
      %v2317 = vrot.slane %v2275, 5
      %v2318 = vrot.slane %v2317, 4
      %v2319 = vrot.slane %v2000, 5
      %v2320 = vsel %vm967, %v2318, %v2319
      %v2321 = vrot.slane %v2276, 5
      %v2322 = vrot.slane %v2321, 4
      %v2323 = vrot.slane %v2002, 5
      %v2324 = vsel %vm967, %v2322, %v2323
      %s2325 = scalar_lea.vmem %s1, 512
      %v2326 = vld [vmem:[%s2325] sm:$0xf]
      %v2327 = vld [vmem:[%s2325 + $0x4] sm:$0xf]
      %v2328 = vld [vmem:[%s2325 + $0x8] sm:$0xf]
      %v2329 = vld [vmem:[%s2325 + $0xc] sm:$0xf]
      %v2330 = vld [vmem:[%s2325 + $0x10] sm:$0xf]
      %v2331 = vld [vmem:[%s2325 + $0x14] sm:$0xf]
      %v2332 = vld [vmem:[%s2325 + $0x18] sm:$0xf]
      %v2333 = vld [vmem:[%s2325 + $0x1c] sm:$0xf]
      %v2334 = vld [vmem:[%s2325 + $0x20] sm:$0xf]
      %v2335 = vld [vmem:[%s2325 + $0x24] sm:$0xf]
      %v2336 = vld [vmem:[%s2325 + $0x28] sm:$0xf]
      %v2337 = vld [vmem:[%s2325 + $0x2c] sm:$0xf]
      %v2338 = vld [vmem:[%s2325 + $0x30] sm:$0xf]
      %v2339 = vld [vmem:[%s2325 + $0x34] sm:$0xf]
      %v2340 = vld [vmem:[%s2325 + $0x38] sm:$0xf]
      %v2341 = vld [vmem:[%s2325 + $0x3c] sm:$0xf]
      %v2342 = vunpack.c.l.b16 %v2296
      %v2343 = vunpack.c.l.b16 %v2300
      %v2344 = vunpack.c.l.b16 %v2304
      %v2345 = vunpack.c.l.b16 %v2308
      %v2346 = vunpack.c.l.b16 %v2312
      %v2347 = vunpack.c.l.b16 %v2316
      %v2348 = vunpack.c.l.b16 %v2320
      %v2349 = vunpack.c.l.b16 %v2324
      %v2350 = vpack.c.b16 %v2343, %v2342
      %v2351 = vpack.c.b16 %v2345, %v2344
      %v2352 = vpack.c.b16 %v2347, %v2346
      %v2353 = vpack.c.b16 %v2349, %v2348
      %v2374 = vunpack.c.l.b16 %v2326
      %v2375 = vunpack.c.l.b16 %v2327
      %v2376 = vunpack.c.l.b16 %v2328
      %v2377 = vunpack.c.l.b16 %v2329
      %v2378 = vunpack.c.l.b16 %v2330
      %v2379 = vunpack.c.l.b16 %v2331
      %v2380 = vunpack.c.l.b16 %v2332
      %v2381 = vunpack.c.l.b16 %v2333
      %v2382 = vunpack.c.l.b16 %v2334
      %v2383 = vunpack.c.l.b16 %v2335
      %v2384 = vunpack.c.l.b16 %v2336
      %v2385 = vunpack.c.l.b16 %v2337
      %v2386 = vunpack.c.l.b16 %v2338
      %v2387 = vunpack.c.l.b16 %v2339
      %v2388 = vunpack.c.l.b16 %v2340
      %v2389 = vunpack.c.l.b16 %v2341
      %v2390 = vpack.c.b16 %v2375, %v2374
      %v2391 = vpack.c.b16 %v2377, %v2376
      %v2392 = vpack.c.b16 %v2379, %v2378
      %v2393 = vpack.c.b16 %v2381, %v2380
      %v2394 = vpack.c.b16 %v2383, %v2382
      %v2395 = vpack.c.b16 %v2385, %v2384
      %v2396 = vpack.c.b16 %v2387, %v2386
      %v2397 = vpack.c.b16 %v2389, %v2388
      %2406 = vmatprep.subr.bf16.mxu0 0
      %2407 = vmatpush1.bf16.msra.mxu0 %v2397
      %2408 = vmatprep.subr.bf16.mxu0 0
      %2409 = vmatpush1.bf16.msra.mxu0 %v2396
      %2410 = vmatprep.subr.bf16.mxu0 0
      %2411 = vmatpush1.bf16.msra.mxu0 %v2395
      %2412 = vmatprep.subr.bf16.mxu0 0
      %2413 = vmatpush1.bf16.msra.mxu0 %v2394
      %2414 = vmatprep.subr.bf16.mxu0 0
      %2415 = vmatpush1.bf16.msra.mxu0 %v2393
      %2416 = vmatprep.subr.bf16.mxu0 0
      %2417 = vmatpush1.bf16.msra.mxu0 %v2392
      %2418 = vmatprep.subr.bf16.mxu0 0
      %2419 = vmatpush1.bf16.msra.mxu0 %v2391
      %2420 = vmatprep.subr.bf16.mxu0 0
      %2421 = vmatpush1.bf16.msra.mxu0 %v2390
      %2422 = vmatprep.subr.bf16.mxu0 0
      %2423 = vmatpush2.bf16.msra.mxu0 0
      %2424 = vmatprep.subr.bf16.mxu0 0
      %2425 = vmatpush2.bf16.msra.mxu0 0
      %2426 = vmatprep.subr.bf16.mxu0 0
      %2427 = vmatpush2.bf16.msra.mxu0 0
      %2428 = vmatprep.subr.bf16.mxu0 0
      %2429 = vmatpush2.bf16.msra.mxu0 0
      %2430 = vmatprep.subr.bf16.mxu0 0
      %2431 = vmatpush2.bf16.msra.mxu0 0
      %2432 = vmatprep.subr.bf16.mxu0 0
      %2433 = vmatpush2.bf16.msra.mxu0 0
      %2434 = vmatprep.subr.bf16.mxu0 0
      %2435 = vmatpush2.bf16.msra.mxu0 0
      %2436 = vmatprep.subr.bf16.mxu0 0
      %2437 = vmatpush2.bf16.msra.mxu0 0
      %2438 = vmatprep.mubr.bf16.mxu0 0
      %2439 = vmatmul.mubr.bf16.gmra.mxu0 %v2350
      %v2440 = vpop.f32.mrf.mxu0
      %v2441 = vadd.f32 0.0, %v2440
      %v2442 = vpop.f32.mrf.mxu0
      %v2443 = vpop.f32.mrf.mxu0
      %v2444 = vadd.f32 0.0, %v2443
      %v2445 = vpop.f32.mrf.mxu0
      %2446 = vmatprep.mubr.bf16.mxu0 0
      %2447 = vmatmul.mubr.bf16.gmra.mxu0 %v2351
      %v2448 = vpop.f32.mrf.mxu0
      %v2449 = vadd.f32 0.0, %v2448
      %v2450 = vpop.f32.mrf.mxu0
      %v2451 = vpop.f32.mrf.mxu0
      %v2452 = vadd.f32 0.0, %v2451
      %v2453 = vpop.f32.mrf.mxu0
      %2454 = vmatprep.mubr.bf16.mxu0 0
      %2455 = vmatmul.mubr.bf16.gmra.mxu0 %v2352
      %v2456 = vpop.f32.mrf.mxu0
      %v2457 = vadd.f32 0.0, %v2456
      %v2458 = vpop.f32.mrf.mxu0
      %v2459 = vpop.f32.mrf.mxu0
      %v2460 = vadd.f32 0.0, %v2459
      %v2461 = vpop.f32.mrf.mxu0
      %2462 = vmatprep.mubr.bf16.mxu0 0
      %2463 = vmatmul.mubr.bf16.gmra.mxu0 %v2353
      %v2464 = vpop.f32.mrf.mxu0
      %v2465 = vadd.f32 0.0, %v2464
      %v2466 = vpop.f32.mrf.mxu0
      %v2467 = vpop.f32.mrf.mxu0
      %v2468 = vadd.f32 0.0, %v2467
      %v2469 = vpop.f32.mrf.mxu0
      %2470 = vdwg.mxu0
      %v2471 = vadd.f32 %v2261, %v2441
      %v2472 = vadd.f32 %v2262, %v2444
      %v2473 = vadd.f32 %v2263, %v2449
      %v2474 = vadd.f32 %v2264, %v2452
      %v2475 = vadd.f32 %v2265, %v2457
      %v2476 = vadd.f32 %v2266, %v2460
      %v2477 = vadd.f32 %v2267, %v2465
      %v2478 = vadd.f32 %v2268, %v2468
      %v2479 = vadd.f32 %v2471, %v2472
      %v2480 = vadd.f32 %v2479, %v2473
      %v2481 = vadd.f32 %v2480, %v2474
      %v2482 = vadd.f32 %v2481, %v2475
      %v2483 = vadd.f32 %v2482, %v2476
      %v2484 = vadd.f32 %v2483, %v2477
      %v2485 = vadd.f32 %v2484, %v2478
      %v2486 = vrot.slane %v2485, 4
      %v2487 = vadd.f32 %v2485, %v2486
      %v2488 = vrot.slane %v2487, 2
      %v2489 = vadd.f32 %v2487, %v2488
      %v2490 = vrot.slane %v2489, 1
      %v2491 = vadd.f32 %v2489, %v2490
      %2492 = vst [vmem:[%s265] sm:$0x1] %v2491
      %v2493 = vmul.f32 %v2471, %v2471
      %v2494 = vmul.f32 %v2472, %v2472
      %v2495 = vmul.f32 %v2473, %v2473
      %v2496 = vmul.f32 %v2474, %v2474
      %v2497 = vmul.f32 %v2475, %v2475
      %v2498 = vmul.f32 %v2476, %v2476
      %v2499 = vmul.f32 %v2477, %v2477
      %v2500 = vmul.f32 %v2478, %v2478
      %v2501 = vadd.f32 %v2493, %v2494
      %v2502 = vadd.f32 %v2501, %v2495
      %v2503 = vadd.f32 %v2502, %v2496
      %v2504 = vadd.f32 %v2503, %v2497
      %v2505 = vadd.f32 %v2504, %v2498
      %v2506 = vadd.f32 %v2505, %v2499
      %v2507 = vadd.f32 %v2506, %v2500
      %v2508 = vrot.slane %v2507, 4
      %v2509 = vadd.f32 %v2507, %v2508
      %v2510 = vrot.slane %v2509, 2
      %v2511 = vadd.f32 %v2509, %v2510
      %v2512 = vrot.slane %v2511, 1
      %v2513 = vadd.f32 %v2511, %v2512
      %2514 = vst [vmem:[%s268] sm:$0x1] %v2513
      %v2515 = vpack.c.bf16 %v2472, %v2471
      %v2516 = vpack.c.bf16 %v2474, %v2473
      %v2517 = vpack.c.bf16 %v2476, %v2475
      %v2518 = vpack.c.bf16 %v2478, %v2477
      %v2523 = vunpack.c.l.b16 %v2515
      %v2524 = vunpack.c.h.b16 %v2515
      %v2525 = vunpack.c.l.b16 %v2516
      %v2526 = vunpack.c.h.b16 %v2516
      %v2527 = vunpack.c.l.b16 %v2517
      %v2528 = vunpack.c.h.b16 %v2517
      %v2529 = vunpack.c.l.b16 %v2518
      %v2530 = vunpack.c.h.b16 %v2518
      %v2531 = vpack.c.b16 %v2523, %v2523
      %v2532 = vpack.c.b16 %v2524, %v2524
      %v2533 = vpack.c.b16 %v2525, %v2525
      %v2534 = vpack.c.b16 %v2526, %v2526
      %v2535 = vpack.c.b16 %v2527, %v2527
      %v2536 = vpack.c.b16 %v2528, %v2528
      %v2537 = vpack.c.b16 %v2529, %v2529
      %v2538 = vpack.c.b16 %v2530, %v2530
      %2547 = vst [vmem:[%s262] sm:$0xf] %v2531
      %2548 = vst [vmem:[%s262 + $0x4] sm:$0xf] %v2532
      %2549 = vst [vmem:[%s262 + $0x8] sm:$0xf] %v2533
      %2550 = vst [vmem:[%s262 + $0xc] sm:$0xf] %v2534
      %2551 = vst [vmem:[%s262 + $0x10] sm:$0xf] %v2535
      %2552 = vst [vmem:[%s262 + $0x14] sm:$0xf] %v2536
      %2553 = vst [vmem:[%s262 + $0x18] sm:$0xf] %v2537
      %2554 = vst [vmem:[%s262 + $0x1c] sm:$0xf] %v2538
      %p2555 = scmp.lt.s32.totalorder %s18, 1
      %s2556 = scalar_select %p2555, %s18, 1
      %s2557 = smul.addr %s2556, 8
      %s2558 = smul.addr %s2557, 4
      %s2559 = scalar_lea.vmem %s4, %s2558
      %p2560 = scmp.lt.s32.totalorder %s18, 1
      %s2561 = scalar_select %p2560, %s18, 1
      %s2562 = scalar_lea.vmem %s5, %s2561
      %p2563 = scmp.lt.s32.totalorder %s18, 1
      %s2564 = scalar_select %p2563, %s18, 1
      %s2565 = scalar_lea.vmem %s6, %s2564
      // Predicated region
      $region37: #{basic_block_forward.4} parent=35 // pred_check
        %p2566 = pneg %p125
      $region38: #{basic_block_forward.4} parent=35 // pred_check_branch
        %2568 = sbr.rel (%p2566) target = $region40
      $region39: #{basic_block_forward.4} parent=35 // pred_region
        _
      $region40: #{basic_block_forward.4} parent=35 // pred_fallthru
        _
      // Predicated region
      $region41: #{basic_block_forward.4} parent=35 // pred_check
        %p2569 = pneg %p151
      $region42: #{basic_block_forward.4} parent=35 // pred_check_branch
        %2571 = sbr.rel (%p2569) target = $region44
      $region43: #{basic_block_forward.4} parent=35 // pred_region
        _
      $region44: #{basic_block_forward.4} parent=35 // pred_fallthru
        _
      // Predicated region
      $region45: #{basic_block_forward.4} parent=35 // pred_check
        %p2572 = pneg %p177
      $region46: #{basic_block_forward.4} parent=35 // pred_check_branch
        %2574 = sbr.rel (%p2572) target = $region48
      $region47: #{basic_block_forward.4} parent=35 // pred_region
        _
      $region48: #{basic_block_forward.4} parent=35 // pred_fallthru
        _
    $region36: #{basic_block_forward.4} parent=5 // pred_fallthru
      _
    %p2575 = scmp.le.s32.totalorder 2, %s13
    // Predicated region
    $region49: #{basic_block_forward.4} parent=5 // pred_check
      %p2576 = pneg %p2575
    $region50: #{basic_block_forward.4} parent=5 // pred_check_branch
      %2578 = sbr.rel (%p2576) target = $region52
    $region51: #{basic_block_forward.4} parent=5 // pred_region
      %s2579 = ssub.s32 %s13, 2
      // Predicated region
      $region53: #{basic_block_forward.4} parent=51 // pred_check
        %p2580 = pneg %p131
      $region54: #{basic_block_forward.4} parent=51 // pred_check_branch
        %2582 = sbr.rel (%p2580) target = $region56
      $region55: #{basic_block_forward.4} parent=51 // pred_region
        %p2583 = scmp.lt.s32.totalorder %s19, 1
        %s2584 = scalar_select %p2583, %s19, 1
        %s2585 = smul.addr %s2584, 8
        %s2586 = smul.addr %s2585, 4
        %s2587 = scalar_lea.vmem %s4, %s2586
      $region56: #{basic_block_forward.4} parent=51 // pred_fallthru
        _
      // Predicated region
      $region57: #{basic_block_forward.4} parent=51 // pred_check
        %p2588 = pneg %p157
      $region58: #{basic_block_forward.4} parent=51 // pred_check_branch
        %2590 = sbr.rel (%p2588) target = $region60
      $region59: #{basic_block_forward.4} parent=51 // pred_region
        %p2591 = scmp.lt.s32.totalorder %s19, 1
        %s2592 = scalar_select %p2591, %s19, 1
        %s2593 = scalar_lea.vmem %s5, %s2592
      $region60: #{basic_block_forward.4} parent=51 // pred_fallthru
        _
      // Predicated region
      $region61: #{basic_block_forward.4} parent=51 // pred_check
        %p2594 = pneg %p183
      $region62: #{basic_block_forward.4} parent=51 // pred_check_branch
        %2596 = sbr.rel (%p2594) target = $region64
      $region63: #{basic_block_forward.4} parent=51 // pred_region
        %p2597 = scmp.lt.s32.totalorder %s19, 1
        %s2598 = scalar_select %p2597, %s19, 1
        %s2599 = scalar_lea.vmem %s6, %s2598
      $region64: #{basic_block_forward.4} parent=51 // pred_fallthru
        _
    $region52: #{basic_block_forward.4} parent=5 // pred_fallthru
      _
  $region6: #{basic_block_forward.4} parent=0 // loop_footer
    %s17 = sadd.s32 1, %s13
  $region7: #{basic_block_forward.4} parent=0 // loop_footer_branch
    %12 = sbr.rel target = $region3
  $region8: #{basic_block_forward.4} parent=0 // loop_exit
    _

</llo_original>
